<compile_context>
chip_gen: v5e
topology: v5e:2x2
jax: 0.10.0
libtpu: 0.0.40
codegen_flags: <defaults>
</compile_context>

<pallas_src>
import functools
import math

import jax
import jax.numpy as jnp
from jax.experimental import pallas as pl
from jax.experimental.pallas import tpu as pltpu

# --- hyper-parameters from the PyTorch __init__ -----------------------------
K1 = 20          # conv1 kernel size (1 -> 128 channels, stride 1, no padding)
K2 = 10          # conv2 kernel size (128 -> 128 channels)
C = 128          # conv channel width
POOL2 = 10       # pool2 kernel == stride (pool1 has kernel 1 == identity)
FC1_OUT = 200
FC2_OUT = 20
NUM_CLASSES = 2


def _mm(a, w, mxu_dtype):
    """MXU matmul; activations cast to mxu_dtype (weights pre-cast in HBM), f32 accumulate."""
    if mxu_dtype is not None:
        a = a.astype(mxu_dtype)
    return jnp.dot(a, w, preferred_element_type=jnp.float32)


# ------------- fused kernel: conv1/relu -> conv2/relu -> maxpool -> fc1/2/3 ---
def _candlenet_kernel(x_ref, w1_ref, b1_ref, w2_ref, b2_ref,
                      wfc1_ref, bfc1_ref, wfc2_ref, bfc2_ref, wfc3_ref, bfc3_ref,
                      logits_ref, feat_ref, *, mxu_dtype):
    _, TB, L = x_ref.shape
    Lc1 = L - K1 + 1
    Lc2 = Lc1 - K2 + 1
    Lp = Lc2 // POOL2

    x = x_ref[0]                                   # (TB, L)
    if mxu_dtype is not None:
        x = x.astype(mxu_dtype)                    # cast ONCE, before im2col

    # ---- conv1 -> relu (pool1 kernel_size=1 == identity) ----
    # Batched im2col: K1 lane-shifted views stacked along a new LEADING axis
    # (plain tile stacking), then one (TB*Lc1, K1) @ (K1, C) MXU matmul.
    p1 = jnp.stack([x[:, k:k + Lc1] for k in range(K1)], axis=0)     # (K1, TB, Lc1)
    p1 = p1.reshape(K1, TB * Lc1).T                                  # (TB*Lc1, K1)
    h1 = jnp.maximum(_mm(p1, w1_ref[...], mxu_dtype) + b1_ref[...], 0.0)   # (TB*Lc1, C) f32

    # ---- conv2 -> relu ----
    # Batched im2col: lane-aligned (128-wide) concat of K2 sublane-shifted views,
    # then one (TB*Lc2, K2*C) @ (K2*C, C) MXU matmul (K = 1280).
    h1c = h1.astype(mxu_dtype) if mxu_dtype is not None else h1
    h1c = h1c.reshape(TB, Lc1, C)
    p2 = jnp.concatenate([h1c[:, k:k + Lc2, :] for k in range(K2)], axis=-1)  # (TB, Lc2, K2*C)
    p2 = p2.reshape(TB * Lc2, K2 * C)
    h2 = jnp.maximum(_mm(p2, w2_ref[...], mxu_dtype) + b2_ref[...], 0.0)      # (TB*Lc2, C) f32

    # ---- pool2: MaxPool1d(kernel=stride=10) == reshape + max over windows ----
    h2 = h2.reshape(TB, Lc2, C)[:, :Lp * POOL2, :]                            # (TB, Lp*POOL2, C)
    pooled = jnp.max(h2.reshape(TB * Lp, POOL2, C), axis=1)                   # (TB*Lp, C)
    pooled = pooled.reshape(TB, Lp, C)

    # ---- fused FC stack: fc1 -> relu -> (dropout) -> fc2 -> relu -> fc3 ----
    # Flatten length-major / channel-minor via a lane-aligned concat (avoids a
    # sublane->lane reshape); matches the wfc1f[l*C + c, o] weight layout.
    flat = jnp.concatenate([pooled[:, l, :] for l in range(Lp)], axis=-1)     # (TB, Lp*C)
    z1 = jnp.maximum(_mm(flat, wfc1_ref[...], mxu_dtype) + bfc1_ref[...], 0.0)  # (TB, 200)
    # dropout(p=0.1): identity at inference time.
    # TODO(synk): training-mode dropout RNG not implemented (inference semantics).
    z2 = _mm(z1, wfc2_ref[...], mxu_dtype) + bfc2_ref[...]                      # (TB, 20) feature_vector
    feat_ref[0] = z2
    logits_ref[0] = (_mm(jnp.maximum(z2, 0.0), wfc3_ref[...], mxu_dtype)
                     + bfc3_ref[...])                                           # (TB, 2)


# ---------------- wrapper -----------------------------------------------------
def candlenet_forward(x, params, *, mxu_dtype=jnp.bfloat16):
    """x: (B, 1, L) float32 (NCL, like the PyTorch Conv1d input).

    Returns (logits (B, 2), feature_vector (B, 20)).
    """
    (w1, b1, w2f, b2, wfc1f, bfc1, wfc2, bfc2, wfc3, bfc3) = params
    B, cin, L = x.shape
    assert cin == 1
    Lc1 = L - K1 + 1
    Lc2 = Lc1 - K2 + 1
    Lp = Lc2 // POOL2
    assert wfc1f.shape[0] == Lp * C, "fc1 in-features must equal 128 * floor((L-28)/10)"

    # Pre-cast matmul weights to the MXU dtype once, in HBM (halves weight DMA
    # bytes vs. casting inside the kernel); biases stay f32 (added post-accumulate).
    if mxu_dtype is not None:
        w1, w2f, wfc1f, wfc2, wfc3 = (w.astype(mxu_dtype)
                                      for w in (w1, w2f, wfc1f, wfc2, wfc3))

    # Batch blocking: >= 2 grid steps whenever B >= 2 (v7x has 2 TensorCores
    # sharded over "parallel" grid axes), capped at 8 rows per block.
    TB = max(1, min(8, (B + 1) // 2))
    G = (B + TB - 1) // TB
    B_pad = G * TB
    x2 = x.reshape(B, L)                     # drop singleton channel dim (free)
    if B_pad != B:
        # TODO(synk): guard padded rows with pl.when in the real-size variant
        # (each padded row costs a full-length conv at real L).
        x2 = jnp.pad(x2, ((0, B_pad - B), (0, 0)))
    x3 = x2.reshape(G, TB, L)                # leading grid axis (free reshape)

    def _const(shape):
        n = len(shape)
        return pl.BlockSpec(shape, lambda i, _n=n: (0,) * _n)

    # TODO(synk): at real L, single-buffer the constant weight blocks
    # (pipeline_mode=pl.Buffered(1)) and set vmem_limit_bytes explicitly (v7x 64 MiB).
    logits3, feat3 = pl.pallas_call(
        functools.partial(_candlenet_kernel, mxu_dtype=mxu_dtype),
        out_shape=(jax.ShapeDtypeStruct((G, TB, NUM_CLASSES), jnp.float32),
                   jax.ShapeDtypeStruct((G, TB, FC2_OUT), jnp.float32)),
        grid=(G,),
        in_specs=[
            pl.BlockSpec((1, TB, L), lambda i: (i, 0, 0)),
            _const(w1.shape), _const(b1.shape),
            _const(w2f.shape), _const(b2.shape),
            _const(wfc1f.shape), _const(bfc1.shape),
            _const(wfc2.shape), _const(bfc2.shape),
            _const(wfc3.shape), _const(bfc3.shape),
        ],
        out_specs=(pl.BlockSpec((1, TB, NUM_CLASSES), lambda i: (i, 0, 0)),
                   pl.BlockSpec((1, TB, FC2_OUT), lambda i: (i, 0, 0))),
        compiler_params=pltpu.CompilerParams(dimension_semantics=("parallel",)),
    )(x3, w1, b1, w2f, b2, wfc1f, bfc1, wfc2, bfc2, wfc3, bfc3)

    logits = logits3.reshape(B_pad, NUM_CLASSES)[:B]
    feat = feat3.reshape(B_pad, FC2_OUT)[:B]
    return logits, feat


# --- deterministic parameter init (shapes from __init__, kernel-friendly layout) ----
# Layout map vs torch: w1[k,c]=conv1.w[c,0,k]; w2f[k*C+ci,co]=conv2.w[co,ci,k];
# wfc1f[l*C+c,o] is fc1.weight with its input features permuted to (l, c) order
# (the kernel flattens length-major / channel-minor instead of torch's channel-major).
def init_params(key, L):
    Lc2 = L - K1 - K2 + 2
    Lp = Lc2 // POOL2
    ks = jax.random.split(key, 10)

    def u(k, shape, fan_in):
        bound = 1.0 / math.sqrt(fan_in)
        return jax.random.uniform(k, shape, jnp.float32, -bound, bound)

    w1 = u(ks[0], (K1, C), 1 * K1)
    b1 = u(ks[1], (1, C), 1 * K1)
    w2f = u(ks[2], (K2 * C, C), C * K2)
    b2 = u(ks[3], (1, C), C * K2)
    wfc1f = u(ks[4], (Lp * C, FC1_OUT), Lp * C)
    bfc1 = u(ks[5], (1, FC1_OUT), Lp * C)
    wfc2 = u(ks[6], (FC1_OUT, FC2_OUT), FC1_OUT)
    bfc2 = u(ks[7], (1, FC2_OUT), FC1_OUT)
    wfc3 = u(ks[8], (FC2_OUT, NUM_CLASSES), FC2_OUT)
    bfc3 = u(ks[9], (1, NUM_CLASSES), FC2_OUT)
    return (w1, b1, w2f, b2, wfc1f, bfc1, wfc2, bfc2, wfc3, bfc3)


# --- pure-JAX reference (same operand casts as the kernel) for correctness ----
def reference_forward(x, params, *, mxu_dtype=jnp.bfloat16):
    (w1, b1, w2f, b2, wfc1f, bfc1, wfc2, bfc2, wfc3, bfc3) = params

    def c(a):
        return a.astype(mxu_dtype) if mxu_dtype is not None else a

    def mm(a, w):
        return jnp.dot(c(a), c(w), preferred_element_type=jnp.float32)

    xs = x[:, 0, :]
    B, L = xs.shape
    Lc1 = L - K1 + 1
    Lc2 = Lc1 - K2 + 1
    Lp = Lc2 // POOL2
    p1 = jnp.stack([xs[:, k:k + Lc1] for k in range(K1)], axis=-1)              # (B, Lc1, K1)
    h1 = jnp.maximum(jnp.einsum('btk,kc->btc', c(p1), c(w1),
                                preferred_element_type=jnp.float32) + b1[0], 0.0)
    p2 = jnp.concatenate([h1[:, k:k + Lc2, :] for k in range(K2)], axis=-1)     # (B, Lc2, K2*C)
    h2 = jnp.maximum(jnp.einsum('bti,io->bto', c(p2), c(w2f),
                                preferred_element_type=jnp.float32) + b2[0], 0.0)
    pooled = jnp.max(h2[:, :Lp * POOL2, :].reshape(B, Lp, POOL2, C), axis=2)
    flat = pooled.reshape(B, Lp * C)
    z1 = jnp.maximum(mm(flat, wfc1f) + bfc1[0], 0.0)
    z2 = mm(z1, wfc2) + bfc2[0]
    z3 = mm(jnp.maximum(z2, 0.0), wfc3) + bfc3[0]
    return z3, z2


if __name__ == "__main__":
    key = jax.random.PRNGKey(0)
    k_x, k_p = jax.random.split(key)

    B, L = 2, 108                       # small seq: conv1->89, conv2->80, pool->8
    x = jax.random.normal(k_x, (B, 1, L), jnp.float32)
    params = init_params(k_p, L)

    logits, feat = candlenet_forward(x, params)
    jax.block_until_ready((logits, feat))

    ref_logits, ref_feat = reference_forward(x, params)
    assert logits.shape == (B, NUM_CLASSES) and feat.shape == (B, FC2_OUT)
    assert bool(jnp.allclose(logits, ref_logits, rtol=2e-3, atol=2e-3))
    assert bool(jnp.allclose(feat, ref_feat, rtol=2e-3, atol=2e-3))

    print("KERNEL_OK")
</pallas_src>

<mosaic_0001>
module attributes {stable_mosaic.version = 11 : i64} {
  func.func @_candlenet_kernel(%arg0: i32, %arg1: memref<1x1x108xf32, #tpu.memory_space<vmem>>, %arg2: memref<20x128xbf16, #tpu.memory_space<vmem>>, %arg3: memref<1x128xf32, #tpu.memory_space<vmem>>, %arg4: memref<1280x128xbf16, #tpu.memory_space<vmem>>, %arg5: memref<1x128xf32, #tpu.memory_space<vmem>>, %arg6: memref<1024x200xbf16, #tpu.memory_space<vmem>>, %arg7: memref<1x200xf32, #tpu.memory_space<vmem>>, %arg8: memref<200x20xbf16, #tpu.memory_space<vmem>>, %arg9: memref<1x20xf32, #tpu.memory_space<vmem>>, %arg10: memref<20x2xbf16, #tpu.memory_space<vmem>>, %arg11: memref<1x2xf32, #tpu.memory_space<vmem>>, %arg12: memref<1x1x2xf32, #tpu.memory_space<vmem>>, %arg13: memref<1x1x20xf32, #tpu.memory_space<vmem>>) attributes {dimension_semantics = [#tpu.dimension_semantics<parallel>], iteration_bounds = array<i64: 2>, scalar_prefetch = 0 : i64, scratch_operands = 0 : i64, tpu.core_type = #tpu.core_type<tc>, window_params = [{transform_indices = @transform_0, window_bounds = array<i64: 1, 1, 108>}, {pipeline_mode = #tpu.pipeline_mode<synchronous>, transform_indices = @transform_1, window_bounds = array<i64: 20, 128>}, {pipeline_mode = #tpu.pipeline_mode<synchronous>, transform_indices = @transform_2, window_bounds = array<i64: 1, 128>}, {pipeline_mode = #tpu.pipeline_mode<synchronous>, transform_indices = @transform_3, window_bounds = array<i64: 1280, 128>}, {pipeline_mode = #tpu.pipeline_mode<synchronous>, transform_indices = @transform_4, window_bounds = array<i64: 1, 128>}, {pipeline_mode = #tpu.pipeline_mode<synchronous>, transform_indices = @transform_5, window_bounds = array<i64: 1024, 200>}, {pipeline_mode = #tpu.pipeline_mode<synchronous>, transform_indices = @transform_6, window_bounds = array<i64: 1, 200>}, {pipeline_mode = #tpu.pipeline_mode<synchronous>, transform_indices = @transform_7, window_bounds = array<i64: 200, 20>}, {pipeline_mode = #tpu.pipeline_mode<synchronous>, transform_indices = @transform_8, window_bounds = array<i64: 1, 20>}, {pipeline_mode = #tpu.pipeline_mode<synchronous>, transform_indices = @transform_9, window_bounds = array<i64: 20, 2>}, {pipeline_mode = #tpu.pipeline_mode<synchronous>, transform_indices = @transform_10, window_bounds = array<i64: 1, 2>}, {transform_indices = @transform_11, window_bounds = array<i64: 1, 1, 2>}, {transform_indices = @transform_12, window_bounds = array<i64: 1, 1, 20>}]} {
    %c0 = arith.constant 0 : index
    %c0_0 = arith.constant 0 : index
    %c0_1 = arith.constant 0 : index
    %0 = vector.load %arg1[%c0, %c0_0, %c0_1] : memref<1x1x108xf32, #tpu.memory_space<vmem>>, vector<1x1x108xf32>
    %1 = vector.shape_cast %0 : vector<1x1x108xf32> to vector<1x108xf32>
    %2 = arith.truncf %1 : vector<1x108xf32> to vector<1x108xbf16>
    %3 = vector.extract_strided_slice %2 {offsets = [0, 0], sizes = [1, 89], strides = [1, 1]} : vector<1x108xbf16> to vector<1x89xbf16>
    %4 = vector.extract_strided_slice %2 {offsets = [0, 1], sizes = [1, 89], strides = [1, 1]} : vector<1x108xbf16> to vector<1x89xbf16>
    %5 = vector.extract_strided_slice %2 {offsets = [0, 2], sizes = [1, 89], strides = [1, 1]} : vector<1x108xbf16> to vector<1x89xbf16>
    %6 = vector.extract_strided_slice %2 {offsets = [0, 3], sizes = [1, 89], strides = [1, 1]} : vector<1x108xbf16> to vector<1x89xbf16>
    %7 = vector.extract_strided_slice %2 {offsets = [0, 4], sizes = [1, 89], strides = [1, 1]} : vector<1x108xbf16> to vector<1x89xbf16>
    %8 = vector.extract_strided_slice %2 {offsets = [0, 5], sizes = [1, 89], strides = [1, 1]} : vector<1x108xbf16> to vector<1x89xbf16>
    %9 = vector.extract_strided_slice %2 {offsets = [0, 6], sizes = [1, 89], strides = [1, 1]} : vector<1x108xbf16> to vector<1x89xbf16>
    %10 = vector.extract_strided_slice %2 {offsets = [0, 7], sizes = [1, 89], strides = [1, 1]} : vector<1x108xbf16> to vector<1x89xbf16>
    %11 = vector.extract_strided_slice %2 {offsets = [0, 8], sizes = [1, 89], strides = [1, 1]} : vector<1x108xbf16> to vector<1x89xbf16>
    %12 = vector.extract_strided_slice %2 {offsets = [0, 9], sizes = [1, 89], strides = [1, 1]} : vector<1x108xbf16> to vector<1x89xbf16>
    %13 = vector.extract_strided_slice %2 {offsets = [0, 10], sizes = [1, 89], strides = [1, 1]} : vector<1x108xbf16> to vector<1x89xbf16>
    %14 = vector.extract_strided_slice %2 {offsets = [0, 11], sizes = [1, 89], strides = [1, 1]} : vector<1x108xbf16> to vector<1x89xbf16>
    %15 = vector.extract_strided_slice %2 {offsets = [0, 12], sizes = [1, 89], strides = [1, 1]} : vector<1x108xbf16> to vector<1x89xbf16>
    %16 = vector.extract_strided_slice %2 {offsets = [0, 13], sizes = [1, 89], strides = [1, 1]} : vector<1x108xbf16> to vector<1x89xbf16>
    %17 = vector.extract_strided_slice %2 {offsets = [0, 14], sizes = [1, 89], strides = [1, 1]} : vector<1x108xbf16> to vector<1x89xbf16>
    %18 = vector.extract_strided_slice %2 {offsets = [0, 15], sizes = [1, 89], strides = [1, 1]} : vector<1x108xbf16> to vector<1x89xbf16>
    %19 = vector.extract_strided_slice %2 {offsets = [0, 16], sizes = [1, 89], strides = [1, 1]} : vector<1x108xbf16> to vector<1x89xbf16>
    %20 = vector.extract_strided_slice %2 {offsets = [0, 17], sizes = [1, 89], strides = [1, 1]} : vector<1x108xbf16> to vector<1x89xbf16>
    %21 = vector.extract_strided_slice %2 {offsets = [0, 18], sizes = [1, 89], strides = [1, 1]} : vector<1x108xbf16> to vector<1x89xbf16>
    %22 = vector.extract_strided_slice %2 {offsets = [0, 19], sizes = [1, 89], strides = [1, 1]} : vector<1x108xbf16> to vector<1x89xbf16>
    %23 = vector.shape_cast %3 : vector<1x89xbf16> to vector<1x1x89xbf16>
    %24 = vector.shape_cast %4 : vector<1x89xbf16> to vector<1x1x89xbf16>
    %25 = vector.shape_cast %5 : vector<1x89xbf16> to vector<1x1x89xbf16>
    %26 = vector.shape_cast %6 : vector<1x89xbf16> to vector<1x1x89xbf16>
    %27 = vector.shape_cast %7 : vector<1x89xbf16> to vector<1x1x89xbf16>
    %28 = vector.shape_cast %8 : vector<1x89xbf16> to vector<1x1x89xbf16>
    %29 = vector.shape_cast %9 : vector<1x89xbf16> to vector<1x1x89xbf16>
    %30 = vector.shape_cast %10 : vector<1x89xbf16> to vector<1x1x89xbf16>
    %31 = vector.shape_cast %11 : vector<1x89xbf16> to vector<1x1x89xbf16>
    %32 = vector.shape_cast %12 : vector<1x89xbf16> to vector<1x1x89xbf16>
    %33 = vector.shape_cast %13 : vector<1x89xbf16> to vector<1x1x89xbf16>
    %34 = vector.shape_cast %14 : vector<1x89xbf16> to vector<1x1x89xbf16>
    %35 = vector.shape_cast %15 : vector<1x89xbf16> to vector<1x1x89xbf16>
    %36 = vector.shape_cast %16 : vector<1x89xbf16> to vector<1x1x89xbf16>
    %37 = vector.shape_cast %17 : vector<1x89xbf16> to vector<1x1x89xbf16>
    %38 = vector.shape_cast %18 : vector<1x89xbf16> to vector<1x1x89xbf16>
    %39 = vector.shape_cast %19 : vector<1x89xbf16> to vector<1x1x89xbf16>
    %40 = vector.shape_cast %20 : vector<1x89xbf16> to vector<1x1x89xbf16>
    %41 = vector.shape_cast %21 : vector<1x89xbf16> to vector<1x1x89xbf16>
    %42 = vector.shape_cast %22 : vector<1x89xbf16> to vector<1x1x89xbf16>
    %43 = tpu.concatenate %23, %24, %25, %26, %27, %28, %29, %30, %31, %32, %33, %34, %35, %36, %37, %38 in 0 : vector<1x1x89xbf16>, vector<1x1x89xbf16>, vector<1x1x89xbf16>, vector<1x1x89xbf16>, vector<1x1x89xbf16>, vector<1x1x89xbf16>, vector<1x1x89xbf16>, vector<1x1x89xbf16>, vector<1x1x89xbf16>, vector<1x1x89xbf16>, vector<1x1x89xbf16>, vector<1x1x89xbf16>, vector<1x1x89xbf16>, vector<1x1x89xbf16>, vector<1x1x89xbf16>, vector<1x1x89xbf16> -> vector<16x1x89xbf16>
    %44 = tpu.concatenate %39, %40, %41, %42 in 0 : vector<1x1x89xbf16>, vector<1x1x89xbf16>, vector<1x1x89xbf16>, vector<1x1x89xbf16> -> vector<4x1x89xbf16>
    %45 = tpu.concatenate %43, %44 in 0 : vector<16x1x89xbf16>, vector<4x1x89xbf16> -> vector<20x1x89xbf16>
    %46 = vector.shape_cast %45 : vector<20x1x89xbf16> to vector<20x89xbf16>
    %47 = tpu.transpose %46, [1, 0] : vector<20x89xbf16> -> vector<89x20xbf16>
    %c0_2 = arith.constant 0 : index
    %c0_3 = arith.constant 0 : index
    %48 = vector.load %arg2[%c0_2, %c0_3] : memref<20x128xbf16, #tpu.memory_space<vmem>>, vector<20x128xbf16>
    %cst = arith.constant dense<0.000000e+00> : vector<89x128xf32>
    %49 = tpu.matmul %47, %48, %cst {dimension_numbers = #tpu.dot_dimension_numbers<[1], [0], [0], [1], [0, 0, 1, 1], [], []>} : vector<89x20xbf16>, vector<20x128xbf16>, vector<89x128xf32> -> vector<89x128xf32>
    %c0_4 = arith.constant 0 : index
    %c0_5 = arith.constant 0 : index
    %50 = vector.load %arg3[%c0_4, %c0_5] : memref<1x128xf32, #tpu.memory_space<vmem>>, vector<1x128xf32>
    %51 = vector.broadcast %50 : vector<1x128xf32> to vector<89x128xf32>
    %52 = arith.addf %49, %51 : vector<89x128xf32>
    %cst_6 = arith.constant 0.000000e+00 : f32
    %53 = vector.broadcast %cst_6 : f32 to vector<89x128xf32>
    %54 = arith.maximumf %52, %53 : vector<89x128xf32>
    %55 = arith.truncf %54 : vector<89x128xf32> to vector<89x128xbf16>
    %56 = vector.shape_cast %55 : vector<89x128xbf16> to vector<1x89x128xbf16>
    %57 = vector.extract_strided_slice %56 {offsets = [0, 0, 0], sizes = [1, 80, 128], strides = [1, 1, 1]} : vector<1x89x128xbf16> to vector<1x80x128xbf16>
    %58 = vector.extract_strided_slice %56 {offsets = [0, 1, 0], sizes = [1, 80, 128], strides = [1, 1, 1]} : vector<1x89x128xbf16> to vector<1x80x128xbf16>
    %59 = vector.extract_strided_slice %56 {offsets = [0, 2, 0], sizes = [1, 80, 128], strides = [1, 1, 1]} : vector<1x89x128xbf16> to vector<1x80x128xbf16>
    %60 = vector.extract_strided_slice %56 {offsets = [0, 3, 0], sizes = [1, 80, 128], strides = [1, 1, 1]} : vector<1x89x128xbf16> to vector<1x80x128xbf16>
    %61 = vector.extract_strided_slice %56 {offsets = [0, 4, 0], sizes = [1, 80, 128], strides = [1, 1, 1]} : vector<1x89x128xbf16> to vector<1x80x128xbf16>
    %62 = vector.extract_strided_slice %56 {offsets = [0, 5, 0], sizes = [1, 80, 128], strides = [1, 1, 1]} : vector<1x89x128xbf16> to vector<1x80x128xbf16>
    %63 = vector.extract_strided_slice %56 {offsets = [0, 6, 0], sizes = [1, 80, 128], strides = [1, 1, 1]} : vector<1x89x128xbf16> to vector<1x80x128xbf16>
    %64 = vector.extract_strided_slice %56 {offsets = [0, 7, 0], sizes = [1, 80, 128], strides = [1, 1, 1]} : vector<1x89x128xbf16> to vector<1x80x128xbf16>
    %65 = vector.extract_strided_slice %56 {offsets = [0, 8, 0], sizes = [1, 80, 128], strides = [1, 1, 1]} : vector<1x89x128xbf16> to vector<1x80x128xbf16>
    %66 = vector.extract_strided_slice %56 {offsets = [0, 9, 0], sizes = [1, 80, 128], strides = [1, 1, 1]} : vector<1x89x128xbf16> to vector<1x80x128xbf16>
    %67 = tpu.concatenate %57, %58, %59, %60, %61, %62, %63, %64, %65, %66 in 2 : vector<1x80x128xbf16>, vector<1x80x128xbf16>, vector<1x80x128xbf16>, vector<1x80x128xbf16>, vector<1x80x128xbf16>, vector<1x80x128xbf16>, vector<1x80x128xbf16>, vector<1x80x128xbf16>, vector<1x80x128xbf16>, vector<1x80x128xbf16> -> vector<1x80x1280xbf16>
    %68 = vector.shape_cast %67 : vector<1x80x1280xbf16> to vector<80x1280xbf16>
    %c0_7 = arith.constant 0 : index
    %c0_8 = arith.constant 0 : index
    %69 = vector.load %arg4[%c0_7, %c0_8] : memref<1280x128xbf16, #tpu.memory_space<vmem>>, vector<1280x128xbf16>
    %cst_9 = arith.constant dense<0.000000e+00> : vector<80x128xf32>
    %70 = tpu.matmul %68, %69, %cst_9 {dimension_numbers = #tpu.dot_dimension_numbers<[1], [0], [0], [1], [0, 0, 1, 1], [], []>} : vector<80x1280xbf16>, vector<1280x128xbf16>, vector<80x128xf32> -> vector<80x128xf32>
    %c0_10 = arith.constant 0 : index
    %c0_11 = arith.constant 0 : index
    %71 = vector.load %arg5[%c0_10, %c0_11] : memref<1x128xf32, #tpu.memory_space<vmem>>, vector<1x128xf32>
    %72 = vector.broadcast %71 : vector<1x128xf32> to vector<80x128xf32>
    %73 = arith.addf %70, %72 : vector<80x128xf32>
    %cst_12 = arith.constant 0.000000e+00 : f32
    %74 = vector.broadcast %cst_12 : f32 to vector<80x128xf32>
    %75 = arith.maximumf %73, %74 : vector<80x128xf32>
    %76 = vector.shape_cast %75 : vector<80x128xf32> to vector<1x80x128xf32>
    %77 = vector.shape_cast %76 : vector<1x80x128xf32> to vector<8x10x128xf32>
    %cst_13 = arith.constant dense<0xFF800000> : vector<8x128xf32>
    %78 = vector.multi_reduction <maximumf>, %77, %cst_13 [1] : vector<8x10x128xf32> to vector<8x128xf32>
    %79 = vector.shape_cast %78 : vector<8x128xf32> to vector<1x8x128xf32>
    %80 = vector.extract_strided_slice %79 {offsets = [0, 0, 0], sizes = [1, 1, 128], strides = [1, 1, 1]} : vector<1x8x128xf32> to vector<1x1x128xf32>
    %81 = vector.shape_cast %80 : vector<1x1x128xf32> to vector<1x128xf32>
    %82 = vector.extract_strided_slice %79 {offsets = [0, 1, 0], sizes = [1, 1, 128], strides = [1, 1, 1]} : vector<1x8x128xf32> to vector<1x1x128xf32>
    %83 = vector.shape_cast %82 : vector<1x1x128xf32> to vector<1x128xf32>
    %84 = vector.extract_strided_slice %79 {offsets = [0, 2, 0], sizes = [1, 1, 128], strides = [1, 1, 1]} : vector<1x8x128xf32> to vector<1x1x128xf32>
    %85 = vector.shape_cast %84 : vector<1x1x128xf32> to vector<1x128xf32>
    %86 = vector.extract_strided_slice %79 {offsets = [0, 3, 0], sizes = [1, 1, 128], strides = [1, 1, 1]} : vector<1x8x128xf32> to vector<1x1x128xf32>
    %87 = vector.shape_cast %86 : vector<1x1x128xf32> to vector<1x128xf32>
    %88 = vector.extract_strided_slice %79 {offsets = [0, 4, 0], sizes = [1, 1, 128], strides = [1, 1, 1]} : vector<1x8x128xf32> to vector<1x1x128xf32>
    %89 = vector.shape_cast %88 : vector<1x1x128xf32> to vector<1x128xf32>
    %90 = vector.extract_strided_slice %79 {offsets = [0, 5, 0], sizes = [1, 1, 128], strides = [1, 1, 1]} : vector<1x8x128xf32> to vector<1x1x128xf32>
    %91 = vector.shape_cast %90 : vector<1x1x128xf32> to vector<1x128xf32>
    %92 = vector.extract_strided_slice %79 {offsets = [0, 6, 0], sizes = [1, 1, 128], strides = [1, 1, 1]} : vector<1x8x128xf32> to vector<1x1x128xf32>
    %93 = vector.shape_cast %92 : vector<1x1x128xf32> to vector<1x128xf32>
    %94 = vector.extract_strided_slice %79 {offsets = [0, 7, 0], sizes = [1, 1, 128], strides = [1, 1, 1]} : vector<1x8x128xf32> to vector<1x1x128xf32>
    %95 = vector.shape_cast %94 : vector<1x1x128xf32> to vector<1x128xf32>
    %96 = tpu.concatenate %81, %83, %85, %87, %89, %91, %93, %95 in 1 : vector<1x128xf32>, vector<1x128xf32>, vector<1x128xf32>, vector<1x128xf32>, vector<1x128xf32>, vector<1x128xf32>, vector<1x128xf32>, vector<1x128xf32> -> vector<1x1024xf32>
    %c0_14 = arith.constant 0 : index
    %c0_15 = arith.constant 0 : index
    %97 = vector.load %arg6[%c0_14, %c0_15] : memref<1024x200xbf16, #tpu.memory_space<vmem>>, vector<1024x200xbf16>
    %98 = arith.truncf %96 : vector<1x1024xf32> to vector<1x1024xbf16>
    %cst_16 = arith.constant dense<0.000000e+00> : vector<1x200xf32>
    %99 = tpu.matmul %98, %97, %cst_16 {dimension_numbers = #tpu.dot_dimension_numbers<[1], [0], [0], [1], [0, 0, 1, 1], [], []>} : vector<1x1024xbf16>, vector<1024x200xbf16>, vector<1x200xf32> -> vector<1x200xf32>
    %c0_17 = arith.constant 0 : index
    %c0_18 = arith.constant 0 : index
    %100 = vector.load %arg7[%c0_17, %c0_18] : memref<1x200xf32, #tpu.memory_space<vmem>>, vector<1x200xf32>
    %101 = arith.addf %99, %100 : vector<1x200xf32>
    %cst_19 = arith.constant 0.000000e+00 : f32
    %102 = vector.broadcast %cst_19 : f32 to vector<1x200xf32>
    %103 = arith.maximumf %101, %102 : vector<1x200xf32>
    %c0_20 = arith.constant 0 : index
    %c0_21 = arith.constant 0 : index
    %104 = vector.load %arg8[%c0_20, %c0_21] : memref<200x20xbf16, #tpu.memory_space<vmem>>, vector<200x20xbf16>
    %105 = arith.truncf %103 : vector<1x200xf32> to vector<1x200xbf16>
    %cst_22 = arith.constant dense<0.000000e+00> : vector<1x20xf32>
    %106 = tpu.matmul %105, %104, %cst_22 {dimension_numbers = #tpu.dot_dimension_numbers<[1], [0], [0], [1], [0, 0, 1, 1], [], []>} : vector<1x200xbf16>, vector<200x20xbf16>, vector<1x20xf32> -> vector<1x20xf32>
    %c0_23 = arith.constant 0 : index
    %c0_24 = arith.constant 0 : index
    %107 = vector.load %arg9[%c0_23, %c0_24] : memref<1x20xf32, #tpu.memory_space<vmem>>, vector<1x20xf32>
    %108 = arith.addf %106, %107 : vector<1x20xf32>
    %c0_25 = arith.constant 0 : index
    %c0_26 = arith.constant 0 : index
    %c0_27 = arith.constant 0 : index
    %109 = vector.load %arg13[%c0_25, %c0_26, %c0_27] : memref<1x1x20xf32, #tpu.memory_space<vmem>>, vector<1x1x20xf32>
    %110 = vector.shape_cast %109 : vector<1x1x20xf32> to vector<1x20xf32>
    %111 = vector.shape_cast %108 : vector<1x20xf32> to vector<1x1x20xf32>
    tpu.vector_store %arg13[%c0_25, %c0_26, %c0_27], %111 {strides = array<i32>} : memref<1x1x20xf32, #tpu.memory_space<vmem>>, vector<1x1x20xf32>,
    %cst_28 = arith.constant 0.000000e+00 : f32
    %112 = vector.broadcast %cst_28 : f32 to vector<1x20xf32>
    %113 = arith.maximumf %108, %112 : vector<1x20xf32>
    %c0_29 = arith.constant 0 : index
    %c0_30 = arith.constant 0 : index
    %114 = vector.load %arg10[%c0_29, %c0_30] : memref<20x2xbf16, #tpu.memory_space<vmem>>, vector<20x2xbf16>
    %115 = arith.truncf %113 : vector<1x20xf32> to vector<1x20xbf16>
    %cst_31 = arith.constant dense<0.000000e+00> : vector<1x2xf32>
    %116 = tpu.matmul %115, %114, %cst_31 {dimension_numbers = #tpu.dot_dimension_numbers<[1], [0], [0], [1], [0, 0, 1, 1], [], []>} : vector<1x20xbf16>, vector<20x2xbf16>, vector<1x2xf32> -> vector<1x2xf32>
    %c0_32 = arith.constant 0 : index
    %c0_33 = arith.constant 0 : index
    %117 = vector.load %arg11[%c0_32, %c0_33] : memref<1x2xf32, #tpu.memory_space<vmem>>, vector<1x2xf32>
    %118 = arith.addf %116, %117 : vector<1x2xf32>
    %c0_34 = arith.constant 0 : index
    %c0_35 = arith.constant 0 : index
    %c0_36 = arith.constant 0 : index
    %119 = vector.load %arg12[%c0_34, %c0_35, %c0_36] : memref<1x1x2xf32, #tpu.memory_space<vmem>>, vector<1x1x2xf32>
    %120 = vector.shape_cast %119 : vector<1x1x2xf32> to vector<1x2xf32>
    %121 = vector.shape_cast %118 : vector<1x2xf32> to vector<1x1x2xf32>
    tpu.vector_store %arg12[%c0_34, %c0_35, %c0_36], %121 {strides = array<i32>} : memref<1x1x2xf32, #tpu.memory_space<vmem>>, vector<1x1x2xf32>,
    return
  }
  func.func @transform_0(%arg0: i32) -> (i32, i32, i32) {
    %c0_i32 = arith.constant 0 : i32
    %c0_i32_0 = arith.constant 0 : i32
    %c0_i32_1 = arith.constant 0 : i32
    return %arg0, %c0_i32, %c0_i32_0 : i32, i32, i32
  }
  func.func @transform_1(%arg0: i32) -> (i32, i32) {
    %c0_i32 = arith.constant 0 : i32
    %c0_i32_0 = arith.constant 0 : i32
    %c0_i32_1 = arith.constant 0 : i32
    return %c0_i32, %c0_i32_0 : i32, i32
  }
  func.func @transform_2(%arg0: i32) -> (i32, i32) {
    %c0_i32 = arith.constant 0 : i32
    %c0_i32_0 = arith.constant 0 : i32
    %c0_i32_1 = arith.constant 0 : i32
    return %c0_i32, %c0_i32_0 : i32, i32
  }
  func.func @transform_3(%arg0: i32) -> (i32, i32) {
    %c0_i32 = arith.constant 0 : i32
    %c0_i32_0 = arith.constant 0 : i32
    %c0_i32_1 = arith.constant 0 : i32
    return %c0_i32, %c0_i32_0 : i32, i32
  }
  func.func @transform_4(%arg0: i32) -> (i32, i32) {
    %c0_i32 = arith.constant 0 : i32
    %c0_i32_0 = arith.constant 0 : i32
    %c0_i32_1 = arith.constant 0 : i32
    return %c0_i32, %c0_i32_0 : i32, i32
  }
  func.func @transform_5(%arg0: i32) -> (i32, i32) {
    %c0_i32 = arith.constant 0 : i32
    %c0_i32_0 = arith.constant 0 : i32
    %c0_i32_1 = arith.constant 0 : i32
    return %c0_i32, %c0_i32_0 : i32, i32
  }
  func.func @transform_6(%arg0: i32) -> (i32, i32) {
    %c0_i32 = arith.constant 0 : i32
    %c0_i32_0 = arith.constant 0 : i32
    %c0_i32_1 = arith.constant 0 : i32
    return %c0_i32, %c0_i32_0 : i32, i32
  }
  func.func @transform_7(%arg0: i32) -> (i32, i32) {
    %c0_i32 = arith.constant 0 : i32
    %c0_i32_0 = arith.constant 0 : i32
    %c0_i32_1 = arith.constant 0 : i32
    return %c0_i32, %c0_i32_0 : i32, i32
  }
  func.func @transform_8(%arg0: i32) -> (i32, i32) {
    %c0_i32 = arith.constant 0 : i32
    %c0_i32_0 = arith.constant 0 : i32
    %c0_i32_1 = arith.constant 0 : i32
    return %c0_i32, %c0_i32_0 : i32, i32
  }
  func.func @transform_9(%arg0: i32) -> (i32, i32) {
    %c0_i32 = arith.constant 0 : i32
    %c0_i32_0 = arith.constant 0 : i32
    %c0_i32_1 = arith.constant 0 : i32
    return %c0_i32, %c0_i32_0 : i32, i32
  }
  func.func @transform_10(%arg0: i32) -> (i32, i32) {
    %c0_i32 = arith.constant 0 : i32
    %c0_i32_0 = arith.constant 0 : i32
    %c0_i32_1 = arith.constant 0 : i32
    return %c0_i32, %c0_i32_0 : i32, i32
  }
  func.func @transform_11(%arg0: i32) -> (i32, i32, i32) {
    %c0_i32 = arith.constant 0 : i32
    %c0_i32_0 = arith.constant 0 : i32
    %c0_i32_1 = arith.constant 0 : i32
    return %arg0, %c0_i32, %c0_i32_0 : i32, i32, i32
  }
  func.func @transform_12(%arg0: i32) -> (i32, i32, i32) {
    %c0_i32 = arith.constant 0 : i32
    %c0_i32_0 = arith.constant 0 : i32
    %c0_i32_1 = arith.constant 0 : i32
    return %arg0, %c0_i32, %c0_i32_0 : i32, i32, i32
  }
}

</mosaic_0001>

<llo_original>
// kernel: tpu_custom_call.1
$region0: #{tpu_custom_call.1}
  #allocation0 [shape = 'u32[]', space=smem, size = 0x4, offset = 0x4, fixed_abs, tag = 'smem constant byte address 0x4 - core index']
  #allocation1 [shape = 'u32[72,128]{1,0:T(1,128)}', space=vmem, size = 0x9000, scoped, tag = 'internal scratch']
  %s0 = inlined_call_operand.vmem [shape: f32[2,1,108], index: 0, kind: input, shape index: {}]
  %s1 = inlined_call_operand.vmem [shape: bf16[20,128], index: 1, kind: input, shape index: {}]
  %s2 = inlined_call_operand.vmem [shape: f32[1,128], index: 2, kind: input, shape index: {}]
  %s3 = inlined_call_operand.vmem [shape: bf16[1280,128], index: 3, kind: input, shape index: {}]
  %s4 = inlined_call_operand.vmem [shape: f32[1,128], index: 4, kind: input, shape index: {}]
  %s5 = inlined_call_operand.vmem [shape: bf16[1024,200], index: 5, kind: input, shape index: {}]
  %s6 = inlined_call_operand.vmem [shape: f32[1,200], index: 6, kind: input, shape index: {}]
  %s7 = inlined_call_operand.vmem [shape: bf16[200,20], index: 7, kind: input, shape index: {}]
  %s8 = inlined_call_operand.vmem [shape: f32[1,20], index: 8, kind: input, shape index: {}]
  %s9 = inlined_call_operand.vmem [shape: bf16[20,2], index: 9, kind: input, shape index: {}]
  %s10 = inlined_call_operand.vmem [shape: f32[1,2], index: 10, kind: input, shape index: {}]
  %s11 = inlined_call_operand.hbm [shape: f32[2,1,2], index: 11, kind: output, shape index: {0}]
  %s12 = inlined_call_operand.hbm [shape: f32[2,1,20], index: 12, kind: output, shape index: {1}]
  %13 = xla_tuple %s11, %s12
  %s14 = sld [smem:[#allocation0]]
  $region85: #{tpu_custom_call.1} parent=0
    _
  %s16 = ssub.s32 1, %s14
  %s17 = scalar_select 0, %s16, %s14
  $region1: #{tpu_custom_call.1} parent=0
    #allocation2 [shape = 'u8[1024]{0}', space=vmem, size = 0x400, scoped, tag = 'output window, operand 0']
    #allocation3 [shape = 's32[2]{0}', space=sflag, size = 0x8, scoped, tag = 'scoped memory for tpu_custom_call.1']
    #allocation4 [shape = 'u8[1024]{0}', space=vmem, size = 0x400, scoped, tag = 'output window, operand 1']
    #allocation5 [shape = 's32[2]{0}', space=sflag, size = 0x8, scoped, tag = 'scoped memory for tpu_custom_call.1']
    %18 = vsyncpa [#allocation3], 0
    %s19 = scalar_lea.sflag [#allocation3], 1
    %20 = vsyncpa %s19, 0
    %21 = vsyncpa [#allocation5], 0
    %s22 = scalar_lea.sflag [#allocation5], 1
    %23 = vsyncpa %s22, 0
    loop: start=0, step=1, limit=4
    $region2: #{tpu_custom_call.1} parent=1 // loop_pre_header
      _
    $region3: #{tpu_custom_call.1} parent=1 // loop_header
      %s25 = sphi 0, %s29
      %p26 = scmp.ge.s32.totalorder %s25, 4
      %s35 = sphi 0, %s37
      %s38 = sphi 0, %s35
      %s39 = sphi 0, %s38
      %s55 = sphi 0, %s39
      %s59 = sphi 0, %s59
      %s61 = sphi 0, %s59
      %s62 = sphi 0, %s61
      %s76 = sphi 0, %s62
      %s80 = sphi 0, %s80
      %s82 = sphi 0, %s80
      %s83 = sphi 0, %s82
      %s97 = sphi 0, %s83
      %s101 = sphi 0, %s101
      %s103 = sphi 0, %s101
      %s104 = sphi 0, %s103
      %s118 = sphi 0, %s104
      %s122 = sphi 0, %s122
      %s124 = sphi 0, %s122
      %s125 = sphi 0, %s124
      %s139 = sphi 0, %s125
      %s143 = sphi 0, %s143
      %s145 = sphi 0, %s143
      %s146 = sphi 0, %s145
      %s160 = sphi 0, %s146
      %s164 = sphi 0, %s164
      %s166 = sphi 0, %s164
      %s167 = sphi 0, %s166
      %s181 = sphi 0, %s167
      %s185 = sphi 0, %s185
      %s187 = sphi 0, %s185
      %s188 = sphi 0, %s187
      %s202 = sphi 0, %s188
      %s206 = sphi 0, %s206
      %s208 = sphi 0, %s206
      %s209 = sphi 0, %s208
      %s223 = sphi 0, %s209
      %s227 = sphi 0, %s227
      %s229 = sphi 0, %s227
      %s230 = sphi 0, %s229
      %s244 = sphi 0, %s230
      %s248 = sphi 0, %s248
      %s250 = sphi 0, %s248
      %s251 = sphi 0, %s250
      %s265 = sphi 0, %s251
      %s271 = sphi 0, %s273
      %s274 = sphi 0, %s271
      %s275 = sphi 0, %s274
      %s291 = sphi 0, %s275
      %s297 = sphi 0, %s299
      %s300 = sphi 0, %s297
      %s301 = sphi 0, %s300
      %s317 = sphi 0, %s301
    $region4: #{tpu_custom_call.1} parent=1 // loop_header_branch
      %28 = sbr.rel (%p26) target = $region8
    $region5: #{tpu_custom_call.1} parent=1 // loop_body
      %s30 = ssub.s32 %s25, 1
      %s31 = ssub.s32 %s25, 2
      %s32 = sadd.s32 %s25, 1
      %s33 = ssub.s32 %s25, %s32
      %p34 = scmp.eq.s32.totalorder %s33, 0
      %s36 = sadd.s32 %s35, 1
      %s37 = scalar_select %p34, %s35, %s36
      %p40 = pneg %p34
      %p41 = scmp.eq.s32.totalorder %s25, 1
      %p42 = por %p40, %p41
      %p43 = scmp.ne.s32.totalorder %s35, %s38
      %p44 = scmp.eq.s32.totalorder %s25, 0
      %p45 = por %p43, %p44
      %p46 = scmp.ne.s32.totalorder %s35, %s38
      %p47 = scmp.eq.s32.totalorder %s30, 1
      %p48 = por %p46, %p47
      %p49 = scmp.ne.s32.totalorder %s38, %s39
      %p50 = scmp.eq.s32.totalorder %s30, 0
      %p51 = por %p49, %p50
      %p52 = scmp.ne.s32.totalorder %s38, %s39
      %p53 = scmp.eq.s32.totalorder %s31, 1
      %p54 = por %p52, %p53
      %p56 = scmp.ne.s32.totalorder %s39, %s55
      %p57 = scmp.eq.s32.totalorder %s31, 0
      %p58 = por %p56, %p57
      %s60 = sadd.s32 %s59, 1
      %p63 = scmp.eq.s32.totalorder %s25, 1
      %p64 = scmp.ne.s32.totalorder %s59, %s61
      %p65 = scmp.eq.s32.totalorder %s25, 0
      %p66 = por %p64, %p65
      %p67 = scmp.ne.s32.totalorder %s59, %s61
      %p68 = scmp.eq.s32.totalorder %s30, 1
      %p69 = por %p67, %p68
      %p70 = scmp.ne.s32.totalorder %s61, %s62
      %p71 = scmp.eq.s32.totalorder %s30, 0
      %p72 = por %p70, %p71
      %p73 = scmp.ne.s32.totalorder %s61, %s62
      %p74 = scmp.eq.s32.totalorder %s31, 1
      %p75 = por %p73, %p74
      %p77 = scmp.ne.s32.totalorder %s62, %s76
      %p78 = scmp.eq.s32.totalorder %s31, 0
      %p79 = por %p77, %p78
      %s81 = sadd.s32 %s80, 1
      %p84 = scmp.eq.s32.totalorder %s25, 1
      %p85 = scmp.ne.s32.totalorder %s80, %s82
      %p86 = scmp.eq.s32.totalorder %s25, 0
      %p87 = por %p85, %p86
      %p88 = scmp.ne.s32.totalorder %s80, %s82
      %p89 = scmp.eq.s32.totalorder %s30, 1
      %p90 = por %p88, %p89
      %p91 = scmp.ne.s32.totalorder %s82, %s83
      %p92 = scmp.eq.s32.totalorder %s30, 0
      %p93 = por %p91, %p92
      %p94 = scmp.ne.s32.totalorder %s82, %s83
      %p95 = scmp.eq.s32.totalorder %s31, 1
      %p96 = por %p94, %p95
      %p98 = scmp.ne.s32.totalorder %s83, %s97
      %p99 = scmp.eq.s32.totalorder %s31, 0
      %p100 = por %p98, %p99
      %s102 = sadd.s32 %s101, 1
      %p105 = scmp.eq.s32.totalorder %s25, 1
      %p106 = scmp.ne.s32.totalorder %s101, %s103
      %p107 = scmp.eq.s32.totalorder %s25, 0
      %p108 = por %p106, %p107
      %p109 = scmp.ne.s32.totalorder %s101, %s103
      %p110 = scmp.eq.s32.totalorder %s30, 1
      %p111 = por %p109, %p110
      %p112 = scmp.ne.s32.totalorder %s103, %s104
      %p113 = scmp.eq.s32.totalorder %s30, 0
      %p114 = por %p112, %p113
      %p115 = scmp.ne.s32.totalorder %s103, %s104
      %p116 = scmp.eq.s32.totalorder %s31, 1
      %p117 = por %p115, %p116
      %p119 = scmp.ne.s32.totalorder %s104, %s118
      %p120 = scmp.eq.s32.totalorder %s31, 0
      %p121 = por %p119, %p120
      %s123 = sadd.s32 %s122, 1
      %p126 = scmp.eq.s32.totalorder %s25, 1
      %p127 = scmp.ne.s32.totalorder %s122, %s124
      %p128 = scmp.eq.s32.totalorder %s25, 0
      %p129 = por %p127, %p128
      %p130 = scmp.ne.s32.totalorder %s122, %s124
      %p131 = scmp.eq.s32.totalorder %s30, 1
      %p132 = por %p130, %p131
      %p133 = scmp.ne.s32.totalorder %s124, %s125
      %p134 = scmp.eq.s32.totalorder %s30, 0
      %p135 = por %p133, %p134
      %p136 = scmp.ne.s32.totalorder %s124, %s125
      %p137 = scmp.eq.s32.totalorder %s31, 1
      %p138 = por %p136, %p137
      %p140 = scmp.ne.s32.totalorder %s125, %s139
      %p141 = scmp.eq.s32.totalorder %s31, 0
      %p142 = por %p140, %p141
      %s144 = sadd.s32 %s143, 1
      %p147 = scmp.eq.s32.totalorder %s25, 1
      %p148 = scmp.ne.s32.totalorder %s143, %s145
      %p149 = scmp.eq.s32.totalorder %s25, 0
      %p150 = por %p148, %p149
      %p151 = scmp.ne.s32.totalorder %s143, %s145
      %p152 = scmp.eq.s32.totalorder %s30, 1
      %p153 = por %p151, %p152
      %p154 = scmp.ne.s32.totalorder %s145, %s146
      %p155 = scmp.eq.s32.totalorder %s30, 0
      %p156 = por %p154, %p155
      %p157 = scmp.ne.s32.totalorder %s145, %s146
      %p158 = scmp.eq.s32.totalorder %s31, 1
      %p159 = por %p157, %p158
      %p161 = scmp.ne.s32.totalorder %s146, %s160
      %p162 = scmp.eq.s32.totalorder %s31, 0
      %p163 = por %p161, %p162
      %s165 = sadd.s32 %s164, 1
      %p168 = scmp.eq.s32.totalorder %s25, 1
      %p169 = scmp.ne.s32.totalorder %s164, %s166
      %p170 = scmp.eq.s32.totalorder %s25, 0
      %p171 = por %p169, %p170
      %p172 = scmp.ne.s32.totalorder %s164, %s166
      %p173 = scmp.eq.s32.totalorder %s30, 1
      %p174 = por %p172, %p173
      %p175 = scmp.ne.s32.totalorder %s166, %s167
      %p176 = scmp.eq.s32.totalorder %s30, 0
      %p177 = por %p175, %p176
      %p178 = scmp.ne.s32.totalorder %s166, %s167
      %p179 = scmp.eq.s32.totalorder %s31, 1
      %p180 = por %p178, %p179
      %p182 = scmp.ne.s32.totalorder %s167, %s181
      %p183 = scmp.eq.s32.totalorder %s31, 0
      %p184 = por %p182, %p183
      %s186 = sadd.s32 %s185, 1
      %p189 = scmp.eq.s32.totalorder %s25, 1
      %p190 = scmp.ne.s32.totalorder %s185, %s187
      %p191 = scmp.eq.s32.totalorder %s25, 0
      %p192 = por %p190, %p191
      %p193 = scmp.ne.s32.totalorder %s185, %s187
      %p194 = scmp.eq.s32.totalorder %s30, 1
      %p195 = por %p193, %p194
      %p196 = scmp.ne.s32.totalorder %s187, %s188
      %p197 = scmp.eq.s32.totalorder %s30, 0
      %p198 = por %p196, %p197
      %p199 = scmp.ne.s32.totalorder %s187, %s188
      %p200 = scmp.eq.s32.totalorder %s31, 1
      %p201 = por %p199, %p200
      %p203 = scmp.ne.s32.totalorder %s188, %s202
      %p204 = scmp.eq.s32.totalorder %s31, 0
      %p205 = por %p203, %p204
      %s207 = sadd.s32 %s206, 1
      %p210 = scmp.eq.s32.totalorder %s25, 1
      %p211 = scmp.ne.s32.totalorder %s206, %s208
      %p212 = scmp.eq.s32.totalorder %s25, 0
      %p213 = por %p211, %p212
      %p214 = scmp.ne.s32.totalorder %s206, %s208
      %p215 = scmp.eq.s32.totalorder %s30, 1
      %p216 = por %p214, %p215
      %p217 = scmp.ne.s32.totalorder %s208, %s209
      %p218 = scmp.eq.s32.totalorder %s30, 0
      %p219 = por %p217, %p218
      %p220 = scmp.ne.s32.totalorder %s208, %s209
      %p221 = scmp.eq.s32.totalorder %s31, 1
      %p222 = por %p220, %p221
      %p224 = scmp.ne.s32.totalorder %s209, %s223
      %p225 = scmp.eq.s32.totalorder %s31, 0
      %p226 = por %p224, %p225
      %s228 = sadd.s32 %s227, 1
      %p231 = scmp.eq.s32.totalorder %s25, 1
      %p232 = scmp.ne.s32.totalorder %s227, %s229
      %p233 = scmp.eq.s32.totalorder %s25, 0
      %p234 = por %p232, %p233
      %p235 = scmp.ne.s32.totalorder %s227, %s229
      %p236 = scmp.eq.s32.totalorder %s30, 1
      %p237 = por %p235, %p236
      %p238 = scmp.ne.s32.totalorder %s229, %s230
      %p239 = scmp.eq.s32.totalorder %s30, 0
      %p240 = por %p238, %p239
      %p241 = scmp.ne.s32.totalorder %s229, %s230
      %p242 = scmp.eq.s32.totalorder %s31, 1
      %p243 = por %p241, %p242
      %p245 = scmp.ne.s32.totalorder %s230, %s244
      %p246 = scmp.eq.s32.totalorder %s31, 0
      %p247 = por %p245, %p246
      %s249 = sadd.s32 %s248, 1
      %p252 = scmp.eq.s32.totalorder %s25, 1
      %p253 = scmp.ne.s32.totalorder %s248, %s250
      %p254 = scmp.eq.s32.totalorder %s25, 0
      %p255 = por %p253, %p254
      %p256 = scmp.ne.s32.totalorder %s248, %s250
      %p257 = scmp.eq.s32.totalorder %s30, 1
      %p258 = por %p256, %p257
      %p259 = scmp.ne.s32.totalorder %s250, %s251
      %p260 = scmp.eq.s32.totalorder %s30, 0
      %p261 = por %p259, %p260
      %p262 = scmp.ne.s32.totalorder %s250, %s251
      %p263 = scmp.eq.s32.totalorder %s31, 1
      %p264 = por %p262, %p263
      %p266 = scmp.ne.s32.totalorder %s251, %s265
      %p267 = scmp.eq.s32.totalorder %s31, 0
      %p268 = por %p266, %p267
      %s269 = ssub.s32 %s25, %s32
      %p270 = scmp.eq.s32.totalorder %s269, 0
      %s272 = sadd.s32 %s271, 1
      %s273 = scalar_select %p270, %s271, %s272
      %p276 = pneg %p270
      %p277 = scmp.eq.s32.totalorder %s25, 1
      %p278 = por %p276, %p277
      %p279 = scmp.ne.s32.totalorder %s271, %s274
      %p280 = scmp.eq.s32.totalorder %s25, 0
      %p281 = por %p279, %p280
      %p282 = scmp.ne.s32.totalorder %s271, %s274
      %p283 = scmp.eq.s32.totalorder %s30, 1
      %p284 = por %p282, %p283
      %p285 = scmp.ne.s32.totalorder %s274, %s275
      %p286 = scmp.eq.s32.totalorder %s30, 0
      %p287 = por %p285, %p286
      %p288 = scmp.ne.s32.totalorder %s274, %s275
      %p289 = scmp.eq.s32.totalorder %s31, 1
      %p290 = por %p288, %p289
      %p292 = scmp.ne.s32.totalorder %s275, %s291
      %p293 = scmp.eq.s32.totalorder %s31, 0
      %p294 = por %p292, %p293
      %s295 = ssub.s32 %s25, %s32
      %p296 = scmp.eq.s32.totalorder %s295, 0
      %s298 = sadd.s32 %s297, 1
      %s299 = scalar_select %p296, %s297, %s298
      %p302 = pneg %p296
      %p303 = scmp.eq.s32.totalorder %s25, 1
      %p304 = por %p302, %p303
      %p305 = scmp.ne.s32.totalorder %s297, %s300
      %p306 = scmp.eq.s32.totalorder %s25, 0
      %p307 = por %p305, %p306
      %p308 = scmp.ne.s32.totalorder %s297, %s300
      %p309 = scmp.eq.s32.totalorder %s30, 1
      %p310 = por %p308, %p309
      %p311 = scmp.ne.s32.totalorder %s300, %s301
      %p312 = scmp.eq.s32.totalorder %s30, 0
      %p313 = por %p311, %p312
      %p314 = scmp.ne.s32.totalorder %s300, %s301
      %p315 = scmp.eq.s32.totalorder %s31, 1
      %p316 = por %p314, %p315
      %p318 = scmp.ne.s32.totalorder %s301, %s317
      %p319 = scmp.eq.s32.totalorder %s31, 0
      %p320 = por %p318, %p319
      %p321 = scmp.le.s32.totalorder 1, %s25
      %p322 = scmp.lt.s32.totalorder %s25, 3
      %p323 = pnand %p321, %p322
      %p324 = pneg %p323
      // Predicated region
      $region9: #{tpu_custom_call.1} parent=5 // pred_check
        _
      $region10: #{tpu_custom_call.1} parent=5 // pred_check_branch
        %326 = sbr.rel (%p323) target = $region12
      $region11: #{tpu_custom_call.1} parent=5 // pred_region
        %s327 = ssub.s32 %s25, 1
        // Predicated region
        $region13: #{tpu_custom_call.1} parent=11 // pred_check
          %p328 = pneg %p72
        $region14: #{tpu_custom_call.1} parent=11 // pred_check_branch
          %330 = sbr.rel (%p328) target = $region16
        $region15: #{tpu_custom_call.1} parent=11 // pred_region
          _
        $region16: #{tpu_custom_call.1} parent=11 // pred_fallthru
          _
        // Predicated region
        $region17: #{tpu_custom_call.1} parent=11 // pred_check
          %p331 = pneg %p93
        $region18: #{tpu_custom_call.1} parent=11 // pred_check_branch
          %333 = sbr.rel (%p331) target = $region20
        $region19: #{tpu_custom_call.1} parent=11 // pred_region
          _
        $region20: #{tpu_custom_call.1} parent=11 // pred_fallthru
          _
        // Predicated region
        $region21: #{tpu_custom_call.1} parent=11 // pred_check
          %p334 = pneg %p114
        $region22: #{tpu_custom_call.1} parent=11 // pred_check_branch
          %336 = sbr.rel (%p334) target = $region24
        $region23: #{tpu_custom_call.1} parent=11 // pred_region
          _
        $region24: #{tpu_custom_call.1} parent=11 // pred_fallthru
          _
        // Predicated region
        $region25: #{tpu_custom_call.1} parent=11 // pred_check
          %p337 = pneg %p135
        $region26: #{tpu_custom_call.1} parent=11 // pred_check_branch
          %339 = sbr.rel (%p337) target = $region28
        $region27: #{tpu_custom_call.1} parent=11 // pred_region
          _
        $region28: #{tpu_custom_call.1} parent=11 // pred_fallthru
          _
        // Predicated region
        $region29: #{tpu_custom_call.1} parent=11 // pred_check
          %p340 = pneg %p156
        $region30: #{tpu_custom_call.1} parent=11 // pred_check_branch
          %342 = sbr.rel (%p340) target = $region32
        $region31: #{tpu_custom_call.1} parent=11 // pred_region
          _
        $region32: #{tpu_custom_call.1} parent=11 // pred_fallthru
          _
        // Predicated region
        $region33: #{tpu_custom_call.1} parent=11 // pred_check
          %p343 = pneg %p177
        $region34: #{tpu_custom_call.1} parent=11 // pred_check_branch
          %345 = sbr.rel (%p343) target = $region36
        $region35: #{tpu_custom_call.1} parent=11 // pred_region
          _
        $region36: #{tpu_custom_call.1} parent=11 // pred_fallthru
          _
        // Predicated region
        $region37: #{tpu_custom_call.1} parent=11 // pred_check
          %p346 = pneg %p198
        $region38: #{tpu_custom_call.1} parent=11 // pred_check_branch
          %348 = sbr.rel (%p346) target = $region40
        $region39: #{tpu_custom_call.1} parent=11 // pred_region
          _
        $region40: #{tpu_custom_call.1} parent=11 // pred_fallthru
          _
        // Predicated region
        $region41: #{tpu_custom_call.1} parent=11 // pred_check
          %p349 = pneg %p219
        $region42: #{tpu_custom_call.1} parent=11 // pred_check_branch
          %351 = sbr.rel (%p349) target = $region44
        $region43: #{tpu_custom_call.1} parent=11 // pred_region
          _
        $region44: #{tpu_custom_call.1} parent=11 // pred_fallthru
          _
        // Predicated region
        $region45: #{tpu_custom_call.1} parent=11 // pred_check
          %p352 = pneg %p240
        $region46: #{tpu_custom_call.1} parent=11 // pred_check_branch
          %354 = sbr.rel (%p352) target = $region48
        $region47: #{tpu_custom_call.1} parent=11 // pred_region
          _
        $region48: #{tpu_custom_call.1} parent=11 // pred_fallthru
          _
        // Predicated region
        $region49: #{tpu_custom_call.1} parent=11 // pred_check
          %p355 = pneg %p261
        $region50: #{tpu_custom_call.1} parent=11 // pred_check_branch
          %357 = sbr.rel (%p355) target = $region52
        $region51: #{tpu_custom_call.1} parent=11 // pred_region
          _
        $region52: #{tpu_custom_call.1} parent=11 // pred_fallthru
          _
      $region12: #{tpu_custom_call.1} parent=5 // pred_fallthru
        _
      %p358 = scmp.lt.s32.totalorder %s25, 2
      // Predicated region
      $region53: #{tpu_custom_call.1} parent=5 // pred_check
        %p359 = pneg %p358
      $region54: #{tpu_custom_call.1} parent=5 // pred_check_branch
        %361 = sbr.rel (%p359) target = $region56
      $region55: #{tpu_custom_call.1} parent=5 // pred_region
        // Predicated region
        $region57: #{tpu_custom_call.1} parent=55 // pred_check
          %p362 = pneg %p45
        $region58: #{tpu_custom_call.1} parent=55 // pred_check_branch
          %364 = sbr.rel (%p362) target = $region60
        $region59: #{tpu_custom_call.1} parent=55 // pred_region
          %p365 = scmp.lt.s32.totalorder %s25, 1
          %s366 = scalar_select %p365, %s25, 1
          %s367 = scalar_lea.vmem %s0, %s366
        $region60: #{tpu_custom_call.1} parent=55 // pred_fallthru
          _
      $region56: #{tpu_custom_call.1} parent=5 // pred_fallthru
        _
      %p368 = scmp.le.s32.totalorder 1, %s25
      %p369 = scmp.lt.s32.totalorder %s25, 3
      %p370 = pnand %p368, %p369
      %p371 = pneg %p370
      // Predicated region
      $region61: #{tpu_custom_call.1} parent=5 // pred_check
        _
      $region62: #{tpu_custom_call.1} parent=5 // pred_check_branch
        %373 = sbr.rel (%p370) target = $region64
      $region63: #{tpu_custom_call.1} parent=5 // pred_region
        %s374 = ssub.s32 %s25, 1
        %p375 = scmp.lt.s32.totalorder %s30, 1
        %s376 = scalar_select %p375, %s30, 1
        %s377 = scalar_lea.vmem %s0, %s376
        %p378 = pneg %p51
        %p379 = pneg %p48
        %p380 = pneg %p72
        %p381 = pneg %p69
        %p382 = pneg %p93
        %p383 = pneg %p90
        %p384 = pneg %p114
        %p385 = pneg %p111
        %p386 = pneg %p135
        %p387 = pneg %p132
        %p388 = pneg %p156
        %p389 = pneg %p153
        %p390 = pneg %p177
        %p391 = pneg %p174
        %p392 = pneg %p198
        %p393 = pneg %p195
        %p394 = pneg %p219
        %p395 = pneg %p216
        %p396 = pneg %p240
        %p397 = pneg %p237
        %p398 = pneg %p261
        %p399 = pneg %p258
        %p400 = pneg %p287
        %p401 = pneg %p284
        %s402 = sand.u32 %s274, 1
        %s403 = scalar_lea.sflag [#allocation3], %s402
        %s404 = sand.u32 %s274, 1
        %s405 = scalar_lea.vmem [#allocation2], %s404
        %p406 = pneg %p313
        %p407 = pneg %p310
        %s408 = sand.u32 %s300, 1
        %s409 = scalar_lea.sflag [#allocation5], %s408
        %s410 = sand.u32 %s300, 1
        %s411 = scalar_lea.vmem [#allocation4], %s410
        %p412 = scmp.lt.s32.totalorder %s30, 1
        %s413 = scalar_select %p412, %s30, 1
        %s414 = scalar_lea.vmem %s0, %s413
        %v416 = vld [vmem:[%s414] sm:$0x1]
        %v417 = vpack.c.bf16 %v416, %v416
        %419 = vrot.lane.b32.xlu0 %v417, 127
        %v420 = vpop.permute.xlu0 %419
        %421 = vrot.lane.b32.xlu0 %v417, 126
        %v422 = vpop.permute.xlu0 %421
        %423 = vrot.lane.b32.xlu0 %v417, 125
        %v424 = vpop.permute.xlu0 %423
        %425 = vrot.lane.b32.xlu0 %v417, 124
        %v426 = vpop.permute.xlu0 %425
        %427 = vrot.lane.b32.xlu0 %v417, 123
        %v428 = vpop.permute.xlu0 %427
        %429 = vrot.lane.b32.xlu0 %v417, 122
        %v430 = vpop.permute.xlu0 %429
        %431 = vrot.lane.b32.xlu0 %v417, 121
        %v432 = vpop.permute.xlu0 %431
        %433 = vrot.lane.b32.xlu0 %v417, 120
        %v434 = vpop.permute.xlu0 %433
        %435 = vrot.lane.b32.xlu0 %v417, 119
        %v436 = vpop.permute.xlu0 %435
        %437 = vrot.lane.b32.xlu0 %v417, 118
        %v438 = vpop.permute.xlu0 %437
        %439 = vrot.lane.b32.xlu0 %v417, 117
        %v440 = vpop.permute.xlu0 %439
        %441 = vrot.lane.b32.xlu0 %v417, 116
        %v442 = vpop.permute.xlu0 %441
        %443 = vrot.lane.b32.xlu0 %v417, 115
        %v444 = vpop.permute.xlu0 %443
        %445 = vrot.lane.b32.xlu0 %v417, 114
        %v446 = vpop.permute.xlu0 %445
        %447 = vrot.lane.b32.xlu0 %v417, 113
        %v448 = vpop.permute.xlu0 %447
        %449 = vrot.lane.b32.xlu0 %v417, 112
        %v450 = vpop.permute.xlu0 %449
        %451 = vrot.lane.b32.xlu0 %v420, 112
        %v452 = vpop.permute.xlu0 %451
        %453 = vrot.lane.b32.xlu0 %v422, 112
        %v454 = vpop.permute.xlu0 %453
        %455 = vrot.lane.b32.xlu0 %v424, 112
        %v456 = vpop.permute.xlu0 %455
        %v457 = vunpack.c.l.b16 %v417
        %v458 = vunpack.c.l.b16 %v420
        %v459 = vunpack.c.l.b16 %v422
        %v460 = vunpack.c.l.b16 %v424
        %v461 = vunpack.c.l.b16 %v426
        %v462 = vunpack.c.l.b16 %v428
        %v463 = vunpack.c.l.b16 %v430
        %v464 = vunpack.c.l.b16 %v432
        %v465 = vunpack.c.l.b16 %v434
        %v466 = vunpack.c.l.b16 %v436
        %v467 = vunpack.c.l.b16 %v438
        %v468 = vunpack.c.l.b16 %v440
        %v469 = vunpack.c.l.b16 %v442
        %v470 = vunpack.c.l.b16 %v444
        %v471 = vunpack.c.l.b16 %v446
        %v472 = vunpack.c.l.b16 %v448
        %v473 = vunpack.c.l.b16 %v450
        %v474 = vunpack.c.l.b16 %v452
        %v475 = vunpack.c.l.b16 %v454
        %v476 = vunpack.c.l.b16 %v456
        %v477 = vpack.c.b16 %v457, %v457
        %v478 = vpack.c.b16 %v458, %v458
        %v479 = vpack.c.b16 %v459, %v459
        %v480 = vpack.c.b16 %v460, %v460
        %v481 = vpack.c.b16 %v461, %v461
        %v482 = vpack.c.b16 %v462, %v462
        %v483 = vpack.c.b16 %v463, %v463
        %v484 = vpack.c.b16 %v464, %v464
        %v485 = vpack.c.b16 %v465, %v465
        %v486 = vpack.c.b16 %v466, %v466
        %v487 = vpack.c.b16 %v467, %v467
        %v488 = vpack.c.b16 %v468, %v468
        %v489 = vpack.c.b16 %v469, %v469
        %v490 = vpack.c.b16 %v470, %v470
        %v491 = vpack.c.b16 %v471, %v471
        %v492 = vpack.c.b16 %v472, %v472
        %v493 = vpack.c.b16 %v473, %v473
        %v494 = vpack.c.b16 %v474, %v474
        %v495 = vpack.c.b16 %v475, %v475
        %v496 = vpack.c.b16 %v476, %v476
        %v497 = vunpack.c.l.b16 %v477
        %v498 = vunpack.c.l.b16 %v478
        %v499 = vunpack.c.l.b16 %v479
        %v500 = vunpack.c.l.b16 %v480
        %v501 = vunpack.c.l.b16 %v481
        %v502 = vunpack.c.l.b16 %v482
        %v503 = vunpack.c.l.b16 %v483
        %v504 = vunpack.c.l.b16 %v484
        %v505 = vunpack.c.l.b16 %v485
        %v506 = vunpack.c.l.b16 %v486
        %v507 = vunpack.c.l.b16 %v487
        %v508 = vunpack.c.l.b16 %v488
        %v509 = vunpack.c.l.b16 %v489
        %v510 = vunpack.c.l.b16 %v490
        %v511 = vunpack.c.l.b16 %v491
        %v512 = vunpack.c.l.b16 %v492
        %v513 = vunpack.c.l.b16 %v493
        %v514 = vunpack.c.l.b16 %v494
        %v515 = vunpack.c.l.b16 %v495
        %v516 = vunpack.c.l.b16 %v496
        %v517 = vrot.slane %v498, 7
        %vm518 = vcmask 1041409
        %v519 = vsel %vm518, %v517, %v497
        %v520 = vrot.slane %v499, 6
        %vm521 = vcmask 1042434
        %v522 = vsel %vm521, %v520, %v519
        %v523 = vrot.slane %v500, 5
        %vm524 = vcmask 1043459
        %v525 = vsel %vm524, %v523, %v522
        %v526 = vrot.slane %v501, 4
        %vm527 = vcmask 1044484
        %v528 = vsel %vm527, %v526, %v525
        %v529 = vrot.slane %v502, 3
        %vm530 = vcmask 1045509
        %v531 = vsel %vm530, %v529, %v528
        %v532 = vrot.slane %v503, 2
        %vm533 = vcmask 1046534
        %v534 = vsel %vm533, %v532, %v531
        %v535 = vrot.slane %v504, 1
        %vm536 = vcmask 1047559
        %v537 = vsel %vm536, %v535, %v534
        %v538 = vrot.slane %v506, 7
        %v539 = vsel %vm518, %v538, %v505
        %v540 = vrot.slane %v507, 6
        %v541 = vsel %vm521, %v540, %v539
        %v542 = vrot.slane %v508, 5
        %v543 = vsel %vm524, %v542, %v541
        %v544 = vrot.slane %v509, 4
        %v545 = vsel %vm527, %v544, %v543
        %v546 = vrot.slane %v510, 3
        %v547 = vsel %vm530, %v546, %v545
        %v548 = vrot.slane %v511, 2
        %v549 = vsel %vm533, %v548, %v547
        %v550 = vrot.slane %v512, 1
        %v551 = vsel %vm536, %v550, %v549
        %v552 = vrot.slane %v514, 7
        %v553 = vsel %vm518, %v552, %v513
        %v554 = vrot.slane %v515, 6
        %v555 = vsel %vm521, %v554, %v553
        %v556 = vrot.slane %v516, 5
        %v557 = vsel %vm524, %v556, %v555
        %v558 = vpack.c.b16 %v551, %v537
        %v559 = vpack.c.b16 %v557, %v557
        %562 = vxpose.xlu0.c.b16.start [1/8] %v558, 128
        %563 = vxpose.xlu0.c.b16.cont [2/8] %v559, 128
        %564 = vxpose.xlu0.c.b16.cont [3/8] 0, 128
        %565 = vxpose.xlu0.c.b16.cont [4/8] 0, 128
        %566 = vxpose.xlu0.c.b16.cont [5/8] 0, 128
        %567 = vxpose.xlu0.c.b16.cont [6/8] 0, 128
        %568 = vxpose.xlu0.c.b16.cont [7/8] 0, 128
        %569 = vxpose.xlu0.c.b16.end [8/8] 0, 128
        %v570 = vpop.trf.xlu0
        %v571 = vpop.trf.xlu0
        %v572 = vpop.trf.xlu0
        %v573 = vpop.trf.xlu0
        %v574 = vpop.trf.xlu0
        %v575 = vpop.trf.xlu0
        %v576 = vpop.trf.xlu0
        %v577 = vpop.trf.xlu0
        %v578 = vld [vmem:[%s1] sm:$0xf]
        %v579 = vld [vmem:[%s1 + $0x4] sm:$0xf]
        %v580 = vld [vmem:[%s1 + $0x8] sm:$0x3]
        %v581 = vld [vmem:[%s2] sm:$0x1]
        %v583 = vperm.slane %v581, 0
        %v588 = vunpack.c.l.b16 %v578
        %v589 = vunpack.c.l.b16 %v579
        %v590 = vunpack.c.l.b16 %v580
        %v591 = vpack.c.b16 %v589, %v588
        %v592 = vpack.c.b16 %v590, %v590
        %vm594 = vcmask 162816
        %v596 = vsel %vm594, %v570, 0
        %v599 = vsel %vm594, %v571, 0
        %v602 = vsel %vm594, %v572, 0
        %v605 = vsel %vm594, %v573, 0
        %v608 = vsel %vm594, %v574, 0
        %v611 = vsel %vm594, %v575, 0
        %vm613 = vcmask 1041408
        %v615 = vsel %vm613, %v592, 0
        %617 = vmatpush.bf16.msra.mxu0 0
        %618 = vmatpush.bf16.msra.mxu0 0
        %619 = vmatpush.bf16.msra.mxu0 0
        %620 = vmatpush.bf16.msra.mxu0 0
        %621 = vmatpush.bf16.msra.mxu0 0
        %622 = vmatpush.bf16.msra.mxu0 0
        %623 = vmatpush.bf16.msra.mxu0 %v615
        %624 = vmatpush.bf16.msra.mxu0 %v591
        %625 = vmatmul.bf16.gmra.mxu0 %v596
        %v626 = vpop.f32.mrf.mxu0
        %v627 = vadd.f32 %v583, %v626
        %v628 = vpop.f32.mrf.mxu0
        %v629 = vadd.f32 %v583, %v628
        %630 = vmatmul.bf16.gmra.mxu0 %v599
        %v631 = vpop.f32.mrf.mxu0
        %v632 = vadd.f32 %v583, %v631
        %v633 = vpop.f32.mrf.mxu0
        %v634 = vadd.f32 %v583, %v633
        %635 = vmatmul.bf16.gmra.mxu0 %v602
        %v636 = vpop.f32.mrf.mxu0
        %v637 = vadd.f32 %v583, %v636
        %v638 = vpop.f32.mrf.mxu0
        %v639 = vadd.f32 %v583, %v638
        %640 = vmatmul.bf16.gmra.mxu0 %v605
        %v641 = vpop.f32.mrf.mxu0
        %v642 = vadd.f32 %v583, %v641
        %v643 = vpop.f32.mrf.mxu0
        %v644 = vadd.f32 %v583, %v643
        %645 = vmatmul.bf16.gmra.mxu0 %v608
        %v646 = vpop.f32.mrf.mxu0
        %v647 = vadd.f32 %v583, %v646
        %v648 = vpop.f32.mrf.mxu0
        %v649 = vadd.f32 %v583, %v648
        %650 = vmatmul.bf16.gmra.mxu0 %v611
        %v651 = vpop.f32.mrf.mxu0
        %v652 = vadd.f32 %v583, %v651
        %v653 = vpop.f32.mrf.mxu0
        %v654 = vadd.f32 %v583, %v653
        %655 = vdwg.mxu0
        %v656 = vmax.f32 %v627, 0.0
        %v657 = vmax.f32 %v629, 0.0
        %v658 = vmax.f32 %v632, 0.0
        %v659 = vmax.f32 %v634, 0.0
        %v660 = vmax.f32 %v637, 0.0
        %v661 = vmax.f32 %v639, 0.0
        %v662 = vmax.f32 %v642, 0.0
        %v663 = vmax.f32 %v644, 0.0
        %v664 = vmax.f32 %v647, 0.0
        %v665 = vmax.f32 %v649, 0.0
        %v666 = vmax.f32 %v652, 0.0
        %v667 = vmax.f32 %v654, 0.0
        %v668 = vpack.c.bf16 %v656, %v656
        %v669 = vpack.c.bf16 %v657, %v657
        %v670 = vpack.c.bf16 %v658, %v658
        %v671 = vpack.c.bf16 %v659, %v659
        %v672 = vpack.c.bf16 %v660, %v660
        %v673 = vpack.c.bf16 %v661, %v661
        %v674 = vpack.c.bf16 %v662, %v662
        %v675 = vpack.c.bf16 %v663, %v663
        %v676 = vpack.c.bf16 %v664, %v664
        %v677 = vpack.c.bf16 %v665, %v665
        %v678 = vpack.c.bf16 %v666, %v666
        %v679 = vpack.c.bf16 %v667, %v667
        %v690 = vunpack.c.l.b16 %v668
        %v691 = vunpack.c.l.b16 %v669
        %v692 = vunpack.c.l.b16 %v670
        %v693 = vunpack.c.l.b16 %v671
        %v694 = vunpack.c.l.b16 %v672
        %v695 = vunpack.c.l.b16 %v673
        %v696 = vunpack.c.l.b16 %v674
        %v697 = vunpack.c.l.b16 %v675
        %v698 = vunpack.c.l.b16 %v676
        %v699 = vunpack.c.l.b16 %v677
        %v700 = vpack.c.b16 %v691, %v690
        %v701 = vpack.c.b16 %v693, %v692
        %v702 = vpack.c.b16 %v695, %v694
        %v703 = vpack.c.b16 %v697, %v696
        %v704 = vpack.c.b16 %v699, %v698
        %v711 = vunpack.c.l.b16 %v678
        %v712 = vpack.c.b16 %v711, %v711
        %vm713 = vsmask.f32 7424
        %v715 = vshrl.u32 %v700, 16
        %v717 = vshll.u32 %v700, 16
        %v719 = vrot.slane %v717, 1
        %v720 = vor.u32 %v715, %v719
        %v722 = vshll.u32 %v701, 16
        %v724 = vrot.slane %v722, 1
        %v725 = vsel %vm713, %v720, %v724
        %v726 = vshrl.u32 %v701, 16
        %v728 = vor.u32 %v726, %v724
        %v730 = vshll.u32 %v702, 16
        %v732 = vrot.slane %v730, 1
        %v733 = vsel %vm713, %v728, %v732
        %v734 = vshrl.u32 %v702, 16
        %v736 = vor.u32 %v734, %v732
        %v738 = vshll.u32 %v703, 16
        %v740 = vrot.slane %v738, 1
        %v741 = vsel %vm713, %v736, %v740
        %v742 = vshrl.u32 %v703, 16
        %v744 = vor.u32 %v742, %v740
        %v746 = vshll.u32 %v704, 16
        %v748 = vrot.slane %v746, 1
        %v749 = vsel %vm713, %v744, %v748
        %v750 = vshrl.u32 %v704, 16
        %v752 = vor.u32 %v750, %v748
        %v754 = vshll.u32 %v712, 16
        %v756 = vrot.slane %v754, 1
        %v757 = vsel %vm713, %v752, %v756
        %vm763 = vcmask 1046528
        %v764 = vrot.slane %v700, 1
        %v765 = vrot.slane %v701, 1
        %v766 = vsel %vm763, %v764, %v765
        %v767 = vrot.slane %v702, 1
        %v768 = vsel %vm763, %v765, %v767
        %v769 = vrot.slane %v703, 1
        %v770 = vsel %vm763, %v767, %v769
        %v771 = vrot.slane %v704, 1
        %v772 = vsel %vm763, %v769, %v771
        %v773 = vrot.slane %v712, 1
        %v774 = vsel %vm763, %v771, %v773
        %vm780 = vsmask.f32 6400
        %v781 = vrot.slane %v715, 1
        %v782 = vrot.slane %v717, 2
        %v783 = vor.u32 %v781, %v782
        %v784 = vrot.slane %v726, 1
        %v785 = vrot.slane %v722, 2
        %v786 = vor.u32 %v784, %v785
        %v787 = vsel %vm780, %v783, %v786
        %v788 = vrot.slane %v734, 1
        %v789 = vrot.slane %v730, 2
        %v790 = vor.u32 %v788, %v789
        %v791 = vsel %vm780, %v786, %v790
        %v792 = vrot.slane %v742, 1
        %v793 = vrot.slane %v738, 2
        %v794 = vor.u32 %v792, %v793
        %v795 = vsel %vm780, %v790, %v794
        %v796 = vrot.slane %v750, 1
        %v797 = vrot.slane %v746, 2
        %v798 = vor.u32 %v796, %v797
        %v799 = vsel %vm780, %v794, %v798
        %v800 = vshrl.u32 %v712, 16
        %v802 = vrot.slane %v800, 1
        %v803 = vrot.slane %v754, 2
        %v804 = vor.u32 %v802, %v803
        %v805 = vsel %vm780, %v798, %v804
        %vm811 = vcmask 1045504
        %v812 = vrot.slane %v700, 2
        %v813 = vrot.slane %v701, 2
        %v814 = vsel %vm811, %v812, %v813
        %v815 = vrot.slane %v702, 2
        %v816 = vsel %vm811, %v813, %v815
        %v817 = vrot.slane %v703, 2
        %v818 = vsel %vm811, %v815, %v817
        %v819 = vrot.slane %v704, 2
        %v820 = vsel %vm811, %v817, %v819
        %v821 = vrot.slane %v712, 2
        %v822 = vsel %vm811, %v819, %v821
        %vm828 = vsmask.f32 5376
        %v829 = vrot.slane %v715, 2
        %v830 = vrot.slane %v717, 3
        %v831 = vor.u32 %v829, %v830
        %v832 = vrot.slane %v726, 2
        %v833 = vrot.slane %v722, 3
        %v834 = vor.u32 %v832, %v833
        %v835 = vsel %vm828, %v831, %v834
        %v836 = vrot.slane %v734, 2
        %v837 = vrot.slane %v730, 3
        %v838 = vor.u32 %v836, %v837
        %v839 = vsel %vm828, %v834, %v838
        %v840 = vrot.slane %v742, 2
        %v841 = vrot.slane %v738, 3
        %v842 = vor.u32 %v840, %v841
        %v843 = vsel %vm828, %v838, %v842
        %v844 = vrot.slane %v750, 2
        %v845 = vrot.slane %v746, 3
        %v846 = vor.u32 %v844, %v845
        %v847 = vsel %vm828, %v842, %v846
        %v848 = vrot.slane %v800, 2
        %v849 = vrot.slane %v754, 3
        %v850 = vor.u32 %v848, %v849
        %v851 = vsel %vm828, %v846, %v850
        %vm857 = vcmask 1044480
        %v858 = vrot.slane %v700, 3
        %v859 = vrot.slane %v701, 3
        %v860 = vsel %vm857, %v858, %v859
        %v861 = vrot.slane %v702, 3
        %v862 = vsel %vm857, %v859, %v861
        %v863 = vrot.slane %v703, 3
        %v864 = vsel %vm857, %v861, %v863
        %v865 = vrot.slane %v704, 3
        %v866 = vsel %vm857, %v863, %v865
        %v867 = vrot.slane %v712, 3
        %v868 = vsel %vm857, %v865, %v867
        %vm874 = vsmask.f32 4352
        %v875 = vrot.slane %v715, 3
        %v876 = vrot.slane %v717, 4
        %v877 = vor.u32 %v875, %v876
        %v878 = vrot.slane %v726, 3
        %v879 = vrot.slane %v722, 4
        %v880 = vor.u32 %v878, %v879
        %v881 = vsel %vm874, %v877, %v880
        %v882 = vrot.slane %v734, 3
        %v883 = vrot.slane %v730, 4
        %v884 = vor.u32 %v882, %v883
        %v885 = vsel %vm874, %v880, %v884
        %v886 = vrot.slane %v742, 3
        %v887 = vrot.slane %v738, 4
        %v888 = vor.u32 %v886, %v887
        %v889 = vsel %vm874, %v884, %v888
        %v890 = vrot.slane %v750, 3
        %v891 = vrot.slane %v746, 4
        %v892 = vor.u32 %v890, %v891
        %v893 = vsel %vm874, %v888, %v892
        %v894 = vrot.slane %v800, 3
        %v895 = vrot.slane %v754, 4
        %v896 = vor.u32 %v894, %v895
        %v897 = vsel %vm874, %v892, %v896
        %v903 = vpack.c.b16 %v692, %v691
        %v904 = vpack.c.b16 %v694, %v693
        %v905 = vpack.c.b16 %v696, %v695
        %v906 = vpack.c.b16 %v698, %v697
        %v907 = vpack.c.b16 %v711, %v699
        %v914 = vunpack.c.l.b16 %v679
        %v915 = vpack.c.b16 %v914, %v914
        %v917 = vshrl.u32 %v903, 16
        %v919 = vshll.u32 %v903, 16
        %v921 = vrot.slane %v919, 1
        %v922 = vor.u32 %v917, %v921
        %v924 = vshll.u32 %v904, 16
        %v926 = vrot.slane %v924, 1
        %v927 = vsel %vm713, %v922, %v926
        %v928 = vshrl.u32 %v904, 16
        %v930 = vor.u32 %v928, %v926
        %v932 = vshll.u32 %v905, 16
        %v934 = vrot.slane %v932, 1
        %v935 = vsel %vm713, %v930, %v934
        %v936 = vshrl.u32 %v905, 16
        %v938 = vor.u32 %v936, %v934
        %v940 = vshll.u32 %v906, 16
        %v942 = vrot.slane %v940, 1
        %v943 = vsel %vm713, %v938, %v942
        %v944 = vshrl.u32 %v906, 16
        %v946 = vor.u32 %v944, %v942
        %v948 = vshll.u32 %v907, 16
        %v950 = vrot.slane %v948, 1
        %v951 = vsel %vm713, %v946, %v950
        %v952 = vshrl.u32 %v907, 16
        %v954 = vor.u32 %v952, %v950
        %v956 = vshll.u32 %v915, 16
        %v958 = vrot.slane %v956, 1
        %v959 = vsel %vm713, %v954, %v958
        %v965 = vld [vmem:[%s3] sm:$0xf]
        %v966 = vld [vmem:[%s3 + $0x4] sm:$0xf]
        %v967 = vld [vmem:[%s3 + $0x8] sm:$0xf]
        %v968 = vld [vmem:[%s3 + $0xc] sm:$0xf]
        %v969 = vld [vmem:[%s3 + $0x10] sm:$0xf]
        %v970 = vld [vmem:[%s3 + $0x14] sm:$0xf]
        %v971 = vld [vmem:[%s3 + $0x18] sm:$0xf]
        %v972 = vld [vmem:[%s3 + $0x1c] sm:$0xf]
        %v973 = vld [vmem:[%s3 + $0x20] sm:$0xf]
        %v974 = vld [vmem:[%s3 + $0x24] sm:$0xf]
        %v975 = vld [vmem:[%s3 + $0x28] sm:$0xf]
        %v976 = vld [vmem:[%s3 + $0x2c] sm:$0xf]
        %v977 = vld [vmem:[%s3 + $0x30] sm:$0xf]
        %v978 = vld [vmem:[%s3 + $0x34] sm:$0xf]
        %v979 = vld [vmem:[%s3 + $0x38] sm:$0xf]
        %v980 = vld [vmem:[%s3 + $0x3c] sm:$0xf]
        %v981 = vld [vmem:[%s3 + $0x40] sm:$0xf]
        %v982 = vld [vmem:[%s3 + $0x44] sm:$0xf]
        %v983 = vld [vmem:[%s3 + $0x48] sm:$0xf]
        %v984 = vld [vmem:[%s3 + $0x4c] sm:$0xf]
        %v985 = vld [vmem:[%s3 + $0x50] sm:$0xf]
        %v986 = vld [vmem:[%s3 + $0x54] sm:$0xf]
        %v987 = vld [vmem:[%s3 + $0x58] sm:$0xf]
        %v988 = vld [vmem:[%s3 + $0x5c] sm:$0xf]
        %v989 = vld [vmem:[%s3 + $0x60] sm:$0xf]
        %v990 = vld [vmem:[%s3 + $0x64] sm:$0xf]
        %v991 = vld [vmem:[%s3 + $0x68] sm:$0xf]
        %v992 = vld [vmem:[%s3 + $0x6c] sm:$0xf]
        %v993 = vld [vmem:[%s3 + $0x70] sm:$0xf]
        %v994 = vld [vmem:[%s3 + $0x74] sm:$0xf]
        %v995 = vld [vmem:[%s3 + $0x78] sm:$0xf]
        %v996 = vld [vmem:[%s3 + $0x7c] sm:$0xf]
        %v997 = vld [vmem:[%s3 + $0x80] sm:$0xf]
        %v998 = vld [vmem:[%s3 + $0x84] sm:$0xf]
        %v999 = vld [vmem:[%s3 + $0x88] sm:$0xf]
        %v1000 = vld [vmem:[%s3 + $0x8c] sm:$0xf]
        %v1001 = vld [vmem:[%s3 + $0x90] sm:$0xf]
        %v1002 = vld [vmem:[%s3 + $0x94] sm:$0xf]
        %v1003 = vld [vmem:[%s3 + $0x98] sm:$0xf]
        %v1004 = vld [vmem:[%s3 + $0x9c] sm:$0xf]
        %v1005 = vld [vmem:[%s3 + $0xa0] sm:$0xf]
        %v1006 = vld [vmem:[%s3 + $0xa4] sm:$0xf]
        %v1007 = vld [vmem:[%s3 + $0xa8] sm:$0xf]
        %v1008 = vld [vmem:[%s3 + $0xac] sm:$0xf]
        %v1009 = vld [vmem:[%s3 + $0xb0] sm:$0xf]
        %v1010 = vld [vmem:[%s3 + $0xb4] sm:$0xf]
        %v1011 = vld [vmem:[%s3 + $0xb8] sm:$0xf]
        %v1012 = vld [vmem:[%s3 + $0xbc] sm:$0xf]
        %v1013 = vld [vmem:[%s3 + $0xc0] sm:$0xf]
        %v1014 = vld [vmem:[%s3 + $0xc4] sm:$0xf]
        %v1015 = vld [vmem:[%s3 + $0xc8] sm:$0xf]
        %v1016 = vld [vmem:[%s3 + $0xcc] sm:$0xf]
        %v1017 = vld [vmem:[%s3 + $0xd0] sm:$0xf]
        %v1018 = vld [vmem:[%s3 + $0xd4] sm:$0xf]
        %v1019 = vld [vmem:[%s3 + $0xd8] sm:$0xf]
        %v1020 = vld [vmem:[%s3 + $0xdc] sm:$0xf]
        %v1021 = vld [vmem:[%s3 + $0xe0] sm:$0xf]
        %v1022 = vld [vmem:[%s3 + $0xe4] sm:$0xf]
        %v1023 = vld [vmem:[%s3 + $0xe8] sm:$0xf]
        %v1024 = vld [vmem:[%s3 + $0xec] sm:$0xf]
        %v1025 = vld [vmem:[%s3 + $0xf0] sm:$0xf]
        %v1026 = vld [vmem:[%s3 + $0xf4] sm:$0xf]
        %v1027 = vld [vmem:[%s3 + $0xf8] sm:$0xf]
        %v1028 = vld [vmem:[%s3 + $0xfc] sm:$0xf]
        %v1029 = vld [vmem:[%s3 + $0x100] sm:$0xf]
        %v1030 = vld [vmem:[%s3 + $0x104] sm:$0xf]
        %v1031 = vld [vmem:[%s3 + $0x108] sm:$0xf]
        %v1032 = vld [vmem:[%s3 + $0x10c] sm:$0xf]
        %v1033 = vld [vmem:[%s3 + $0x110] sm:$0xf]
        %v1034 = vld [vmem:[%s3 + $0x114] sm:$0xf]
        %v1035 = vld [vmem:[%s3 + $0x118] sm:$0xf]
        %v1036 = vld [vmem:[%s3 + $0x11c] sm:$0xf]
        %v1037 = vld [vmem:[%s3 + $0x120] sm:$0xf]
        %v1038 = vld [vmem:[%s3 + $0x124] sm:$0xf]
        %v1039 = vld [vmem:[%s3 + $0x128] sm:$0xf]
        %v1040 = vld [vmem:[%s3 + $0x12c] sm:$0xf]
        %v1041 = vld [vmem:[%s3 + $0x130] sm:$0xf]
        %v1042 = vld [vmem:[%s3 + $0x134] sm:$0xf]
        %v1043 = vld [vmem:[%s3 + $0x138] sm:$0xf]
        %v1044 = vld [vmem:[%s3 + $0x13c] sm:$0xf]
        %v1045 = vld [vmem:[%s3 + $0x140] sm:$0xf]
        %v1046 = vld [vmem:[%s3 + $0x144] sm:$0xf]
        %v1047 = vld [vmem:[%s3 + $0x148] sm:$0xf]
        %v1048 = vld [vmem:[%s3 + $0x14c] sm:$0xf]
        %v1049 = vld [vmem:[%s3 + $0x150] sm:$0xf]
        %v1050 = vld [vmem:[%s3 + $0x154] sm:$0xf]
        %v1051 = vld [vmem:[%s3 + $0x158] sm:$0xf]
        %v1052 = vld [vmem:[%s3 + $0x15c] sm:$0xf]
        %v1053 = vld [vmem:[%s3 + $0x160] sm:$0xf]
        %v1054 = vld [vmem:[%s3 + $0x164] sm:$0xf]
        %v1055 = vld [vmem:[%s3 + $0x168] sm:$0xf]
        %v1056 = vld [vmem:[%s3 + $0x16c] sm:$0xf]
        %v1057 = vld [vmem:[%s3 + $0x170] sm:$0xf]
        %v1058 = vld [vmem:[%s3 + $0x174] sm:$0xf]
        %v1059 = vld [vmem:[%s3 + $0x178] sm:$0xf]
        %v1060 = vld [vmem:[%s3 + $0x17c] sm:$0xf]
        %v1061 = vld [vmem:[%s3 + $0x180] sm:$0xf]
        %v1062 = vld [vmem:[%s3 + $0x184] sm:$0xf]
        %v1063 = vld [vmem:[%s3 + $0x188] sm:$0xf]
        %v1064 = vld [vmem:[%s3 + $0x18c] sm:$0xf]
        %v1065 = vld [vmem:[%s3 + $0x190] sm:$0xf]
        %v1066 = vld [vmem:[%s3 + $0x194] sm:$0xf]
        %v1067 = vld [vmem:[%s3 + $0x198] sm:$0xf]
        %v1068 = vld [vmem:[%s3 + $0x19c] sm:$0xf]
        %v1069 = vld [vmem:[%s3 + $0x1a0] sm:$0xf]
        %v1070 = vld [vmem:[%s3 + $0x1a4] sm:$0xf]
        %v1071 = vld [vmem:[%s3 + $0x1a8] sm:$0xf]
        %v1072 = vld [vmem:[%s3 + $0x1ac] sm:$0xf]
        %v1073 = vld [vmem:[%s3 + $0x1b0] sm:$0xf]
        %v1074 = vld [vmem:[%s3 + $0x1b4] sm:$0xf]
        %v1075 = vld [vmem:[%s3 + $0x1b8] sm:$0xf]
        %v1076 = vld [vmem:[%s3 + $0x1bc] sm:$0xf]
        %v1077 = vld [vmem:[%s3 + $0x1c0] sm:$0xf]
        %v1078 = vld [vmem:[%s3 + $0x1c4] sm:$0xf]
        %v1079 = vld [vmem:[%s3 + $0x1c8] sm:$0xf]
        %v1080 = vld [vmem:[%s3 + $0x1cc] sm:$0xf]
        %v1081 = vld [vmem:[%s3 + $0x1d0] sm:$0xf]
        %v1082 = vld [vmem:[%s3 + $0x1d4] sm:$0xf]
        %v1083 = vld [vmem:[%s3 + $0x1d8] sm:$0xf]
        %v1084 = vld [vmem:[%s3 + $0x1dc] sm:$0xf]
        %v1085 = vld [vmem:[%s3 + $0x1e0] sm:$0xf]
        %v1086 = vld [vmem:[%s3 + $0x1e4] sm:$0xf]
        %v1087 = vld [vmem:[%s3 + $0x1e8] sm:$0xf]
        %v1088 = vld [vmem:[%s3 + $0x1ec] sm:$0xf]
        %v1089 = vld [vmem:[%s3 + $0x1f0] sm:$0xf]
        %v1090 = vld [vmem:[%s3 + $0x1f4] sm:$0xf]
        %v1091 = vld [vmem:[%s3 + $0x1f8] sm:$0xf]
        %v1092 = vld [vmem:[%s3 + $0x1fc] sm:$0xf]
        %v1093 = vld [vmem:[%s3 + $0x200] sm:$0xf]
        %v1094 = vld [vmem:[%s3 + $0x204] sm:$0xf]
        %v1095 = vld [vmem:[%s3 + $0x208] sm:$0xf]
        %v1096 = vld [vmem:[%s3 + $0x20c] sm:$0xf]
        %v1097 = vld [vmem:[%s3 + $0x210] sm:$0xf]
        %v1098 = vld [vmem:[%s3 + $0x214] sm:$0xf]
        %v1099 = vld [vmem:[%s3 + $0x218] sm:$0xf]
        %v1100 = vld [vmem:[%s3 + $0x21c] sm:$0xf]
        %v1101 = vld [vmem:[%s3 + $0x220] sm:$0xf]
        %v1102 = vld [vmem:[%s3 + $0x224] sm:$0xf]
        %v1103 = vld [vmem:[%s3 + $0x228] sm:$0xf]
        %v1104 = vld [vmem:[%s3 + $0x22c] sm:$0xf]
        %v1105 = vld [vmem:[%s3 + $0x230] sm:$0xf]
        %v1106 = vld [vmem:[%s3 + $0x234] sm:$0xf]
        %v1107 = vld [vmem:[%s3 + $0x238] sm:$0xf]
        %v1108 = vld [vmem:[%s3 + $0x23c] sm:$0xf]
        %v1109 = vld [vmem:[%s3 + $0x240] sm:$0xf]
        %v1110 = vld [vmem:[%s3 + $0x244] sm:$0xf]
        %v1111 = vld [vmem:[%s3 + $0x248] sm:$0xf]
        %v1112 = vld [vmem:[%s3 + $0x24c] sm:$0xf]
        %v1113 = vld [vmem:[%s3 + $0x250] sm:$0xf]
        %v1114 = vld [vmem:[%s3 + $0x254] sm:$0xf]
        %v1115 = vld [vmem:[%s3 + $0x258] sm:$0xf]
        %v1116 = vld [vmem:[%s3 + $0x25c] sm:$0xf]
        %v1117 = vld [vmem:[%s3 + $0x260] sm:$0xf]
        %v1118 = vld [vmem:[%s3 + $0x264] sm:$0xf]
        %v1119 = vld [vmem:[%s3 + $0x268] sm:$0xf]
        %v1120 = vld [vmem:[%s3 + $0x26c] sm:$0xf]
        %v1121 = vld [vmem:[%s3 + $0x270] sm:$0xf]
        %v1122 = vld [vmem:[%s3 + $0x274] sm:$0xf]
        %v1123 = vld [vmem:[%s3 + $0x278] sm:$0xf]
        %v1124 = vld [vmem:[%s3 + $0x27c] sm:$0xf]
        %v1125 = vld [vmem:[%s4] sm:$0x1]
        %v1127 = vperm.slane %v1125, 0
        %v1289 = vunpack.c.l.b16 %v965
        %v1290 = vunpack.c.l.b16 %v966
        %v1291 = vunpack.c.l.b16 %v967
        %v1292 = vunpack.c.l.b16 %v968
        %v1293 = vunpack.c.l.b16 %v969
        %v1294 = vunpack.c.l.b16 %v970
        %v1295 = vunpack.c.l.b16 %v971
        %v1296 = vunpack.c.l.b16 %v972
        %v1297 = vunpack.c.l.b16 %v973
        %v1298 = vunpack.c.l.b16 %v974
        %v1299 = vunpack.c.l.b16 %v975
        %v1300 = vunpack.c.l.b16 %v976
        %v1301 = vunpack.c.l.b16 %v977
        %v1302 = vunpack.c.l.b16 %v978
        %v1303 = vunpack.c.l.b16 %v979
        %v1304 = vunpack.c.l.b16 %v980
        %v1305 = vunpack.c.l.b16 %v981
        %v1306 = vunpack.c.l.b16 %v982
        %v1307 = vunpack.c.l.b16 %v983
        %v1308 = vunpack.c.l.b16 %v984
        %v1309 = vunpack.c.l.b16 %v985
        %v1310 = vunpack.c.l.b16 %v986
        %v1311 = vunpack.c.l.b16 %v987
        %v1312 = vunpack.c.l.b16 %v988
        %v1313 = vunpack.c.l.b16 %v989
        %v1314 = vunpack.c.l.b16 %v990
        %v1315 = vunpack.c.l.b16 %v991
        %v1316 = vunpack.c.l.b16 %v992
        %v1317 = vunpack.c.l.b16 %v993
        %v1318 = vunpack.c.l.b16 %v994
        %v1319 = vunpack.c.l.b16 %v995
        %v1320 = vunpack.c.l.b16 %v996
        %v1321 = vunpack.c.l.b16 %v997
        %v1322 = vunpack.c.l.b16 %v998
        %v1323 = vunpack.c.l.b16 %v999
        %v1324 = vunpack.c.l.b16 %v1000
        %v1325 = vunpack.c.l.b16 %v1001
        %v1326 = vunpack.c.l.b16 %v1002
        %v1327 = vunpack.c.l.b16 %v1003
        %v1328 = vunpack.c.l.b16 %v1004
        %v1329 = vunpack.c.l.b16 %v1005
        %v1330 = vunpack.c.l.b16 %v1006
        %v1331 = vunpack.c.l.b16 %v1007
        %v1332 = vunpack.c.l.b16 %v1008
        %v1333 = vunpack.c.l.b16 %v1009
        %v1334 = vunpack.c.l.b16 %v1010
        %v1335 = vunpack.c.l.b16 %v1011
        %v1336 = vunpack.c.l.b16 %v1012
        %v1337 = vunpack.c.l.b16 %v1013
        %v1338 = vunpack.c.l.b16 %v1014
        %v1339 = vunpack.c.l.b16 %v1015
        %v1340 = vunpack.c.l.b16 %v1016
        %v1341 = vunpack.c.l.b16 %v1017
        %v1342 = vunpack.c.l.b16 %v1018
        %v1343 = vunpack.c.l.b16 %v1019
        %v1344 = vunpack.c.l.b16 %v1020
        %v1345 = vunpack.c.l.b16 %v1021
        %v1346 = vunpack.c.l.b16 %v1022
        %v1347 = vunpack.c.l.b16 %v1023
        %v1348 = vunpack.c.l.b16 %v1024
        %v1349 = vunpack.c.l.b16 %v1025
        %v1350 = vunpack.c.l.b16 %v1026
        %v1351 = vunpack.c.l.b16 %v1027
        %v1352 = vunpack.c.l.b16 %v1028
        %v1353 = vunpack.c.l.b16 %v1029
        %v1354 = vunpack.c.l.b16 %v1030
        %v1355 = vunpack.c.l.b16 %v1031
        %v1356 = vunpack.c.l.b16 %v1032
        %v1357 = vunpack.c.l.b16 %v1033
        %v1358 = vunpack.c.l.b16 %v1034
        %v1359 = vunpack.c.l.b16 %v1035
        %v1360 = vunpack.c.l.b16 %v1036
        %v1361 = vunpack.c.l.b16 %v1037
        %v1362 = vunpack.c.l.b16 %v1038
        %v1363 = vunpack.c.l.b16 %v1039
        %v1364 = vunpack.c.l.b16 %v1040
        %v1365 = vunpack.c.l.b16 %v1041
        %v1366 = vunpack.c.l.b16 %v1042
        %v1367 = vunpack.c.l.b16 %v1043
        %v1368 = vunpack.c.l.b16 %v1044
        %v1369 = vunpack.c.l.b16 %v1045
        %v1370 = vunpack.c.l.b16 %v1046
        %v1371 = vunpack.c.l.b16 %v1047
        %v1372 = vunpack.c.l.b16 %v1048
        %v1373 = vunpack.c.l.b16 %v1049
        %v1374 = vunpack.c.l.b16 %v1050
        %v1375 = vunpack.c.l.b16 %v1051
        %v1376 = vunpack.c.l.b16 %v1052
        %v1377 = vunpack.c.l.b16 %v1053
        %v1378 = vunpack.c.l.b16 %v1054
        %v1379 = vunpack.c.l.b16 %v1055
        %v1380 = vunpack.c.l.b16 %v1056
        %v1381 = vunpack.c.l.b16 %v1057
        %v1382 = vunpack.c.l.b16 %v1058
        %v1383 = vunpack.c.l.b16 %v1059
        %v1384 = vunpack.c.l.b16 %v1060
        %v1385 = vunpack.c.l.b16 %v1061
        %v1386 = vunpack.c.l.b16 %v1062
        %v1387 = vunpack.c.l.b16 %v1063
        %v1388 = vunpack.c.l.b16 %v1064
        %v1389 = vunpack.c.l.b16 %v1065
        %v1390 = vunpack.c.l.b16 %v1066
        %v1391 = vunpack.c.l.b16 %v1067
        %v1392 = vunpack.c.l.b16 %v1068
        %v1393 = vunpack.c.l.b16 %v1069
        %v1394 = vunpack.c.l.b16 %v1070
        %v1395 = vunpack.c.l.b16 %v1071
        %v1396 = vunpack.c.l.b16 %v1072
        %v1397 = vunpack.c.l.b16 %v1073
        %v1398 = vunpack.c.l.b16 %v1074
        %v1399 = vunpack.c.l.b16 %v1075
        %v1400 = vunpack.c.l.b16 %v1076
        %v1401 = vunpack.c.l.b16 %v1077
        %v1402 = vunpack.c.l.b16 %v1078
        %v1403 = vunpack.c.l.b16 %v1079
        %v1404 = vunpack.c.l.b16 %v1080
        %v1405 = vunpack.c.l.b16 %v1081
        %v1406 = vunpack.c.l.b16 %v1082
        %v1407 = vunpack.c.l.b16 %v1083
        %v1408 = vunpack.c.l.b16 %v1084
        %v1409 = vunpack.c.l.b16 %v1085
        %v1410 = vunpack.c.l.b16 %v1086
        %v1411 = vunpack.c.l.b16 %v1087
        %v1412 = vunpack.c.l.b16 %v1088
        %v1413 = vunpack.c.l.b16 %v1089
        %v1414 = vunpack.c.l.b16 %v1090
        %v1415 = vunpack.c.l.b16 %v1091
        %v1416 = vunpack.c.l.b16 %v1092
        %v1417 = vunpack.c.l.b16 %v1093
        %v1418 = vunpack.c.l.b16 %v1094
        %v1419 = vunpack.c.l.b16 %v1095
        %v1420 = vunpack.c.l.b16 %v1096
        %v1421 = vunpack.c.l.b16 %v1097
        %v1422 = vunpack.c.l.b16 %v1098
        %v1423 = vunpack.c.l.b16 %v1099
        %v1424 = vunpack.c.l.b16 %v1100
        %v1425 = vunpack.c.l.b16 %v1101
        %v1426 = vunpack.c.l.b16 %v1102
        %v1427 = vunpack.c.l.b16 %v1103
        %v1428 = vunpack.c.l.b16 %v1104
        %v1429 = vunpack.c.l.b16 %v1105
        %v1430 = vunpack.c.l.b16 %v1106
        %v1431 = vunpack.c.l.b16 %v1107
        %v1432 = vunpack.c.l.b16 %v1108
        %v1433 = vunpack.c.l.b16 %v1109
        %v1434 = vunpack.c.l.b16 %v1110
        %v1435 = vunpack.c.l.b16 %v1111
        %v1436 = vunpack.c.l.b16 %v1112
        %v1437 = vunpack.c.l.b16 %v1113
        %v1438 = vunpack.c.l.b16 %v1114
        %v1439 = vunpack.c.l.b16 %v1115
        %v1440 = vunpack.c.l.b16 %v1116
        %v1441 = vunpack.c.l.b16 %v1117
        %v1442 = vunpack.c.l.b16 %v1118
        %v1443 = vunpack.c.l.b16 %v1119
        %v1444 = vunpack.c.l.b16 %v1120
        %v1445 = vunpack.c.l.b16 %v1121
        %v1446 = vunpack.c.l.b16 %v1122
        %v1447 = vunpack.c.l.b16 %v1123
        %v1448 = vunpack.c.l.b16 %v1124
        %v1449 = vpack.c.b16 %v1290, %v1289
        %v1450 = vpack.c.b16 %v1292, %v1291
        %v1451 = vpack.c.b16 %v1294, %v1293
        %v1452 = vpack.c.b16 %v1296, %v1295
        %v1453 = vpack.c.b16 %v1298, %v1297
        %v1454 = vpack.c.b16 %v1300, %v1299
        %v1455 = vpack.c.b16 %v1302, %v1301
        %v1456 = vpack.c.b16 %v1304, %v1303
        %v1457 = vpack.c.b16 %v1306, %v1305
        %v1458 = vpack.c.b16 %v1308, %v1307
        %v1459 = vpack.c.b16 %v1310, %v1309
        %v1460 = vpack.c.b16 %v1312, %v1311
        %v1461 = vpack.c.b16 %v1314, %v1313
        %v1462 = vpack.c.b16 %v1316, %v1315
        %v1463 = vpack.c.b16 %v1318, %v1317
        %v1464 = vpack.c.b16 %v1320, %v1319
        %v1465 = vpack.c.b16 %v1322, %v1321
        %v1466 = vpack.c.b16 %v1324, %v1323
        %v1467 = vpack.c.b16 %v1326, %v1325
        %v1468 = vpack.c.b16 %v1328, %v1327
        %v1469 = vpack.c.b16 %v1330, %v1329
        %v1470 = vpack.c.b16 %v1332, %v1331
        %v1471 = vpack.c.b16 %v1334, %v1333
        %v1472 = vpack.c.b16 %v1336, %v1335
        %v1473 = vpack.c.b16 %v1338, %v1337
        %v1474 = vpack.c.b16 %v1340, %v1339
        %v1475 = vpack.c.b16 %v1342, %v1341
        %v1476 = vpack.c.b16 %v1344, %v1343
        %v1477 = vpack.c.b16 %v1346, %v1345
        %v1478 = vpack.c.b16 %v1348, %v1347
        %v1479 = vpack.c.b16 %v1350, %v1349
        %v1480 = vpack.c.b16 %v1352, %v1351
        %v1481 = vpack.c.b16 %v1354, %v1353
        %v1482 = vpack.c.b16 %v1356, %v1355
        %v1483 = vpack.c.b16 %v1358, %v1357
        %v1484 = vpack.c.b16 %v1360, %v1359
        %v1485 = vpack.c.b16 %v1362, %v1361
        %v1486 = vpack.c.b16 %v1364, %v1363
        %v1487 = vpack.c.b16 %v1366, %v1365
        %v1488 = vpack.c.b16 %v1368, %v1367
        %v1489 = vpack.c.b16 %v1370, %v1369
        %v1490 = vpack.c.b16 %v1372, %v1371
        %v1491 = vpack.c.b16 %v1374, %v1373
        %v1492 = vpack.c.b16 %v1376, %v1375
        %v1493 = vpack.c.b16 %v1378, %v1377
        %v1494 = vpack.c.b16 %v1380, %v1379
        %v1495 = vpack.c.b16 %v1382, %v1381
        %v1496 = vpack.c.b16 %v1384, %v1383
        %v1497 = vpack.c.b16 %v1386, %v1385
        %v1498 = vpack.c.b16 %v1388, %v1387
        %v1499 = vpack.c.b16 %v1390, %v1389
        %v1500 = vpack.c.b16 %v1392, %v1391
        %v1501 = vpack.c.b16 %v1394, %v1393
        %v1502 = vpack.c.b16 %v1396, %v1395
        %v1503 = vpack.c.b16 %v1398, %v1397
        %v1504 = vpack.c.b16 %v1400, %v1399
        %v1505 = vpack.c.b16 %v1402, %v1401
        %v1506 = vpack.c.b16 %v1404, %v1403
        %v1507 = vpack.c.b16 %v1406, %v1405
        %v1508 = vpack.c.b16 %v1408, %v1407
        %v1509 = vpack.c.b16 %v1410, %v1409
        %v1510 = vpack.c.b16 %v1412, %v1411
        %v1511 = vpack.c.b16 %v1414, %v1413
        %v1512 = vpack.c.b16 %v1416, %v1415
        %v1513 = vpack.c.b16 %v1418, %v1417
        %v1514 = vpack.c.b16 %v1420, %v1419
        %v1515 = vpack.c.b16 %v1422, %v1421
        %v1516 = vpack.c.b16 %v1424, %v1423
        %v1517 = vpack.c.b16 %v1426, %v1425
        %v1518 = vpack.c.b16 %v1428, %v1427
        %v1519 = vpack.c.b16 %v1430, %v1429
        %v1520 = vpack.c.b16 %v1432, %v1431
        %v1521 = vpack.c.b16 %v1434, %v1433
        %v1522 = vpack.c.b16 %v1436, %v1435
        %v1523 = vpack.c.b16 %v1438, %v1437
        %v1524 = vpack.c.b16 %v1440, %v1439
        %v1525 = vpack.c.b16 %v1442, %v1441
        %v1526 = vpack.c.b16 %v1444, %v1443
        %v1527 = vpack.c.b16 %v1446, %v1445
        %v1528 = vpack.c.b16 %v1448, %v1447
        %1609 = vmatpush.bf16.msra.mxu0 %v1456
        %1610 = vmatpush.bf16.msra.mxu0 %v1455
        %1611 = vmatpush.bf16.msra.mxu0 %v1454
        %1612 = vmatpush.bf16.msra.mxu0 %v1453
        %1613 = vmatpush.bf16.msra.mxu0 %v1452
        %1614 = vmatpush.bf16.msra.mxu0 %v1451
        %1615 = vmatpush.bf16.msra.mxu0 %v1450
        %1616 = vmatpush.bf16.msra.mxu0 %v1449
        %1617 = vmatmul.bf16.gmra.mxu0 %v700
        %v1618 = vpop.f32.mrf.mxu0
        %v1619 = vadd.f32 %v1127, %v1618
        %v1620 = vpop.f32.mrf.mxu0
        %v1621 = vadd.f32 %v1127, %v1620
        %1622 = vmatmul.bf16.gmra.mxu0 %v701
        %v1623 = vpop.f32.mrf.mxu0
        %v1624 = vadd.f32 %v1127, %v1623
        %v1625 = vpop.f32.mrf.mxu0
        %v1626 = vadd.f32 %v1127, %v1625
        %1627 = vmatmul.bf16.gmra.mxu0 %v702
        %v1628 = vpop.f32.mrf.mxu0
        %v1629 = vadd.f32 %v1127, %v1628
        %v1630 = vpop.f32.mrf.mxu0
        %v1631 = vadd.f32 %v1127, %v1630
        %1632 = vmatmul.bf16.gmra.mxu0 %v703
        %v1633 = vpop.f32.mrf.mxu0
        %v1634 = vadd.f32 %v1127, %v1633
        %v1635 = vpop.f32.mrf.mxu0
        %v1636 = vadd.f32 %v1127, %v1635
        %1637 = vmatmul.bf16.gmra.mxu0 %v704
        %v1638 = vpop.f32.mrf.mxu0
        %v1639 = vadd.f32 %v1127, %v1638
        %v1640 = vpop.f32.mrf.mxu0
        %v1641 = vadd.f32 %v1127, %v1640
        %1642 = vdwg.mxu0
        %1643 = vmatpush.bf16.msra.mxu0 %v1464
        %1644 = vmatpush.bf16.msra.mxu0 %v1463
        %1645 = vmatpush.bf16.msra.mxu0 %v1462
        %1646 = vmatpush.bf16.msra.mxu0 %v1461
        %1647 = vmatpush.bf16.msra.mxu0 %v1460
        %1648 = vmatpush.bf16.msra.mxu0 %v1459
        %1649 = vmatpush.bf16.msra.mxu0 %v1458
        %1650 = vmatpush.bf16.msra.mxu0 %v1457
        %1651 = vmatmul.bf16.gmra.mxu0 %v725
        %v1652 = vpop.f32.mrf.mxu0
        %v1653 = vadd.f32 %v1619, %v1652
        %v1654 = vpop.f32.mrf.mxu0
        %v1655 = vadd.f32 %v1621, %v1654
        %1656 = vmatmul.bf16.gmra.mxu0 %v733
        %v1657 = vpop.f32.mrf.mxu0
        %v1658 = vadd.f32 %v1624, %v1657
        %v1659 = vpop.f32.mrf.mxu0
        %v1660 = vadd.f32 %v1626, %v1659
        %1661 = vmatmul.bf16.gmra.mxu0 %v741
        %v1662 = vpop.f32.mrf.mxu0
        %v1663 = vadd.f32 %v1629, %v1662
        %v1664 = vpop.f32.mrf.mxu0
        %v1665 = vadd.f32 %v1631, %v1664
        %1666 = vmatmul.bf16.gmra.mxu0 %v749
        %v1667 = vpop.f32.mrf.mxu0
        %v1668 = vadd.f32 %v1634, %v1667
        %v1669 = vpop.f32.mrf.mxu0
        %v1670 = vadd.f32 %v1636, %v1669
        %1671 = vmatmul.bf16.gmra.mxu0 %v757
        %v1672 = vpop.f32.mrf.mxu0
        %v1673 = vadd.f32 %v1639, %v1672
        %v1674 = vpop.f32.mrf.mxu0
        %v1675 = vadd.f32 %v1641, %v1674
        %1676 = vdwg.mxu0
        %1677 = vmatpush.bf16.msra.mxu0 %v1472
        %1678 = vmatpush.bf16.msra.mxu0 %v1471
        %1679 = vmatpush.bf16.msra.mxu0 %v1470
        %1680 = vmatpush.bf16.msra.mxu0 %v1469
        %1681 = vmatpush.bf16.msra.mxu0 %v1468
        %1682 = vmatpush.bf16.msra.mxu0 %v1467
        %1683 = vmatpush.bf16.msra.mxu0 %v1466
        %1684 = vmatpush.bf16.msra.mxu0 %v1465
        %1685 = vmatmul.bf16.gmra.mxu0 %v766
        %v1686 = vpop.f32.mrf.mxu0
        %v1687 = vadd.f32 %v1653, %v1686
        %v1688 = vpop.f32.mrf.mxu0
        %v1689 = vadd.f32 %v1655, %v1688
        %1690 = vmatmul.bf16.gmra.mxu0 %v768
        %v1691 = vpop.f32.mrf.mxu0
        %v1692 = vadd.f32 %v1658, %v1691
        %v1693 = vpop.f32.mrf.mxu0
        %v1694 = vadd.f32 %v1660, %v1693
        %1695 = vmatmul.bf16.gmra.mxu0 %v770
        %v1696 = vpop.f32.mrf.mxu0
        %v1697 = vadd.f32 %v1663, %v1696
        %v1698 = vpop.f32.mrf.mxu0
        %v1699 = vadd.f32 %v1665, %v1698
        %1700 = vmatmul.bf16.gmra.mxu0 %v772
        %v1701 = vpop.f32.mrf.mxu0
        %v1702 = vadd.f32 %v1668, %v1701
        %v1703 = vpop.f32.mrf.mxu0
        %v1704 = vadd.f32 %v1670, %v1703
        %1705 = vmatmul.bf16.gmra.mxu0 %v774
        %v1706 = vpop.f32.mrf.mxu0
        %v1707 = vadd.f32 %v1673, %v1706
        %v1708 = vpop.f32.mrf.mxu0
        %v1709 = vadd.f32 %v1675, %v1708
        %1710 = vdwg.mxu0
        %1711 = vmatpush.bf16.msra.mxu0 %v1480
        %1712 = vmatpush.bf16.msra.mxu0 %v1479
        %1713 = vmatpush.bf16.msra.mxu0 %v1478
        %1714 = vmatpush.bf16.msra.mxu0 %v1477
        %1715 = vmatpush.bf16.msra.mxu0 %v1476
        %1716 = vmatpush.bf16.msra.mxu0 %v1475
        %1717 = vmatpush.bf16.msra.mxu0 %v1474
        %1718 = vmatpush.bf16.msra.mxu0 %v1473
        %1719 = vmatmul.bf16.gmra.mxu0 %v787
        %v1720 = vpop.f32.mrf.mxu0
        %v1721 = vadd.f32 %v1687, %v1720
        %v1722 = vpop.f32.mrf.mxu0
        %v1723 = vadd.f32 %v1689, %v1722
        %1724 = vmatmul.bf16.gmra.mxu0 %v791
        %v1725 = vpop.f32.mrf.mxu0
        %v1726 = vadd.f32 %v1692, %v1725
        %v1727 = vpop.f32.mrf.mxu0
        %v1728 = vadd.f32 %v1694, %v1727
        %1729 = vmatmul.bf16.gmra.mxu0 %v795
        %v1730 = vpop.f32.mrf.mxu0
        %v1731 = vadd.f32 %v1697, %v1730
        %v1732 = vpop.f32.mrf.mxu0
        %v1733 = vadd.f32 %v1699, %v1732
        %1734 = vmatmul.bf16.gmra.mxu0 %v799
        %v1735 = vpop.f32.mrf.mxu0
        %v1736 = vadd.f32 %v1702, %v1735
        %v1737 = vpop.f32.mrf.mxu0
        %v1738 = vadd.f32 %v1704, %v1737
        %1739 = vmatmul.bf16.gmra.mxu0 %v805
        %v1740 = vpop.f32.mrf.mxu0
        %v1741 = vadd.f32 %v1707, %v1740
        %v1742 = vpop.f32.mrf.mxu0
        %v1743 = vadd.f32 %v1709, %v1742
        %1744 = vdwg.mxu0
        %1745 = vmatpush.bf16.msra.mxu0 %v1488
        %1746 = vmatpush.bf16.msra.mxu0 %v1487
        %1747 = vmatpush.bf16.msra.mxu0 %v1486
        %1748 = vmatpush.bf16.msra.mxu0 %v1485
        %1749 = vmatpush.bf16.msra.mxu0 %v1484
        %1750 = vmatpush.bf16.msra.mxu0 %v1483
        %1751 = vmatpush.bf16.msra.mxu0 %v1482
        %1752 = vmatpush.bf16.msra.mxu0 %v1481
        %1753 = vmatmul.bf16.gmra.mxu0 %v814
        %v1754 = vpop.f32.mrf.mxu0
        %v1755 = vadd.f32 %v1721, %v1754
        %v1756 = vpop.f32.mrf.mxu0
        %v1757 = vadd.f32 %v1723, %v1756
        %1758 = vmatmul.bf16.gmra.mxu0 %v816
        %v1759 = vpop.f32.mrf.mxu0
        %v1760 = vadd.f32 %v1726, %v1759
        %v1761 = vpop.f32.mrf.mxu0
        %v1762 = vadd.f32 %v1728, %v1761
        %1763 = vmatmul.bf16.gmra.mxu0 %v818
        %v1764 = vpop.f32.mrf.mxu0
        %v1765 = vadd.f32 %v1731, %v1764
        %v1766 = vpop.f32.mrf.mxu0
        %v1767 = vadd.f32 %v1733, %v1766
        %1768 = vmatmul.bf16.gmra.mxu0 %v820
        %v1769 = vpop.f32.mrf.mxu0
        %v1770 = vadd.f32 %v1736, %v1769
        %v1771 = vpop.f32.mrf.mxu0
        %v1772 = vadd.f32 %v1738, %v1771
        %1773 = vmatmul.bf16.gmra.mxu0 %v822
        %v1774 = vpop.f32.mrf.mxu0
        %v1775 = vadd.f32 %v1741, %v1774
        %v1776 = vpop.f32.mrf.mxu0
        %v1777 = vadd.f32 %v1743, %v1776
        %1778 = vdwg.mxu0
        %1779 = vmatpush.bf16.msra.mxu0 %v1496
        %1780 = vmatpush.bf16.msra.mxu0 %v1495
        %1781 = vmatpush.bf16.msra.mxu0 %v1494
        %1782 = vmatpush.bf16.msra.mxu0 %v1493
        %1783 = vmatpush.bf16.msra.mxu0 %v1492
        %1784 = vmatpush.bf16.msra.mxu0 %v1491
        %1785 = vmatpush.bf16.msra.mxu0 %v1490
        %1786 = vmatpush.bf16.msra.mxu0 %v1489
        %1787 = vmatmul.bf16.gmra.mxu0 %v835
        %v1788 = vpop.f32.mrf.mxu0
        %v1789 = vadd.f32 %v1755, %v1788
        %v1790 = vpop.f32.mrf.mxu0
        %v1791 = vadd.f32 %v1757, %v1790
        %1792 = vmatmul.bf16.gmra.mxu0 %v839
        %v1793 = vpop.f32.mrf.mxu0
        %v1794 = vadd.f32 %v1760, %v1793
        %v1795 = vpop.f32.mrf.mxu0
        %v1796 = vadd.f32 %v1762, %v1795
        %1797 = vmatmul.bf16.gmra.mxu0 %v843
        %v1798 = vpop.f32.mrf.mxu0
        %v1799 = vadd.f32 %v1765, %v1798
        %v1800 = vpop.f32.mrf.mxu0
        %v1801 = vadd.f32 %v1767, %v1800
        %1802 = vmatmul.bf16.gmra.mxu0 %v847
        %v1803 = vpop.f32.mrf.mxu0
        %v1804 = vadd.f32 %v1770, %v1803
        %v1805 = vpop.f32.mrf.mxu0
        %v1806 = vadd.f32 %v1772, %v1805
        %1807 = vmatmul.bf16.gmra.mxu0 %v851
        %v1808 = vpop.f32.mrf.mxu0
        %v1809 = vadd.f32 %v1775, %v1808
        %v1810 = vpop.f32.mrf.mxu0
        %v1811 = vadd.f32 %v1777, %v1810
        %1812 = vdwg.mxu0
        %1813 = vmatpush.bf16.msra.mxu0 %v1504
        %1814 = vmatpush.bf16.msra.mxu0 %v1503
        %1815 = vmatpush.bf16.msra.mxu0 %v1502
        %1816 = vmatpush.bf16.msra.mxu0 %v1501
        %1817 = vmatpush.bf16.msra.mxu0 %v1500
        %1818 = vmatpush.bf16.msra.mxu0 %v1499
        %1819 = vmatpush.bf16.msra.mxu0 %v1498
        %1820 = vmatpush.bf16.msra.mxu0 %v1497
        %1821 = vmatmul.bf16.gmra.mxu0 %v860
        %v1822 = vpop.f32.mrf.mxu0
        %v1823 = vadd.f32 %v1789, %v1822
        %v1824 = vpop.f32.mrf.mxu0
        %v1825 = vadd.f32 %v1791, %v1824
        %1826 = vmatmul.bf16.gmra.mxu0 %v862
        %v1827 = vpop.f32.mrf.mxu0
        %v1828 = vadd.f32 %v1794, %v1827
        %v1829 = vpop.f32.mrf.mxu0
        %v1830 = vadd.f32 %v1796, %v1829
        %1831 = vmatmul.bf16.gmra.mxu0 %v864
        %v1832 = vpop.f32.mrf.mxu0
        %v1833 = vadd.f32 %v1799, %v1832
        %v1834 = vpop.f32.mrf.mxu0
        %v1835 = vadd.f32 %v1801, %v1834
        %1836 = vmatmul.bf16.gmra.mxu0 %v866
        %v1837 = vpop.f32.mrf.mxu0
        %v1838 = vadd.f32 %v1804, %v1837
        %v1839 = vpop.f32.mrf.mxu0
        %v1840 = vadd.f32 %v1806, %v1839
        %1841 = vmatmul.bf16.gmra.mxu0 %v868
        %v1842 = vpop.f32.mrf.mxu0
        %v1843 = vadd.f32 %v1809, %v1842
        %v1844 = vpop.f32.mrf.mxu0
        %v1845 = vadd.f32 %v1811, %v1844
        %1846 = vdwg.mxu0
        %1847 = vmatpush.bf16.msra.mxu0 %v1512
        %1848 = vmatpush.bf16.msra.mxu0 %v1511
        %1849 = vmatpush.bf16.msra.mxu0 %v1510
        %1850 = vmatpush.bf16.msra.mxu0 %v1509
        %1851 = vmatpush.bf16.msra.mxu0 %v1508
        %1852 = vmatpush.bf16.msra.mxu0 %v1507
        %1853 = vmatpush.bf16.msra.mxu0 %v1506
        %1854 = vmatpush.bf16.msra.mxu0 %v1505
        %1855 = vmatmul.bf16.gmra.mxu0 %v881
        %v1856 = vpop.f32.mrf.mxu0
        %v1857 = vadd.f32 %v1823, %v1856
        %v1858 = vpop.f32.mrf.mxu0
        %v1859 = vadd.f32 %v1825, %v1858
        %1860 = vmatmul.bf16.gmra.mxu0 %v885
        %v1861 = vpop.f32.mrf.mxu0
        %v1862 = vadd.f32 %v1828, %v1861
        %v1863 = vpop.f32.mrf.mxu0
        %v1864 = vadd.f32 %v1830, %v1863
        %1865 = vmatmul.bf16.gmra.mxu0 %v889
        %v1866 = vpop.f32.mrf.mxu0
        %v1867 = vadd.f32 %v1833, %v1866
        %v1868 = vpop.f32.mrf.mxu0
        %v1869 = vadd.f32 %v1835, %v1868
        %1870 = vmatmul.bf16.gmra.mxu0 %v893
        %v1871 = vpop.f32.mrf.mxu0
        %v1872 = vadd.f32 %v1838, %v1871
        %v1873 = vpop.f32.mrf.mxu0
        %v1874 = vadd.f32 %v1840, %v1873
        %1875 = vmatmul.bf16.gmra.mxu0 %v897
        %v1876 = vpop.f32.mrf.mxu0
        %v1877 = vadd.f32 %v1843, %v1876
        %v1878 = vpop.f32.mrf.mxu0
        %v1879 = vadd.f32 %v1845, %v1878
        %1880 = vdwg.mxu0
        %1881 = vmatpush.bf16.msra.mxu0 %v1520
        %1882 = vmatpush.bf16.msra.mxu0 %v1519
        %1883 = vmatpush.bf16.msra.mxu0 %v1518
        %1884 = vmatpush.bf16.msra.mxu0 %v1517
        %1885 = vmatpush.bf16.msra.mxu0 %v1516
        %1886 = vmatpush.bf16.msra.mxu0 %v1515
        %1887 = vmatpush.bf16.msra.mxu0 %v1514
        %1888 = vmatpush.bf16.msra.mxu0 %v1513
        %1889 = vmatmul.bf16.gmra.mxu0 %v903
        %v1890 = vpop.f32.mrf.mxu0
        %v1891 = vadd.f32 %v1857, %v1890
        %v1892 = vpop.f32.mrf.mxu0
        %v1893 = vadd.f32 %v1859, %v1892
        %1894 = vmatmul.bf16.gmra.mxu0 %v904
        %v1895 = vpop.f32.mrf.mxu0
        %v1896 = vadd.f32 %v1862, %v1895
        %v1897 = vpop.f32.mrf.mxu0
        %v1898 = vadd.f32 %v1864, %v1897
        %1899 = vmatmul.bf16.gmra.mxu0 %v905
        %v1900 = vpop.f32.mrf.mxu0
        %v1901 = vadd.f32 %v1867, %v1900
        %v1902 = vpop.f32.mrf.mxu0
        %v1903 = vadd.f32 %v1869, %v1902
        %1904 = vmatmul.bf16.gmra.mxu0 %v906
        %v1905 = vpop.f32.mrf.mxu0
        %v1906 = vadd.f32 %v1872, %v1905
        %v1907 = vpop.f32.mrf.mxu0
        %v1908 = vadd.f32 %v1874, %v1907
        %1909 = vmatmul.bf16.gmra.mxu0 %v907
        %v1910 = vpop.f32.mrf.mxu0
        %v1911 = vadd.f32 %v1877, %v1910
        %v1912 = vpop.f32.mrf.mxu0
        %v1913 = vadd.f32 %v1879, %v1912
        %1914 = vdwg.mxu0
        %1915 = vmatpush.bf16.msra.mxu0 %v1528
        %1916 = vmatpush.bf16.msra.mxu0 %v1527
        %1917 = vmatpush.bf16.msra.mxu0 %v1526
        %1918 = vmatpush.bf16.msra.mxu0 %v1525
        %1919 = vmatpush.bf16.msra.mxu0 %v1524
        %1920 = vmatpush.bf16.msra.mxu0 %v1523
        %1921 = vmatpush.bf16.msra.mxu0 %v1522
        %1922 = vmatpush.bf16.msra.mxu0 %v1521
        %1923 = vmatmul.bf16.gmra.mxu0 %v927
        %v1924 = vpop.f32.mrf.mxu0
        %v1925 = vadd.f32 %v1891, %v1924
        %v1926 = vpop.f32.mrf.mxu0
        %v1927 = vadd.f32 %v1893, %v1926
        %1928 = vmatmul.bf16.gmra.mxu0 %v935
        %v1929 = vpop.f32.mrf.mxu0
        %v1930 = vadd.f32 %v1896, %v1929
        %v1931 = vpop.f32.mrf.mxu0
        %v1932 = vadd.f32 %v1898, %v1931
        %1933 = vmatmul.bf16.gmra.mxu0 %v943
        %v1934 = vpop.f32.mrf.mxu0
        %v1935 = vadd.f32 %v1901, %v1934
        %v1936 = vpop.f32.mrf.mxu0
        %v1937 = vadd.f32 %v1903, %v1936
        %1938 = vmatmul.bf16.gmra.mxu0 %v951
        %v1939 = vpop.f32.mrf.mxu0
        %v1940 = vadd.f32 %v1906, %v1939
        %v1941 = vpop.f32.mrf.mxu0
        %v1942 = vadd.f32 %v1908, %v1941
        %1943 = vmatmul.bf16.gmra.mxu0 %v959
        %v1944 = vpop.f32.mrf.mxu0
        %v1945 = vadd.f32 %v1911, %v1944
        %v1946 = vpop.f32.mrf.mxu0
        %v1947 = vadd.f32 %v1913, %v1946
        %1948 = vdwg.mxu0
        %v1949 = vmax.f32 %v1925, 0.0
        %v1950 = vmax.f32 %v1927, 0.0
        %v1951 = vmax.f32 %v1930, 0.0
        %v1952 = vmax.f32 %v1932, 0.0
        %v1953 = vmax.f32 %v1935, 0.0
        %v1954 = vmax.f32 %v1937, 0.0
        %v1955 = vmax.f32 %v1940, 0.0
        %v1956 = vmax.f32 %v1942, 0.0
        %v1957 = vmax.f32 %v1945, 0.0
        %v1958 = vmax.f32 %v1947, 0.0
        %v1969 = vrot.slane %v1949, 2
        %v1970 = vrot.slane %v1949, 4
        %v1971 = vrot.slane %v1949, 6
        %v1972 = vrot.slane %v1950, 2
        %v1973 = vrot.slane %v1950, 4
        %v1974 = vrot.slane %v1950, 6
        %v1975 = vrot.slane %v1951, 2
        %v1976 = vrot.slane %v1951, 4
        %v1977 = vrot.slane %v1951, 6
        %v1978 = vrot.slane %v1952, 2
        %v1979 = vrot.slane %v1952, 4
        %v1980 = vrot.slane %v1952, 6
        %v1981 = vrot.slane %v1953, 2
        %v1982 = vrot.slane %v1953, 4
        %v1983 = vrot.slane %v1953, 6
        %v1984 = vrot.slane %v1954, 2
        %v1985 = vrot.slane %v1954, 4
        %v1986 = vrot.slane %v1954, 6
        %v1987 = vrot.slane %v1955, 2
        %v1988 = vrot.slane %v1955, 4
        %v1989 = vrot.slane %v1955, 6
        %v1990 = vrot.slane %v1956, 2
        %v1991 = vrot.slane %v1956, 4
        %v1992 = vrot.slane %v1956, 6
        %v1993 = vrot.slane %v1957, 2
        %v1994 = vrot.slane %v1957, 4
        %v1995 = vrot.slane %v1957, 6
        %v1996 = vrot.slane %v1958, 2
        %v1997 = vrot.slane %v1958, 4
        %v1998 = vrot.slane %v1958, 6
        %1999 = vst [vmem:[#allocation1] ss:$4 sm:$0xff] %v1949
        %s2000 = scalar_lea.vmem [#allocation1], 1
        %2001 = vst [vmem:[%s2000] ss:$4 sm:$0xff] %v1969
        %s2002 = scalar_lea.vmem [#allocation1], 2
        %2003 = vst [vmem:[%s2002] ss:$4 sm:$0xff] %v1970
        %s2004 = scalar_lea.vmem [#allocation1], 3
        %2005 = vst [vmem:[%s2004] ss:$4 sm:$0xff] %v1971
        %s2006 = scalar_lea.vmem [#allocation1], 32
        %2007 = vst [vmem:[%s2006] ss:$4 sm:$0xff] %v1950
        %v2008 = vld.sshfl [vmem:[#allocation1] sm:$0xff pattern:$0x73625140]
        %v2009 = vld.sshfl [vmem:[#allocation1 + $0x20] sm:$0xff pattern:$0x73625140]
        %2010 = vst [vmem:[#allocation1] ss:$4 sm:$0xff] %v1972
        %2011 = vst [vmem:[%s2000] ss:$4 sm:$0xff] %v1973
        %2012 = vst [vmem:[%s2002] ss:$4 sm:$0xff] %v1974
        %2013 = vst [vmem:[%s2004] ss:$4 sm:$0xff] %v1951
        %2014 = vst [vmem:[%s2006] ss:$4 sm:$0xff] %v1975
        %v2015 = vld.sshfl [vmem:[#allocation1] sm:$0xff pattern:$0x73625140]
        %v2016 = vld.sshfl [vmem:[#allocation1 + $0x20] sm:$0xff pattern:$0x73625140]
        %2017 = vst [vmem:[#allocation1] ss:$4 sm:$0xff] %v1976
        %2018 = vst [vmem:[%s2000] ss:$4 sm:$0xff] %v1977
        %2019 = vst [vmem:[%s2002] ss:$4 sm:$0xff] %v1952
        %2020 = vst [vmem:[%s2004] ss:$4 sm:$0xff] %v1978
        %2021 = vst [vmem:[%s2006] ss:$4 sm:$0xff] %v1979
        %v2022 = vld.sshfl [vmem:[#allocation1] sm:$0xff pattern:$0x73625140]
        %v2023 = vld.sshfl [vmem:[#allocation1 + $0x20] sm:$0xff pattern:$0x73625140]
        %2024 = vst [vmem:[#allocation1] ss:$4 sm:$0xff] %v1980
        %2025 = vst [vmem:[%s2000] ss:$4 sm:$0xff] %v1953
        %2026 = vst [vmem:[%s2002] ss:$4 sm:$0xff] %v1981
        %2027 = vst [vmem:[%s2004] ss:$4 sm:$0xff] %v1982
        %2028 = vst [vmem:[%s2006] ss:$4 sm:$0xff] %v1983
        %v2029 = vld.sshfl [vmem:[#allocation1] sm:$0xff pattern:$0x73625140]
        %v2030 = vld.sshfl [vmem:[#allocation1 + $0x20] sm:$0xff pattern:$0x73625140]
        %2031 = vst [vmem:[#allocation1] ss:$4 sm:$0xff] %v1954
        %2032 = vst [vmem:[%s2000] ss:$4 sm:$0xff] %v1984
        %2033 = vst [vmem:[%s2002] ss:$4 sm:$0xff] %v1985
        %2034 = vst [vmem:[%s2004] ss:$4 sm:$0xff] %v1986
        %2035 = vst [vmem:[%s2006] ss:$4 sm:$0xff] %v1955
        %v2036 = vld.sshfl [vmem:[#allocation1] sm:$0xff pattern:$0x73625140]
        %v2037 = vld.sshfl [vmem:[#allocation1 + $0x20] sm:$0xff pattern:$0x73625140]
        %2038 = vst [vmem:[#allocation1] ss:$4 sm:$0xff] %v1987
        %2039 = vst [vmem:[%s2000] ss:$4 sm:$0xff] %v1988
        %2040 = vst [vmem:[%s2002] ss:$4 sm:$0xff] %v1989
        %2041 = vst [vmem:[%s2004] ss:$4 sm:$0xff] %v1956
        %2042 = vst [vmem:[%s2006] ss:$4 sm:$0xff] %v1990
        %v2043 = vld.sshfl [vmem:[#allocation1] sm:$0xff pattern:$0x73625140]
        %v2044 = vld.sshfl [vmem:[#allocation1 + $0x20] sm:$0xff pattern:$0x73625140]
        %2045 = vst [vmem:[#allocation1] ss:$4 sm:$0xff] %v1991
        %2046 = vst [vmem:[%s2000] ss:$4 sm:$0xff] %v1992
        %2047 = vst [vmem:[%s2002] ss:$4 sm:$0xff] %v1957
        %2048 = vst [vmem:[%s2004] ss:$4 sm:$0xff] %v1993
        %2049 = vst [vmem:[%s2006] ss:$4 sm:$0xff] %v1994
        %v2050 = vld.sshfl [vmem:[#allocation1] sm:$0xff pattern:$0x73625140]
        %v2051 = vld.sshfl [vmem:[#allocation1 + $0x20] sm:$0xff pattern:$0x73625140]
        %2052 = vst [vmem:[#allocation1] ss:$4 sm:$0xff] %v1995
        %2053 = vst [vmem:[%s2000] ss:$4 sm:$0xff] %v1958
        %2054 = vst [vmem:[%s2002] ss:$4 sm:$0xff] %v1996
        %2055 = vst [vmem:[%s2004] ss:$4 sm:$0xff] %v1997
        %2056 = vst [vmem:[%s2006] ss:$4 sm:$0xff] %v1998
        %v2057 = vld.sshfl [vmem:[#allocation1] sm:$0xff pattern:$0x73625140]
        %v2058 = vld.sshfl [vmem:[#allocation1 + $0x20] sm:$0xff pattern:$0x73625140]
        %v2075 = vsel %vm613, %v2009, -inf
        %v2076 = vmax.f32 %v2008, %v2075
        %v2077 = vrot.slane %v2076, 4
        %v2078 = vmax.f32 %v2076, %v2077
        %v2079 = vrot.slane %v2078, 2
        %v2080 = vmax.f32 %v2078, %v2079
        %v2081 = vrot.slane %v2080, 1
        %v2082 = vmax.f32 %v2080, %v2081
        %v2083 = vsel %vm613, %v2016, -inf
        %v2084 = vmax.f32 %v2015, %v2083
        %v2085 = vrot.slane %v2084, 4
        %v2086 = vmax.f32 %v2084, %v2085
        %v2087 = vrot.slane %v2086, 2
        %v2088 = vmax.f32 %v2086, %v2087
        %v2089 = vrot.slane %v2088, 1
        %v2090 = vmax.f32 %v2088, %v2089
        %v2091 = vsel %vm613, %v2023, -inf
        %v2092 = vmax.f32 %v2022, %v2091
        %v2093 = vrot.slane %v2092, 4
        %v2094 = vmax.f32 %v2092, %v2093
        %v2095 = vrot.slane %v2094, 2
        %v2096 = vmax.f32 %v2094, %v2095
        %v2097 = vrot.slane %v2096, 1
        %v2098 = vmax.f32 %v2096, %v2097
        %v2099 = vsel %vm613, %v2030, -inf
        %v2100 = vmax.f32 %v2029, %v2099
        %v2101 = vrot.slane %v2100, 4
        %v2102 = vmax.f32 %v2100, %v2101
        %v2103 = vrot.slane %v2102, 2
        %v2104 = vmax.f32 %v2102, %v2103
        %v2105 = vrot.slane %v2104, 1
        %v2106 = vmax.f32 %v2104, %v2105
        %v2107 = vsel %vm613, %v2037, -inf
        %v2108 = vmax.f32 %v2036, %v2107
        %v2109 = vrot.slane %v2108, 4
        %v2110 = vmax.f32 %v2108, %v2109
        %v2111 = vrot.slane %v2110, 2
        %v2112 = vmax.f32 %v2110, %v2111
        %v2113 = vrot.slane %v2112, 1
        %v2114 = vmax.f32 %v2112, %v2113
        %v2115 = vsel %vm613, %v2044, -inf
        %v2116 = vmax.f32 %v2043, %v2115
        %v2117 = vrot.slane %v2116, 4
        %v2118 = vmax.f32 %v2116, %v2117
        %v2119 = vrot.slane %v2118, 2
        %v2120 = vmax.f32 %v2118, %v2119
        %v2121 = vrot.slane %v2120, 1
        %v2122 = vmax.f32 %v2120, %v2121
        %v2123 = vsel %vm613, %v2051, -inf
        %v2124 = vmax.f32 %v2050, %v2123
        %v2125 = vrot.slane %v2124, 4
        %v2126 = vmax.f32 %v2124, %v2125
        %v2127 = vrot.slane %v2126, 2
        %v2128 = vmax.f32 %v2126, %v2127
        %v2129 = vrot.slane %v2128, 1
        %v2130 = vmax.f32 %v2128, %v2129
        %v2131 = vsel %vm613, %v2058, -inf
        %v2132 = vmax.f32 %v2057, %v2131
        %v2133 = vrot.slane %v2132, 4
        %v2134 = vmax.f32 %v2132, %v2133
        %v2135 = vrot.slane %v2134, 2
        %v2136 = vmax.f32 %v2134, %v2135
        %v2137 = vrot.slane %v2136, 1
        %v2138 = vmax.f32 %v2136, %v2137
        %v2139 = vld [vmem:[%s5] sm:$0xff]
        %v2140 = vld [vmem:[%s5 + $0x8] sm:$0xff]
        %v2141 = vld [vmem:[%s5 + $0x10] sm:$0xff]
        %v2142 = vld [vmem:[%s5 + $0x18] sm:$0xff]
        %v2143 = vld [vmem:[%s5 + $0x20] sm:$0xff]
        %v2144 = vld [vmem:[%s5 + $0x28] sm:$0xff]
        %v2145 = vld [vmem:[%s5 + $0x30] sm:$0xff]
        %v2146 = vld [vmem:[%s5 + $0x38] sm:$0xff]
        %v2147 = vld [vmem:[%s5 + $0x40] sm:$0xff]
        %v2148 = vld [vmem:[%s5 + $0x48] sm:$0xff]
        %v2149 = vld [vmem:[%s5 + $0x50] sm:$0xff]
        %v2150 = vld [vmem:[%s5 + $0x58] sm:$0xff]
        %v2151 = vld [vmem:[%s5 + $0x60] sm:$0xff]
        %v2152 = vld [vmem:[%s5 + $0x68] sm:$0xff]
        %v2153 = vld [vmem:[%s5 + $0x70] sm:$0xff]
        %v2154 = vld [vmem:[%s5 + $0x78] sm:$0xff]
        %v2155 = vld [vmem:[%s5 + $0x80] sm:$0xff]
        %v2156 = vld [vmem:[%s5 + $0x88] sm:$0xff]
        %v2157 = vld [vmem:[%s5 + $0x90] sm:$0xff]
        %v2158 = vld [vmem:[%s5 + $0x98] sm:$0xff]
        %v2159 = vld [vmem:[%s5 + $0xa0] sm:$0xff]
        %v2160 = vld [vmem:[%s5 + $0xa8] sm:$0xff]
        %v2161 = vld [vmem:[%s5 + $0xb0] sm:$0xff]
        %v2162 = vld [vmem:[%s5 + $0xb8] sm:$0xff]
        %v2163 = vld [vmem:[%s5 + $0xc0] sm:$0xff]
        %v2164 = vld [vmem:[%s5 + $0xc8] sm:$0xff]
        %v2165 = vld [vmem:[%s5 + $0xd0] sm:$0xff]
        %v2166 = vld [vmem:[%s5 + $0xd8] sm:$0xff]
        %v2167 = vld [vmem:[%s5 + $0xe0] sm:$0xff]
        %v2168 = vld [vmem:[%s5 + $0xe8] sm:$0xff]
        %v2169 = vld [vmem:[%s5 + $0xf0] sm:$0xff]
        %v2170 = vld [vmem:[%s5 + $0xf8] sm:$0xff]
        %v2171 = vld [vmem:[%s5 + $0x100] sm:$0xff]
        %v2172 = vld [vmem:[%s5 + $0x108] sm:$0xff]
        %v2173 = vld [vmem:[%s5 + $0x110] sm:$0xff]
        %v2174 = vld [vmem:[%s5 + $0x118] sm:$0xff]
        %v2175 = vld [vmem:[%s5 + $0x120] sm:$0xff]
        %v2176 = vld [vmem:[%s5 + $0x128] sm:$0xff]
        %v2177 = vld [vmem:[%s5 + $0x130] sm:$0xff]
        %v2178 = vld [vmem:[%s5 + $0x138] sm:$0xff]
        %v2179 = vld [vmem:[%s5 + $0x140] sm:$0xff]
        %v2180 = vld [vmem:[%s5 + $0x148] sm:$0xff]
        %v2181 = vld [vmem:[%s5 + $0x150] sm:$0xff]
        %v2182 = vld [vmem:[%s5 + $0x158] sm:$0xff]
        %v2183 = vld [vmem:[%s5 + $0x160] sm:$0xff]
        %v2184 = vld [vmem:[%s5 + $0x168] sm:$0xff]
        %v2185 = vld [vmem:[%s5 + $0x170] sm:$0xff]
        %v2186 = vld [vmem:[%s5 + $0x178] sm:$0xff]
        %v2187 = vld [vmem:[%s5 + $0x180] sm:$0xff]
        %v2188 = vld [vmem:[%s5 + $0x188] sm:$0xff]
        %v2189 = vld [vmem:[%s5 + $0x190] sm:$0xff]
        %v2190 = vld [vmem:[%s5 + $0x198] sm:$0xff]
        %v2191 = vld [vmem:[%s5 + $0x1a0] sm:$0xff]
        %v2192 = vld [vmem:[%s5 + $0x1a8] sm:$0xff]
        %v2193 = vld [vmem:[%s5 + $0x1b0] sm:$0xff]
        %v2194 = vld [vmem:[%s5 + $0x1b8] sm:$0xff]
        %v2195 = vld [vmem:[%s5 + $0x1c0] sm:$0xff]
        %v2196 = vld [vmem:[%s5 + $0x1c8] sm:$0xff]
        %v2197 = vld [vmem:[%s5 + $0x1d0] sm:$0xff]
        %v2198 = vld [vmem:[%s5 + $0x1d8] sm:$0xff]
        %v2199 = vld [vmem:[%s5 + $0x1e0] sm:$0xff]
        %v2200 = vld [vmem:[%s5 + $0x1e8] sm:$0xff]
        %v2201 = vld [vmem:[%s5 + $0x1f0] sm:$0xff]
        %v2202 = vld [vmem:[%s5 + $0x1f8] sm:$0xff]
        %v2203 = vld [vmem:[%s5 + $0x200] sm:$0xff]
        %v2204 = vld [vmem:[%s5 + $0x208] sm:$0xff]
        %v2205 = vld [vmem:[%s5 + $0x210] sm:$0xff]
        %v2206 = vld [vmem:[%s5 + $0x218] sm:$0xff]
        %v2207 = vld [vmem:[%s5 + $0x220] sm:$0xff]
        %v2208 = vld [vmem:[%s5 + $0x228] sm:$0xff]
        %v2209 = vld [vmem:[%s5 + $0x230] sm:$0xff]
        %v2210 = vld [vmem:[%s5 + $0x238] sm:$0xff]
        %v2211 = vld [vmem:[%s5 + $0x240] sm:$0xff]
        %v2212 = vld [vmem:[%s5 + $0x248] sm:$0xff]
        %v2213 = vld [vmem:[%s5 + $0x250] sm:$0xff]
        %v2214 = vld [vmem:[%s5 + $0x258] sm:$0xff]
        %v2215 = vld [vmem:[%s5 + $0x260] sm:$0xff]
        %v2216 = vld [vmem:[%s5 + $0x268] sm:$0xff]
        %v2217 = vld [vmem:[%s5 + $0x270] sm:$0xff]
        %v2218 = vld [vmem:[%s5 + $0x278] sm:$0xff]
        %v2219 = vld [vmem:[%s5 + $0x280] sm:$0xff]
        %v2220 = vld [vmem:[%s5 + $0x288] sm:$0xff]
        %v2221 = vld [vmem:[%s5 + $0x290] sm:$0xff]
        %v2222 = vld [vmem:[%s5 + $0x298] sm:$0xff]
        %v2223 = vld [vmem:[%s5 + $0x2a0] sm:$0xff]
        %v2224 = vld [vmem:[%s5 + $0x2a8] sm:$0xff]
        %v2225 = vld [vmem:[%s5 + $0x2b0] sm:$0xff]
        %v2226 = vld [vmem:[%s5 + $0x2b8] sm:$0xff]
        %v2227 = vld [vmem:[%s5 + $0x2c0] sm:$0xff]
        %v2228 = vld [vmem:[%s5 + $0x2c8] sm:$0xff]
        %v2229 = vld [vmem:[%s5 + $0x2d0] sm:$0xff]
        %v2230 = vld [vmem:[%s5 + $0x2d8] sm:$0xff]
        %v2231 = vld [vmem:[%s5 + $0x2e0] sm:$0xff]
        %v2232 = vld [vmem:[%s5 + $0x2e8] sm:$0xff]
        %v2233 = vld [vmem:[%s5 + $0x2f0] sm:$0xff]
        %v2234 = vld [vmem:[%s5 + $0x2f8] sm:$0xff]
        %v2235 = vld [vmem:[%s5 + $0x300] sm:$0xff]
        %v2236 = vld [vmem:[%s5 + $0x308] sm:$0xff]
        %v2237 = vld [vmem:[%s5 + $0x310] sm:$0xff]
        %v2238 = vld [vmem:[%s5 + $0x318] sm:$0xff]
        %v2239 = vld [vmem:[%s5 + $0x320] sm:$0xff]
        %v2240 = vld [vmem:[%s5 + $0x328] sm:$0xff]
        %v2241 = vld [vmem:[%s5 + $0x330] sm:$0xff]
        %v2242 = vld [vmem:[%s5 + $0x338] sm:$0xff]
        %v2243 = vld [vmem:[%s5 + $0x340] sm:$0xff]
        %v2244 = vld [vmem:[%s5 + $0x348] sm:$0xff]
        %v2245 = vld [vmem:[%s5 + $0x350] sm:$0xff]
        %v2246 = vld [vmem:[%s5 + $0x358] sm:$0xff]
        %v2247 = vld [vmem:[%s5 + $0x360] sm:$0xff]
        %v2248 = vld [vmem:[%s5 + $0x368] sm:$0xff]
        %v2249 = vld [vmem:[%s5 + $0x370] sm:$0xff]
        %v2250 = vld [vmem:[%s5 + $0x378] sm:$0xff]
        %v2251 = vld [vmem:[%s5 + $0x380] sm:$0xff]
        %v2252 = vld [vmem:[%s5 + $0x388] sm:$0xff]
        %v2253 = vld [vmem:[%s5 + $0x390] sm:$0xff]
        %v2254 = vld [vmem:[%s5 + $0x398] sm:$0xff]
        %v2255 = vld [vmem:[%s5 + $0x3a0] sm:$0xff]
        %v2256 = vld [vmem:[%s5 + $0x3a8] sm:$0xff]
        %v2257 = vld [vmem:[%s5 + $0x3b0] sm:$0xff]
        %v2258 = vld [vmem:[%s5 + $0x3b8] sm:$0xff]
        %v2259 = vld [vmem:[%s5 + $0x3c0] sm:$0xff]
        %v2260 = vld [vmem:[%s5 + $0x3c8] sm:$0xff]
        %v2261 = vld [vmem:[%s5 + $0x3d0] sm:$0xff]
        %v2262 = vld [vmem:[%s5 + $0x3d8] sm:$0xff]
        %v2263 = vld [vmem:[%s5 + $0x3e0] sm:$0xff]
        %v2264 = vld [vmem:[%s5 + $0x3e8] sm:$0xff]
        %v2265 = vld [vmem:[%s5 + $0x3f0] sm:$0xff]
        %v2266 = vld [vmem:[%s5 + $0x3f8] sm:$0xff]
        %v2267 = vpack.c.bf16 %v2082, %v2082
        %v2268 = vpack.c.bf16 %v2090, %v2090
        %v2269 = vpack.c.bf16 %v2098, %v2098
        %v2270 = vpack.c.bf16 %v2106, %v2106
        %v2271 = vpack.c.bf16 %v2114, %v2114
        %v2272 = vpack.c.bf16 %v2122, %v2122
        %v2273 = vpack.c.bf16 %v2130, %v2130
        %v2274 = vpack.c.bf16 %v2138, %v2138
        %v2275 = vld [vmem:[%s6] sm:$0x3]
        %v2404 = vunpack.c.l.b16 %v2139
        %v2405 = vunpack.c.h.b16 %v2139
        %v2406 = vunpack.c.l.b16 %v2140
        %v2407 = vunpack.c.h.b16 %v2140
        %v2408 = vunpack.c.l.b16 %v2141
        %v2409 = vunpack.c.h.b16 %v2141
        %v2410 = vunpack.c.l.b16 %v2142
        %v2411 = vunpack.c.h.b16 %v2142
        %v2412 = vunpack.c.l.b16 %v2143
        %v2413 = vunpack.c.h.b16 %v2143
        %v2414 = vunpack.c.l.b16 %v2144
        %v2415 = vunpack.c.h.b16 %v2144
        %v2416 = vunpack.c.l.b16 %v2145
        %v2417 = vunpack.c.h.b16 %v2145
        %v2418 = vunpack.c.l.b16 %v2146
        %v2419 = vunpack.c.h.b16 %v2146
        %v2420 = vunpack.c.l.b16 %v2147
        %v2421 = vunpack.c.h.b16 %v2147
        %v2422 = vunpack.c.l.b16 %v2148
        %v2423 = vunpack.c.h.b16 %v2148
        %v2424 = vunpack.c.l.b16 %v2149
        %v2425 = vunpack.c.h.b16 %v2149
        %v2426 = vunpack.c.l.b16 %v2150
        %v2427 = vunpack.c.h.b16 %v2150
        %v2428 = vunpack.c.l.b16 %v2151
        %v2429 = vunpack.c.h.b16 %v2151
        %v2430 = vunpack.c.l.b16 %v2152
        %v2431 = vunpack.c.h.b16 %v2152
        %v2432 = vunpack.c.l.b16 %v2153
        %v2433 = vunpack.c.h.b16 %v2153
        %v2434 = vunpack.c.l.b16 %v2154
        %v2435 = vunpack.c.h.b16 %v2154
        %v2436 = vunpack.c.l.b16 %v2155
        %v2437 = vunpack.c.h.b16 %v2155
        %v2438 = vunpack.c.l.b16 %v2156
        %v2439 = vunpack.c.h.b16 %v2156
        %v2440 = vunpack.c.l.b16 %v2157
        %v2441 = vunpack.c.h.b16 %v2157
        %v2442 = vunpack.c.l.b16 %v2158
        %v2443 = vunpack.c.h.b16 %v2158
        %v2444 = vunpack.c.l.b16 %v2159
        %v2445 = vunpack.c.h.b16 %v2159
        %v2446 = vunpack.c.l.b16 %v2160
        %v2447 = vunpack.c.h.b16 %v2160
        %v2448 = vunpack.c.l.b16 %v2161
        %v2449 = vunpack.c.h.b16 %v2161
        %v2450 = vunpack.c.l.b16 %v2162
        %v2451 = vunpack.c.h.b16 %v2162
        %v2452 = vunpack.c.l.b16 %v2163
        %v2453 = vunpack.c.h.b16 %v2163
        %v2454 = vunpack.c.l.b16 %v2164
        %v2455 = vunpack.c.h.b16 %v2164
        %v2456 = vunpack.c.l.b16 %v2165
        %v2457 = vunpack.c.h.b16 %v2165
        %v2458 = vunpack.c.l.b16 %v2166
        %v2459 = vunpack.c.h.b16 %v2166
        %v2460 = vunpack.c.l.b16 %v2167
        %v2461 = vunpack.c.h.b16 %v2167
        %v2462 = vunpack.c.l.b16 %v2168
        %v2463 = vunpack.c.h.b16 %v2168
        %v2464 = vunpack.c.l.b16 %v2169
        %v2465 = vunpack.c.h.b16 %v2169
        %v2466 = vunpack.c.l.b16 %v2170
        %v2467 = vunpack.c.h.b16 %v2170
        %v2468 = vunpack.c.l.b16 %v2171
        %v2469 = vunpack.c.h.b16 %v2171
        %v2470 = vunpack.c.l.b16 %v2172
        %v2471 = vunpack.c.h.b16 %v2172
        %v2472 = vunpack.c.l.b16 %v2173
        %v2473 = vunpack.c.h.b16 %v2173
        %v2474 = vunpack.c.l.b16 %v2174
        %v2475 = vunpack.c.h.b16 %v2174
        %v2476 = vunpack.c.l.b16 %v2175
        %v2477 = vunpack.c.h.b16 %v2175
        %v2478 = vunpack.c.l.b16 %v2176
        %v2479 = vunpack.c.h.b16 %v2176
        %v2480 = vunpack.c.l.b16 %v2177
        %v2481 = vunpack.c.h.b16 %v2177
        %v2482 = vunpack.c.l.b16 %v2178
        %v2483 = vunpack.c.h.b16 %v2178
        %v2484 = vunpack.c.l.b16 %v2179
        %v2485 = vunpack.c.h.b16 %v2179
        %v2486 = vunpack.c.l.b16 %v2180
        %v2487 = vunpack.c.h.b16 %v2180
        %v2488 = vunpack.c.l.b16 %v2181
        %v2489 = vunpack.c.h.b16 %v2181
        %v2490 = vunpack.c.l.b16 %v2182
        %v2491 = vunpack.c.h.b16 %v2182
        %v2492 = vunpack.c.l.b16 %v2183
        %v2493 = vunpack.c.h.b16 %v2183
        %v2494 = vunpack.c.l.b16 %v2184
        %v2495 = vunpack.c.h.b16 %v2184
        %v2496 = vunpack.c.l.b16 %v2185
        %v2497 = vunpack.c.h.b16 %v2185
        %v2498 = vunpack.c.l.b16 %v2186
        %v2499 = vunpack.c.h.b16 %v2186
        %v2500 = vunpack.c.l.b16 %v2187
        %v2501 = vunpack.c.h.b16 %v2187
        %v2502 = vunpack.c.l.b16 %v2188
        %v2503 = vunpack.c.h.b16 %v2188
        %v2504 = vunpack.c.l.b16 %v2189
        %v2505 = vunpack.c.h.b16 %v2189
        %v2506 = vunpack.c.l.b16 %v2190
        %v2507 = vunpack.c.h.b16 %v2190
        %v2508 = vunpack.c.l.b16 %v2191
        %v2509 = vunpack.c.h.b16 %v2191
        %v2510 = vunpack.c.l.b16 %v2192
        %v2511 = vunpack.c.h.b16 %v2192
        %v2512 = vunpack.c.l.b16 %v2193
        %v2513 = vunpack.c.h.b16 %v2193
        %v2514 = vunpack.c.l.b16 %v2194
        %v2515 = vunpack.c.h.b16 %v2194
        %v2516 = vunpack.c.l.b16 %v2195
        %v2517 = vunpack.c.h.b16 %v2195
        %v2518 = vunpack.c.l.b16 %v2196
        %v2519 = vunpack.c.h.b16 %v2196
        %v2520 = vunpack.c.l.b16 %v2197
        %v2521 = vunpack.c.h.b16 %v2197
        %v2522 = vunpack.c.l.b16 %v2198
        %v2523 = vunpack.c.h.b16 %v2198
        %v2524 = vunpack.c.l.b16 %v2199
        %v2525 = vunpack.c.h.b16 %v2199
        %v2526 = vunpack.c.l.b16 %v2200
        %v2527 = vunpack.c.h.b16 %v2200
        %v2528 = vunpack.c.l.b16 %v2201
        %v2529 = vunpack.c.h.b16 %v2201
        %v2530 = vunpack.c.l.b16 %v2202
        %v2531 = vunpack.c.h.b16 %v2202
        %v2532 = vunpack.c.l.b16 %v2203
        %v2533 = vunpack.c.h.b16 %v2203
        %v2534 = vunpack.c.l.b16 %v2204
        %v2535 = vunpack.c.h.b16 %v2204
        %v2536 = vunpack.c.l.b16 %v2205
        %v2537 = vunpack.c.h.b16 %v2205
        %v2538 = vunpack.c.l.b16 %v2206
        %v2539 = vunpack.c.h.b16 %v2206
        %v2540 = vunpack.c.l.b16 %v2207
        %v2541 = vunpack.c.h.b16 %v2207
        %v2542 = vunpack.c.l.b16 %v2208
        %v2543 = vunpack.c.h.b16 %v2208
        %v2544 = vunpack.c.l.b16 %v2209
        %v2545 = vunpack.c.h.b16 %v2209
        %v2546 = vunpack.c.l.b16 %v2210
        %v2547 = vunpack.c.h.b16 %v2210
        %v2548 = vunpack.c.l.b16 %v2211
        %v2549 = vunpack.c.h.b16 %v2211
        %v2550 = vunpack.c.l.b16 %v2212
        %v2551 = vunpack.c.h.b16 %v2212
        %v2552 = vunpack.c.l.b16 %v2213
        %v2553 = vunpack.c.h.b16 %v2213
        %v2554 = vunpack.c.l.b16 %v2214
        %v2555 = vunpack.c.h.b16 %v2214
        %v2556 = vunpack.c.l.b16 %v2215
        %v2557 = vunpack.c.h.b16 %v2215
        %v2558 = vunpack.c.l.b16 %v2216
        %v2559 = vunpack.c.h.b16 %v2216
        %v2560 = vunpack.c.l.b16 %v2217
        %v2561 = vunpack.c.h.b16 %v2217
        %v2562 = vunpack.c.l.b16 %v2218
        %v2563 = vunpack.c.h.b16 %v2218
        %v2564 = vunpack.c.l.b16 %v2219
        %v2565 = vunpack.c.h.b16 %v2219
        %v2566 = vunpack.c.l.b16 %v2220
        %v2567 = vunpack.c.h.b16 %v2220
        %v2568 = vunpack.c.l.b16 %v2221
        %v2569 = vunpack.c.h.b16 %v2221
        %v2570 = vunpack.c.l.b16 %v2222
        %v2571 = vunpack.c.h.b16 %v2222
        %v2572 = vunpack.c.l.b16 %v2223
        %v2573 = vunpack.c.h.b16 %v2223
        %v2574 = vunpack.c.l.b16 %v2224
        %v2575 = vunpack.c.h.b16 %v2224
        %v2576 = vunpack.c.l.b16 %v2225
        %v2577 = vunpack.c.h.b16 %v2225
        %v2578 = vunpack.c.l.b16 %v2226
        %v2579 = vunpack.c.h.b16 %v2226
        %v2580 = vunpack.c.l.b16 %v2227
        %v2581 = vunpack.c.h.b16 %v2227
        %v2582 = vunpack.c.l.b16 %v2228
        %v2583 = vunpack.c.h.b16 %v2228
        %v2584 = vunpack.c.l.b16 %v2229
        %v2585 = vunpack.c.h.b16 %v2229
        %v2586 = vunpack.c.l.b16 %v2230
        %v2587 = vunpack.c.h.b16 %v2230
        %v2588 = vunpack.c.l.b16 %v2231
        %v2589 = vunpack.c.h.b16 %v2231
        %v2590 = vunpack.c.l.b16 %v2232
        %v2591 = vunpack.c.h.b16 %v2232
        %v2592 = vunpack.c.l.b16 %v2233
        %v2593 = vunpack.c.h.b16 %v2233
        %v2594 = vunpack.c.l.b16 %v2234
        %v2595 = vunpack.c.h.b16 %v2234
        %v2596 = vunpack.c.l.b16 %v2235
        %v2597 = vunpack.c.h.b16 %v2235
        %v2598 = vunpack.c.l.b16 %v2236
        %v2599 = vunpack.c.h.b16 %v2236
        %v2600 = vunpack.c.l.b16 %v2237
        %v2601 = vunpack.c.h.b16 %v2237
        %v2602 = vunpack.c.l.b16 %v2238
        %v2603 = vunpack.c.h.b16 %v2238
        %v2604 = vunpack.c.l.b16 %v2239
        %v2605 = vunpack.c.h.b16 %v2239
        %v2606 = vunpack.c.l.b16 %v2240
        %v2607 = vunpack.c.h.b16 %v2240
        %v2608 = vunpack.c.l.b16 %v2241
        %v2609 = vunpack.c.h.b16 %v2241
        %v2610 = vunpack.c.l.b16 %v2242
        %v2611 = vunpack.c.h.b16 %v2242
        %v2612 = vunpack.c.l.b16 %v2243
        %v2613 = vunpack.c.h.b16 %v2243
        %v2614 = vunpack.c.l.b16 %v2244
        %v2615 = vunpack.c.h.b16 %v2244
        %v2616 = vunpack.c.l.b16 %v2245
        %v2617 = vunpack.c.h.b16 %v2245
        %v2618 = vunpack.c.l.b16 %v2246
        %v2619 = vunpack.c.h.b16 %v2246
        %v2620 = vunpack.c.l.b16 %v2247
        %v2621 = vunpack.c.h.b16 %v2247
        %v2622 = vunpack.c.l.b16 %v2248
        %v2623 = vunpack.c.h.b16 %v2248
        %v2624 = vunpack.c.l.b16 %v2249
        %v2625 = vunpack.c.h.b16 %v2249
        %v2626 = vunpack.c.l.b16 %v2250
        %v2627 = vunpack.c.h.b16 %v2250
        %v2628 = vunpack.c.l.b16 %v2251
        %v2629 = vunpack.c.h.b16 %v2251
        %v2630 = vunpack.c.l.b16 %v2252
        %v2631 = vunpack.c.h.b16 %v2252
        %v2632 = vunpack.c.l.b16 %v2253
        %v2633 = vunpack.c.h.b16 %v2253
        %v2634 = vunpack.c.l.b16 %v2254
        %v2635 = vunpack.c.h.b16 %v2254
        %v2636 = vunpack.c.l.b16 %v2255
        %v2637 = vunpack.c.h.b16 %v2255
        %v2638 = vunpack.c.l.b16 %v2256
        %v2639 = vunpack.c.h.b16 %v2256
        %v2640 = vunpack.c.l.b16 %v2257
        %v2641 = vunpack.c.h.b16 %v2257
        %v2642 = vunpack.c.l.b16 %v2258
        %v2643 = vunpack.c.h.b16 %v2258
        %v2644 = vunpack.c.l.b16 %v2259
        %v2645 = vunpack.c.h.b16 %v2259
        %v2646 = vunpack.c.l.b16 %v2260
        %v2647 = vunpack.c.h.b16 %v2260
        %v2648 = vunpack.c.l.b16 %v2261
        %v2649 = vunpack.c.h.b16 %v2261
        %v2650 = vunpack.c.l.b16 %v2262
        %v2651 = vunpack.c.h.b16 %v2262
        %v2652 = vunpack.c.l.b16 %v2263
        %v2653 = vunpack.c.h.b16 %v2263
        %v2654 = vunpack.c.l.b16 %v2264
        %v2655 = vunpack.c.h.b16 %v2264
        %v2656 = vunpack.c.l.b16 %v2265
        %v2657 = vunpack.c.h.b16 %v2265
        %v2658 = vunpack.c.l.b16 %v2266
        %v2659 = vunpack.c.h.b16 %v2266
        %v2660 = vpack.c.b16 %v2406, %v2404
        %v2661 = vpack.c.b16 %v2407, %v2405
        %v2662 = vpack.c.b16 %v2410, %v2408
        %v2663 = vpack.c.b16 %v2411, %v2409
        %v2664 = vpack.c.b16 %v2414, %v2412
        %v2665 = vpack.c.b16 %v2415, %v2413
        %v2666 = vpack.c.b16 %v2418, %v2416
        %v2667 = vpack.c.b16 %v2419, %v2417
        %v2668 = vpack.c.b16 %v2422, %v2420
        %v2669 = vpack.c.b16 %v2423, %v2421
        %v2670 = vpack.c.b16 %v2426, %v2424
        %v2671 = vpack.c.b16 %v2427, %v2425
        %v2672 = vpack.c.b16 %v2430, %v2428
        %v2673 = vpack.c.b16 %v2431, %v2429
        %v2674 = vpack.c.b16 %v2434, %v2432
        %v2675 = vpack.c.b16 %v2435, %v2433
        %v2676 = vpack.c.b16 %v2438, %v2436
        %v2677 = vpack.c.b16 %v2439, %v2437
        %v2678 = vpack.c.b16 %v2442, %v2440
        %v2679 = vpack.c.b16 %v2443, %v2441
        %v2680 = vpack.c.b16 %v2446, %v2444
        %v2681 = vpack.c.b16 %v2447, %v2445
        %v2682 = vpack.c.b16 %v2450, %v2448
        %v2683 = vpack.c.b16 %v2451, %v2449
        %v2684 = vpack.c.b16 %v2454, %v2452
        %v2685 = vpack.c.b16 %v2455, %v2453
        %v2686 = vpack.c.b16 %v2458, %v2456
        %v2687 = vpack.c.b16 %v2459, %v2457
        %v2688 = vpack.c.b16 %v2462, %v2460
        %v2689 = vpack.c.b16 %v2463, %v2461
        %v2690 = vpack.c.b16 %v2466, %v2464
        %v2691 = vpack.c.b16 %v2467, %v2465
        %v2692 = vpack.c.b16 %v2470, %v2468
        %v2693 = vpack.c.b16 %v2471, %v2469
        %v2694 = vpack.c.b16 %v2474, %v2472
        %v2695 = vpack.c.b16 %v2475, %v2473
        %v2696 = vpack.c.b16 %v2478, %v2476
        %v2697 = vpack.c.b16 %v2479, %v2477
        %v2698 = vpack.c.b16 %v2482, %v2480
        %v2699 = vpack.c.b16 %v2483, %v2481
        %v2700 = vpack.c.b16 %v2486, %v2484
        %v2701 = vpack.c.b16 %v2487, %v2485
        %v2702 = vpack.c.b16 %v2490, %v2488
        %v2703 = vpack.c.b16 %v2491, %v2489
        %v2704 = vpack.c.b16 %v2494, %v2492
        %v2705 = vpack.c.b16 %v2495, %v2493
        %v2706 = vpack.c.b16 %v2498, %v2496
        %v2707 = vpack.c.b16 %v2499, %v2497
        %v2708 = vpack.c.b16 %v2502, %v2500
        %v2709 = vpack.c.b16 %v2503, %v2501
        %v2710 = vpack.c.b16 %v2506, %v2504
        %v2711 = vpack.c.b16 %v2507, %v2505
        %v2712 = vpack.c.b16 %v2510, %v2508
        %v2713 = vpack.c.b16 %v2511, %v2509
        %v2714 = vpack.c.b16 %v2514, %v2512
        %v2715 = vpack.c.b16 %v2515, %v2513
        %v2716 = vpack.c.b16 %v2518, %v2516
        %v2717 = vpack.c.b16 %v2519, %v2517
        %v2718 = vpack.c.b16 %v2522, %v2520
        %v2719 = vpack.c.b16 %v2523, %v2521
        %v2720 = vpack.c.b16 %v2526, %v2524
        %v2721 = vpack.c.b16 %v2527, %v2525
        %v2722 = vpack.c.b16 %v2530, %v2528
        %v2723 = vpack.c.b16 %v2531, %v2529
        %v2724 = vpack.c.b16 %v2534, %v2532
        %v2725 = vpack.c.b16 %v2535, %v2533
        %v2726 = vpack.c.b16 %v2538, %v2536
        %v2727 = vpack.c.b16 %v2539, %v2537
        %v2728 = vpack.c.b16 %v2542, %v2540
        %v2729 = vpack.c.b16 %v2543, %v2541
        %v2730 = vpack.c.b16 %v2546, %v2544
        %v2731 = vpack.c.b16 %v2547, %v2545
        %v2732 = vpack.c.b16 %v2550, %v2548
        %v2733 = vpack.c.b16 %v2551, %v2549
        %v2734 = vpack.c.b16 %v2554, %v2552
        %v2735 = vpack.c.b16 %v2555, %v2553
        %v2736 = vpack.c.b16 %v2558, %v2556
        %v2737 = vpack.c.b16 %v2559, %v2557
        %v2738 = vpack.c.b16 %v2562, %v2560
        %v2739 = vpack.c.b16 %v2563, %v2561
        %v2740 = vpack.c.b16 %v2566, %v2564
        %v2741 = vpack.c.b16 %v2567, %v2565
        %v2742 = vpack.c.b16 %v2570, %v2568
        %v2743 = vpack.c.b16 %v2571, %v2569
        %v2744 = vpack.c.b16 %v2574, %v2572
        %v2745 = vpack.c.b16 %v2575, %v2573
        %v2746 = vpack.c.b16 %v2578, %v2576
        %v2747 = vpack.c.b16 %v2579, %v2577
        %v2748 = vpack.c.b16 %v2582, %v2580
        %v2749 = vpack.c.b16 %v2583, %v2581
        %v2750 = vpack.c.b16 %v2586, %v2584
        %v2751 = vpack.c.b16 %v2587, %v2585
        %v2752 = vpack.c.b16 %v2590, %v2588
        %v2753 = vpack.c.b16 %v2591, %v2589
        %v2754 = vpack.c.b16 %v2594, %v2592
        %v2755 = vpack.c.b16 %v2595, %v2593
        %v2756 = vpack.c.b16 %v2598, %v2596
        %v2757 = vpack.c.b16 %v2599, %v2597
        %v2758 = vpack.c.b16 %v2602, %v2600
        %v2759 = vpack.c.b16 %v2603, %v2601
        %v2760 = vpack.c.b16 %v2606, %v2604
        %v2761 = vpack.c.b16 %v2607, %v2605
        %v2762 = vpack.c.b16 %v2610, %v2608
        %v2763 = vpack.c.b16 %v2611, %v2609
        %v2764 = vpack.c.b16 %v2614, %v2612
        %v2765 = vpack.c.b16 %v2615, %v2613
        %v2766 = vpack.c.b16 %v2618, %v2616
        %v2767 = vpack.c.b16 %v2619, %v2617
        %v2768 = vpack.c.b16 %v2622, %v2620
        %v2769 = vpack.c.b16 %v2623, %v2621
        %v2770 = vpack.c.b16 %v2626, %v2624
        %v2771 = vpack.c.b16 %v2627, %v2625
        %v2772 = vpack.c.b16 %v2630, %v2628
        %v2773 = vpack.c.b16 %v2631, %v2629
        %v2774 = vpack.c.b16 %v2634, %v2632
        %v2775 = vpack.c.b16 %v2635, %v2633
        %v2776 = vpack.c.b16 %v2638, %v2636
        %v2777 = vpack.c.b16 %v2639, %v2637
        %v2778 = vpack.c.b16 %v2642, %v2640
        %v2779 = vpack.c.b16 %v2643, %v2641
        %v2780 = vpack.c.b16 %v2646, %v2644
        %v2781 = vpack.c.b16 %v2647, %v2645
        %v2782 = vpack.c.b16 %v2650, %v2648
        %v2783 = vpack.c.b16 %v2651, %v2649
        %v2784 = vpack.c.b16 %v2654, %v2652
        %v2785 = vpack.c.b16 %v2655, %v2653
        %v2786 = vpack.c.b16 %v2658, %v2656
        %v2787 = vpack.c.b16 %v2659, %v2657
        %v2917 = vperm.slane %v2275, 0
        %v2918 = vperm.slane %v2275, 1
        %2921 = vmatpush.bf16.msra.mxu0 %v2674
        %2922 = vmatpush.bf16.msra.mxu0 %v2672
        %2923 = vmatpush.bf16.msra.mxu0 %v2670
        %2924 = vmatpush.bf16.msra.mxu0 %v2668
        %2925 = vmatpush.bf16.msra.mxu0 %v2666
        %2926 = vmatpush.bf16.msra.mxu0 %v2664
        %2927 = vmatpush.bf16.msra.mxu0 %v2662
        %2928 = vmatpush.bf16.msra.mxu0 %v2660
        %2929 = vmatmul.bf16.gmra.mxu0 %v2267
        %v2930 = vpop.f32.mrf.mxu0
        %v2931 = vadd.f32 %v2917, %v2930
        %v2932 = vpop.f32.mrf.mxu0
        %2933 = vdwg.mxu0
        %2934 = vmatpush.bf16.msra.mxu0 %v2690
        %2935 = vmatpush.bf16.msra.mxu0 %v2688
        %2936 = vmatpush.bf16.msra.mxu0 %v2686
        %2937 = vmatpush.bf16.msra.mxu0 %v2684
        %2938 = vmatpush.bf16.msra.mxu0 %v2682
        %2939 = vmatpush.bf16.msra.mxu0 %v2680
        %2940 = vmatpush.bf16.msra.mxu0 %v2678
        %2941 = vmatpush.bf16.msra.mxu0 %v2676
        %2942 = vmatmul.bf16.gmra.mxu0 %v2268
        %v2943 = vpop.f32.mrf.mxu0
        %v2944 = vadd.f32 %v2931, %v2943
        %v2945 = vpop.f32.mrf.mxu0
        %2946 = vdwg.mxu0
        %2947 = vmatpush.bf16.msra.mxu0 %v2706
        %2948 = vmatpush.bf16.msra.mxu0 %v2704
        %2949 = vmatpush.bf16.msra.mxu0 %v2702
        %2950 = vmatpush.bf16.msra.mxu0 %v2700
        %2951 = vmatpush.bf16.msra.mxu0 %v2698
        %2952 = vmatpush.bf16.msra.mxu0 %v2696
        %2953 = vmatpush.bf16.msra.mxu0 %v2694
        %2954 = vmatpush.bf16.msra.mxu0 %v2692
        %2955 = vmatmul.bf16.gmra.mxu0 %v2269
        %v2956 = vpop.f32.mrf.mxu0
        %v2957 = vadd.f32 %v2944, %v2956
        %v2958 = vpop.f32.mrf.mxu0
        %2959 = vdwg.mxu0
        %2960 = vmatpush.bf16.msra.mxu0 %v2722
        %2961 = vmatpush.bf16.msra.mxu0 %v2720
        %2962 = vmatpush.bf16.msra.mxu0 %v2718
        %2963 = vmatpush.bf16.msra.mxu0 %v2716
        %2964 = vmatpush.bf16.msra.mxu0 %v2714
        %2965 = vmatpush.bf16.msra.mxu0 %v2712
        %2966 = vmatpush.bf16.msra.mxu0 %v2710
        %2967 = vmatpush.bf16.msra.mxu0 %v2708
        %2968 = vmatmul.bf16.gmra.mxu0 %v2270
        %v2969 = vpop.f32.mrf.mxu0
        %v2970 = vadd.f32 %v2957, %v2969
        %v2971 = vpop.f32.mrf.mxu0
        %2972 = vdwg.mxu0
        %2973 = vmatpush.bf16.msra.mxu0 %v2738
        %2974 = vmatpush.bf16.msra.mxu0 %v2736
        %2975 = vmatpush.bf16.msra.mxu0 %v2734
        %2976 = vmatpush.bf16.msra.mxu0 %v2732
        %2977 = vmatpush.bf16.msra.mxu0 %v2730
        %2978 = vmatpush.bf16.msra.mxu0 %v2728
        %2979 = vmatpush.bf16.msra.mxu0 %v2726
        %2980 = vmatpush.bf16.msra.mxu0 %v2724
        %2981 = vmatmul.bf16.gmra.mxu0 %v2271
        %v2982 = vpop.f32.mrf.mxu0
        %v2983 = vadd.f32 %v2970, %v2982
        %v2984 = vpop.f32.mrf.mxu0
        %2985 = vdwg.mxu0
        %2986 = vmatpush.bf16.msra.mxu0 %v2754
        %2987 = vmatpush.bf16.msra.mxu0 %v2752
        %2988 = vmatpush.bf16.msra.mxu0 %v2750
        %2989 = vmatpush.bf16.msra.mxu0 %v2748
        %2990 = vmatpush.bf16.msra.mxu0 %v2746
        %2991 = vmatpush.bf16.msra.mxu0 %v2744
        %2992 = vmatpush.bf16.msra.mxu0 %v2742
        %2993 = vmatpush.bf16.msra.mxu0 %v2740
        %2994 = vmatmul.bf16.gmra.mxu0 %v2272
        %v2995 = vpop.f32.mrf.mxu0
        %v2996 = vadd.f32 %v2983, %v2995
        %v2997 = vpop.f32.mrf.mxu0
        %2998 = vdwg.mxu0
        %2999 = vmatpush.bf16.msra.mxu0 %v2770
        %3000 = vmatpush.bf16.msra.mxu0 %v2768
        %3001 = vmatpush.bf16.msra.mxu0 %v2766
        %3002 = vmatpush.bf16.msra.mxu0 %v2764
        %3003 = vmatpush.bf16.msra.mxu0 %v2762
        %3004 = vmatpush.bf16.msra.mxu0 %v2760
        %3005 = vmatpush.bf16.msra.mxu0 %v2758
        %3006 = vmatpush.bf16.msra.mxu0 %v2756
        %3007 = vmatmul.bf16.gmra.mxu0 %v2273
        %v3008 = vpop.f32.mrf.mxu0
        %v3009 = vadd.f32 %v2996, %v3008
        %v3010 = vpop.f32.mrf.mxu0
        %3011 = vdwg.mxu0
        %3012 = vmatpush.bf16.msra.mxu0 %v2786
        %3013 = vmatpush.bf16.msra.mxu0 %v2784
        %3014 = vmatpush.bf16.msra.mxu0 %v2782
        %3015 = vmatpush.bf16.msra.mxu0 %v2780
        %3016 = vmatpush.bf16.msra.mxu0 %v2778
        %3017 = vmatpush.bf16.msra.mxu0 %v2776
        %3018 = vmatpush.bf16.msra.mxu0 %v2774
        %3019 = vmatpush.bf16.msra.mxu0 %v2772
        %3020 = vmatmul.bf16.gmra.mxu0 %v2274
        %v3021 = vpop.f32.mrf.mxu0
        %v3022 = vadd.f32 %v3009, %v3021
        %v3023 = vpop.f32.mrf.mxu0
        %3024 = vdwg.mxu0
        %3025 = vmatpush.bf16.msra.mxu0 %v2675
        %3026 = vmatpush.bf16.msra.mxu0 %v2673
        %3027 = vmatpush.bf16.msra.mxu0 %v2671
        %3028 = vmatpush.bf16.msra.mxu0 %v2669
        %3029 = vmatpush.bf16.msra.mxu0 %v2667
        %3030 = vmatpush.bf16.msra.mxu0 %v2665
        %3031 = vmatpush.bf16.msra.mxu0 %v2663
        %3032 = vmatpush.bf16.msra.mxu0 %v2661
        %3033 = vmatmul.bf16.gmra.mxu0 %v2267
        %v3034 = vpop.f32.mrf.mxu0
        %v3035 = vadd.f32 %v2918, %v3034
        %v3036 = vpop.f32.mrf.mxu0
        %3037 = vdwg.mxu0
        %3038 = vmatpush.bf16.msra.mxu0 %v2691
        %3039 = vmatpush.bf16.msra.mxu0 %v2689
        %3040 = vmatpush.bf16.msra.mxu0 %v2687
        %3041 = vmatpush.bf16.msra.mxu0 %v2685
        %3042 = vmatpush.bf16.msra.mxu0 %v2683
        %3043 = vmatpush.bf16.msra.mxu0 %v2681
        %3044 = vmatpush.bf16.msra.mxu0 %v2679
        %3045 = vmatpush.bf16.msra.mxu0 %v2677
        %3046 = vmatmul.bf16.gmra.mxu0 %v2268
        %v3047 = vpop.f32.mrf.mxu0
        %v3048 = vadd.f32 %v3035, %v3047
        %v3049 = vpop.f32.mrf.mxu0
        %3050 = vdwg.mxu0
        %3051 = vmatpush.bf16.msra.mxu0 %v2707
        %3052 = vmatpush.bf16.msra.mxu0 %v2705
        %3053 = vmatpush.bf16.msra.mxu0 %v2703
        %3054 = vmatpush.bf16.msra.mxu0 %v2701
        %3055 = vmatpush.bf16.msra.mxu0 %v2699
        %3056 = vmatpush.bf16.msra.mxu0 %v2697
        %3057 = vmatpush.bf16.msra.mxu0 %v2695
        %3058 = vmatpush.bf16.msra.mxu0 %v2693
        %3059 = vmatmul.bf16.gmra.mxu0 %v2269
        %v3060 = vpop.f32.mrf.mxu0
        %v3061 = vadd.f32 %v3048, %v3060
        %v3062 = vpop.f32.mrf.mxu0
        %3063 = vdwg.mxu0
        %3064 = vmatpush.bf16.msra.mxu0 %v2723
        %3065 = vmatpush.bf16.msra.mxu0 %v2721
        %3066 = vmatpush.bf16.msra.mxu0 %v2719
        %3067 = vmatpush.bf16.msra.mxu0 %v2717
        %3068 = vmatpush.bf16.msra.mxu0 %v2715
        %3069 = vmatpush.bf16.msra.mxu0 %v2713
        %3070 = vmatpush.bf16.msra.mxu0 %v2711
        %3071 = vmatpush.bf16.msra.mxu0 %v2709
        %3072 = vmatmul.bf16.gmra.mxu0 %v2270
        %v3073 = vpop.f32.mrf.mxu0
        %v3074 = vadd.f32 %v3061, %v3073
        %v3075 = vpop.f32.mrf.mxu0
        %3076 = vdwg.mxu0
        %3077 = vmatpush.bf16.msra.mxu0 %v2739
        %3078 = vmatpush.bf16.msra.mxu0 %v2737
        %3079 = vmatpush.bf16.msra.mxu0 %v2735
        %3080 = vmatpush.bf16.msra.mxu0 %v2733
        %3081 = vmatpush.bf16.msra.mxu0 %v2731
        %3082 = vmatpush.bf16.msra.mxu0 %v2729
        %3083 = vmatpush.bf16.msra.mxu0 %v2727
        %3084 = vmatpush.bf16.msra.mxu0 %v2725
        %3085 = vmatmul.bf16.gmra.mxu0 %v2271
        %v3086 = vpop.f32.mrf.mxu0
        %v3087 = vadd.f32 %v3074, %v3086
        %v3088 = vpop.f32.mrf.mxu0
        %3089 = vdwg.mxu0
        %3090 = vmatpush.bf16.msra.mxu0 %v2755
        %3091 = vmatpush.bf16.msra.mxu0 %v2753
        %3092 = vmatpush.bf16.msra.mxu0 %v2751
        %3093 = vmatpush.bf16.msra.mxu0 %v2749
        %3094 = vmatpush.bf16.msra.mxu0 %v2747
        %3095 = vmatpush.bf16.msra.mxu0 %v2745
        %3096 = vmatpush.bf16.msra.mxu0 %v2743
        %3097 = vmatpush.bf16.msra.mxu0 %v2741
        %3098 = vmatmul.bf16.gmra.mxu0 %v2272
        %v3099 = vpop.f32.mrf.mxu0
        %v3100 = vadd.f32 %v3087, %v3099
        %v3101 = vpop.f32.mrf.mxu0
        %3102 = vdwg.mxu0
        %3103 = vmatpush.bf16.msra.mxu0 %v2771
        %3104 = vmatpush.bf16.msra.mxu0 %v2769
        %3105 = vmatpush.bf16.msra.mxu0 %v2767
        %3106 = vmatpush.bf16.msra.mxu0 %v2765
        %3107 = vmatpush.bf16.msra.mxu0 %v2763
        %3108 = vmatpush.bf16.msra.mxu0 %v2761
        %3109 = vmatpush.bf16.msra.mxu0 %v2759
        %3110 = vmatpush.bf16.msra.mxu0 %v2757
        %3111 = vmatmul.bf16.gmra.mxu0 %v2273
        %v3112 = vpop.f32.mrf.mxu0
        %v3113 = vadd.f32 %v3100, %v3112
        %v3114 = vpop.f32.mrf.mxu0
        %3115 = vdwg.mxu0
        %3116 = vmatpush.bf16.msra.mxu0 %v2787
        %3117 = vmatpush.bf16.msra.mxu0 %v2785
        %3118 = vmatpush.bf16.msra.mxu0 %v2783
        %3119 = vmatpush.bf16.msra.mxu0 %v2781
        %3120 = vmatpush.bf16.msra.mxu0 %v2779
        %3121 = vmatpush.bf16.msra.mxu0 %v2777
        %3122 = vmatpush.bf16.msra.mxu0 %v2775
        %3123 = vmatpush.bf16.msra.mxu0 %v2773
        %3124 = vmatmul.bf16.gmra.mxu0 %v2274
        %v3125 = vpop.f32.mrf.mxu0
        %v3126 = vadd.f32 %v3113, %v3125
        %v3127 = vpop.f32.mrf.mxu0
        %3128 = vdwg.mxu0
        %v3129 = vmax.f32 %v3022, 0.0
        %v3130 = vmax.f32 %v3126, 0.0
        %v3131 = vld [vmem:[%s7] sm:$0xf]
        %v3132 = vld [vmem:[%s7 + $0x4] sm:$0xf]
        %v3133 = vld [vmem:[%s7 + $0x8] sm:$0xf]
        %v3134 = vld [vmem:[%s7 + $0xc] sm:$0xf]
        %v3135 = vld [vmem:[%s7 + $0x10] sm:$0xf]
        %v3136 = vld [vmem:[%s7 + $0x14] sm:$0xf]
        %v3137 = vld [vmem:[%s7 + $0x18] sm:$0xf]
        %v3138 = vld [vmem:[%s7 + $0x1c] sm:$0xf]
        %v3139 = vld [vmem:[%s7 + $0x20] sm:$0xf]
        %v3140 = vld [vmem:[%s7 + $0x24] sm:$0xf]
        %v3141 = vld [vmem:[%s7 + $0x28] sm:$0xf]
        %v3142 = vld [vmem:[%s7 + $0x2c] sm:$0xf]
        %v3143 = vld [vmem:[%s7 + $0x30] sm:$0xf]
        %v3144 = vld [vmem:[%s7 + $0x34] sm:$0xf]
        %v3145 = vld [vmem:[%s7 + $0x38] sm:$0xf]
        %v3146 = vld [vmem:[%s7 + $0x3c] sm:$0xf]
        %v3147 = vld [vmem:[%s7 + $0x40] sm:$0xf]
        %v3148 = vld [vmem:[%s7 + $0x44] sm:$0xf]
        %v3149 = vld [vmem:[%s7 + $0x48] sm:$0xf]
        %v3150 = vld [vmem:[%s7 + $0x4c] sm:$0xf]
        %v3151 = vld [vmem:[%s7 + $0x50] sm:$0xf]
        %v3152 = vld [vmem:[%s7 + $0x54] sm:$0xf]
        %v3153 = vld [vmem:[%s7 + $0x58] sm:$0xf]
        %v3154 = vld [vmem:[%s7 + $0x5c] sm:$0xf]
        %v3155 = vld [vmem:[%s7 + $0x60] sm:$0xf]
        %v3156 = vpack.c.bf16 %v3129, %v3129
        %v3157 = vpack.c.bf16 %v3130, %v3130
        %v3158 = vld [vmem:[%s8] sm:$0x1]
        %v3184 = vunpack.c.l.b16 %v3131
        %v3185 = vunpack.c.l.b16 %v3132
        %v3186 = vunpack.c.l.b16 %v3133
        %v3187 = vunpack.c.l.b16 %v3134
        %v3188 = vunpack.c.l.b16 %v3135
        %v3189 = vunpack.c.l.b16 %v3136
        %v3190 = vunpack.c.l.b16 %v3137
        %v3191 = vunpack.c.l.b16 %v3138
        %v3192 = vunpack.c.l.b16 %v3139
        %v3193 = vunpack.c.l.b16 %v3140
        %v3194 = vunpack.c.l.b16 %v3141
        %v3195 = vunpack.c.l.b16 %v3142
        %v3196 = vunpack.c.l.b16 %v3143
        %v3197 = vunpack.c.l.b16 %v3144
        %v3198 = vunpack.c.l.b16 %v3145
        %v3199 = vunpack.c.l.b16 %v3146
        %v3200 = vunpack.c.l.b16 %v3147
        %v3201 = vunpack.c.l.b16 %v3148
        %v3202 = vunpack.c.l.b16 %v3149
        %v3203 = vunpack.c.l.b16 %v3150
        %v3204 = vunpack.c.l.b16 %v3151
        %v3205 = vunpack.c.l.b16 %v3152
        %v3206 = vunpack.c.l.b16 %v3153
        %v3207 = vunpack.c.l.b16 %v3154
        %v3208 = vunpack.c.l.b16 %v3155
        %v3209 = vpack.c.b16 %v3185, %v3184
        %v3210 = vpack.c.b16 %v3187, %v3186
        %v3211 = vpack.c.b16 %v3189, %v3188
        %v3212 = vpack.c.b16 %v3191, %v3190
        %v3213 = vpack.c.b16 %v3193, %v3192
        %v3214 = vpack.c.b16 %v3195, %v3194
        %v3215 = vpack.c.b16 %v3197, %v3196
        %v3216 = vpack.c.b16 %v3199, %v3198
        %v3217 = vpack.c.b16 %v3201, %v3200
        %v3218 = vpack.c.b16 %v3203, %v3202
        %v3219 = vpack.c.b16 %v3205, %v3204
        %v3220 = vpack.c.b16 %v3207, %v3206
        %v3221 = vpack.c.b16 %v3208, %v3208
        %vm3234 = vcmask 588800
        %v3236 = vsel %vm3234, %v3157, 0
        %vm3238 = vcmask 1043456
        %v3240 = vsel %vm3238, %v3221, 0
        %3242 = vmatpush.bf16.msra.mxu0 %v3216
        %3243 = vmatpush.bf16.msra.mxu0 %v3215
        %3244 = vmatpush.bf16.msra.mxu0 %v3214
        %3245 = vmatpush.bf16.msra.mxu0 %v3213
        %3246 = vmatpush.bf16.msra.mxu0 %v3212
        %3247 = vmatpush.bf16.msra.mxu0 %v3211
        %3248 = vmatpush.bf16.msra.mxu0 %v3210
        %3249 = vmatpush.bf16.msra.mxu0 %v3209
        %3250 = vmatmul.bf16.gmra.mxu0 %v3156
        %v3251 = vpop.f32.mrf.mxu0
        %v3252 = vadd.f32 %v3158, %v3251
        %v3253 = vpop.f32.mrf.mxu0
        %3254 = vdwg.mxu0
        %3255 = vmatpush.bf16.msra.mxu0 0
        %3256 = vmatpush.bf16.msra.mxu0 0
        %3257 = vmatpush.bf16.msra.mxu0 0
        %3258 = vmatpush.bf16.msra.mxu0 %v3240
        %3259 = vmatpush.bf16.msra.mxu0 %v3220
        %3260 = vmatpush.bf16.msra.mxu0 %v3219
        %3261 = vmatpush.bf16.msra.mxu0 %v3218
        %3262 = vmatpush.bf16.msra.mxu0 %v3217
        %3263 = vmatmul.bf16.gmra.mxu0 %v3236
        %v3264 = vpop.f32.mrf.mxu0
        %v3265 = vadd.f32 %v3252, %v3264
        %v3266 = vpop.f32.mrf.mxu0
        %3267 = vdwg.mxu0
        %vm3268 = vcmask 155648
        %3269 = vst.msk [vmem:[%s411] sm:$0x1] %vm3268, %v3265
        %v3270 = vmax.f32 %v3265, 0.0
        %v3271 = vld [vmem:[%s9] sm:$0xf]
        %v3272 = vld [vmem:[%s9 + $0x4] sm:$0xf]
        %v3273 = vld [vmem:[%s9 + $0x8] sm:$0x3]
        %v3274 = vpack.c.bf16 %v3270, %v3270
        %v3275 = vld [vmem:[%s10] sm:$0x1]
        %v3279 = vunpack.c.l.b16 %v3271
        %v3280 = vunpack.c.l.b16 %v3272
        %v3281 = vunpack.c.l.b16 %v3273
        %v3282 = vpack.c.b16 %v3280, %v3279
        %v3283 = vpack.c.b16 %v3281, %v3281
        %v3286 = vsel %vm594, %v3274, 0
        %v3289 = vsel %vm613, %v3283, 0
        %3291 = vmatpush.bf16.msra.mxu0 0
        %3292 = vmatpush.bf16.msra.mxu0 0
        %3293 = vmatpush.bf16.msra.mxu0 0
        %3294 = vmatpush.bf16.msra.mxu0 0
        %3295 = vmatpush.bf16.msra.mxu0 0
        %3296 = vmatpush.bf16.msra.mxu0 0
        %3297 = vmatpush.bf16.msra.mxu0 %v3289
        %3298 = vmatpush.bf16.msra.mxu0 %v3282
        %3299 = vmatmul.bf16.gmra.mxu0 %v3286
        %v3300 = vpop.f32.mrf.mxu0
        %v3301 = vadd.f32 %v3275, %v3300
        %v3302 = vpop.f32.mrf.mxu0
        %3303 = vdwg.mxu0
        %vm3304 = vcmask 8192
        %3305 = vst.msk [vmem:[%s405] sm:$0x1] %vm3304, %v3301
        %s3306 = sand.u32 %s274, 1
        %s3307 = scalar_lea.sflag [#allocation3], %s3306
        %s3308 = sand.u32 %s274, 1
        %s3309 = scalar_lea.vmem [#allocation2], %s3308
        %s3310 = sand.u32 %s300, 1
        %s3311 = scalar_lea.sflag [#allocation5], %s3310
        %s3312 = sand.u32 %s300, 1
        %s3313 = scalar_lea.vmem [#allocation4], %s3312
        // Predicated region
        $region65: #{tpu_custom_call.1} parent=63 // pred_check
          %p3314 = pneg %p284
        $region66: #{tpu_custom_call.1} parent=63 // pred_check_branch
          %3316 = sbr.rel (%p3314) target = $region68
        $region67: #{tpu_custom_call.1} parent=63 // pred_region
          %3318 = vsyncadd %s3307, 0
          %s3319 = scalar_lea.hbm %s11, %s30
          %s3321 = sshll.u32 %s3309, 4
          %s3322 = int_to_ptr.vmem [resolvable:$true] %s3321
          %s3323 = sshll.u32 %s3319, 4
          %s3324 = int_to_ptr.hbm [resolvable:$true] %s3323
          %3326 = dma.vmem_to_hbm [thread:$0]  %s3322, 16, %s3324, %s3307
        $region68: #{tpu_custom_call.1} parent=63 // pred_fallthru
          _
        // Predicated region
        $region69: #{tpu_custom_call.1} parent=63 // pred_check
          %p3327 = pneg %p310
        $region70: #{tpu_custom_call.1} parent=63 // pred_check_branch
          %3329 = sbr.rel (%p3327) target = $region72
        $region71: #{tpu_custom_call.1} parent=63 // pred_region
          %3331 = vsyncadd %s3311, 0
          %s3332 = scalar_lea.hbm %s12, %s30
          %s3334 = sshll.u32 %s3313, 4
          %s3335 = int_to_ptr.vmem [resolvable:$true] %s3334
          %s3336 = sshll.u32 %s3332, 4
          %s3337 = int_to_ptr.hbm [resolvable:$true] %s3336
          %3339 = dma.vmem_to_hbm [thread:$0]  %s3335, 16, %s3337, %s3311
        $region72: #{tpu_custom_call.1} parent=63 // pred_fallthru
          _
      $region64: #{tpu_custom_call.1} parent=5 // pred_fallthru
        _
      %p3340 = scmp.le.s32.totalorder 2, %s25
      // Predicated region
      $region73: #{tpu_custom_call.1} parent=5 // pred_check
        %p3341 = pneg %p3340
      $region74: #{tpu_custom_call.1} parent=5 // pred_check_branch
        %3343 = sbr.rel (%p3341) target = $region76
      $region75: #{tpu_custom_call.1} parent=5 // pred_region
        %s3344 = ssub.s32 %s25, 2
        // Predicated region
        $region77: #{tpu_custom_call.1} parent=75 // pred_check
          %p3345 = pneg %p290
        $region78: #{tpu_custom_call.1} parent=75 // pred_check_branch
          %3347 = sbr.rel (%p3345) target = $region80
        $region79: #{tpu_custom_call.1} parent=75 // pred_region
          %s3348 = sand.u32 %s275, 1
          %s3349 = scalar_lea.sflag [#allocation3], %s3348
          %s3350 = sand.u32 %s275, 1
          %s3351 = scalar_lea.vmem [#allocation2], %s3350
          %3353 = dma.done %s3349, 16
        $region80: #{tpu_custom_call.1} parent=75 // pred_fallthru
          _
        // Predicated region
        $region81: #{tpu_custom_call.1} parent=75 // pred_check
          %p3354 = pneg %p316
        $region82: #{tpu_custom_call.1} parent=75 // pred_check_branch
          %3356 = sbr.rel (%p3354) target = $region84
        $region83: #{tpu_custom_call.1} parent=75 // pred_region
          %s3357 = sand.u32 %s301, 1
          %s3358 = scalar_lea.sflag [#allocation5], %s3357
          %s3359 = sand.u32 %s301, 1
          %s3360 = scalar_lea.vmem [#allocation4], %s3359
          %3362 = dma.done %s3358, 16
        $region84: #{tpu_custom_call.1} parent=75 // pred_fallthru
          _
      $region76: #{tpu_custom_call.1} parent=5 // pred_fallthru
        _
    $region6: #{tpu_custom_call.1} parent=1 // loop_footer
      %s29 = sadd.s32 1, %s25
    $region7: #{tpu_custom_call.1} parent=1 // loop_footer_branch
      %24 = sbr.rel target = $region3
    $region8: #{tpu_custom_call.1} parent=1 // loop_exit
      _
    %3363 = vsyncpa [#allocation3], 1
    %s3364 = scalar_lea.sflag [#allocation3], 1
    %3365 = vsyncpa %s3364, 1
    %3366 = vsyncpa [#allocation5], 1
    %s3367 = scalar_lea.sflag [#allocation5], 1
    %3368 = vsyncpa %s3367, 1

</llo_original>
